<compile_context>
chip_gen: v7x
topology: tpu7x:2x2x1
jax: 0.10.0
libtpu: 0.0.40
codegen_flags: <defaults>
</compile_context>

<pallas_src>
import math
from functools import partial

import jax
import jax.numpy as jnp
import numpy as np
from jax.experimental import pallas as pl
from jax.experimental.pallas import tpu as pltpu

# ---- small, deterministic model config (consistent with the module) ----
VOCAB = 64
BLOCK_SIZE = 16
N_EMBD = 32
N_HEAD = 4
N_LAYER = 2
LN_EPS = 1e-5
LANE = 128


# ------------------------- shared math helpers -------------------------
def _layernorm(x, g, b):
    mu = jnp.mean(x, axis=-1, keepdims=True)
    var = jnp.mean((x - mu) ** 2, axis=-1, keepdims=True)
    return (x - mu) * jax.lax.rsqrt(var + LN_EPS) * g + b


def _new_gelu(x):
    return 0.5 * x * (1.0 + jnp.tanh(math.sqrt(2.0 / math.pi)
                                     * (x + 0.044715 * x ** 3)))


# ------------------------------ fused kernel ------------------------------
def _forward_kernel(x_ref, ln1g_ref, ln1b_ref, wqkv_ref, bqkv_ref,
                    wo_ref, bo_ref, ln2g_ref, ln2b_ref,
                    wfc_ref, bfc_ref, wpr_ref, bpr_ref,
                    lnfg_ref, lnfb_ref, wlm_ref, out_ref,
                    *, n_layer, n_head, batch, seq):
    """Full forward: N_LAYER transformer blocks + ln_f + lm_head.

    Activations stay resident in vregs/VMEM; x is (B*T, C) with the batch
    folded into the sublane (row) axis.
    """
    x = x_ref[...]                                # (N, C), N = B*T
    N, C = x.shape
    D = C // n_head
    scale = 1.0 / math.sqrt(D)

    # causal mask, built at full (B, T, T) shape so no predicate broadcasting
    rows = jax.lax.broadcasted_iota(jnp.int32, (batch, seq, seq), 1)
    cols = jax.lax.broadcasted_iota(jnp.int32, (batch, seq, seq), 2)
    causal = rows >= cols

    for l in range(n_layer):                      # static layer loop
        # ---- attention branch:  x + c_proj(attn(ln_1(x))) ----
        h = _layernorm(x, ln1g_ref[l], ln1b_ref[l])
        qkv = jnp.dot(h, wqkv_ref[l],
                      preferred_element_type=jnp.float32) + bqkv_ref[l]
        # free reshapes: split the sublane axis (B*T -> B, T); lanes untouched
        q = qkv[:, :C].reshape(batch, seq, C)
        k = qkv[:, C:2 * C].reshape(batch, seq, C)
        v = qkv[:, 2 * C:].reshape(batch, seq, C)

        wo_l = wo_ref[l]                          # (C, C)
        attn_proj = jnp.zeros((N, C), jnp.float32)
        for hh in range(n_head):                  # static head loop, batched over B
            sl = slice(hh * D, (hh + 1) * D)
            qh, kh, vh = q[:, :, sl], k[:, :, sl], v[:, :, sl]   # (B, T, D)
            att = jnp.einsum('bqd,bkd->bqk', qh, kh,
                             preferred_element_type=jnp.float32) * scale
            att = jnp.where(causal, att, -1e30)   # masked_fill(-inf)
            att = att - jnp.max(att, axis=-1, keepdims=True)
            p = jnp.exp(att)
            p = p * pl.reciprocal(jnp.sum(p, axis=-1, keepdims=True), approx=True)
            yh = jnp.einsum('bqk,bkd->bqd', p, vh,
                            preferred_element_type=jnp.float32)  # (B, T, D)
            # fold the head concat into the output projection (no concatenate)
            attn_proj = attn_proj + jnp.dot(yh.reshape(N, D), wo_l[sl, :],
                                            preferred_element_type=jnp.float32)
        x = x + attn_proj + bo_ref[l]

        # ---- MLP branch:  x + c_proj(gelu(c_fc(ln_2(x)))) ----
        h2 = _layernorm(x, ln2g_ref[l], ln2b_ref[l])
        fc = _new_gelu(jnp.dot(h2, wfc_ref[l],
                               preferred_element_type=jnp.float32) + bfc_ref[l])
        x = x + jnp.dot(fc, wpr_ref[l],
                        preferred_element_type=jnp.float32) + bpr_ref[l]

    # ---- final LayerNorm + lm_head (vocab padded to a 128-lane slab) ----
    hf = _layernorm(x, lnfg_ref[...], lnfb_ref[...])
    out_ref[...] = jnp.dot(hf, wlm_ref[...], preferred_element_type=jnp.float32)


# ----------------------------- wrapper -----------------------------
def transformer_forward(idx, params):
    """Mirrors Transformer.forward(idx, targets=None) -> logits."""
    B, T = idx.shape
    assert T <= BLOCK_SIZE
    C = N_EMBD
    V = params["w_lm"].shape[1]
    Vpad = pl.cdiv(V, LANE) * LANE

    # Embedding gathers kept in plain JAX (glue); fold batch into rows.
    tok_emb = jnp.take(params["wte"], idx, axis=0)            # (B, T, C)
    pos_emb = params["wpe"][:T][None, :, :]                   # (1, T, C)
    x = (tok_emb + pos_emb).reshape(B * T, C)                 # (B*T, C)

    # Stack per-layer weights along a leading L axis (static in-kernel loop).
    st = lambda name: jnp.stack([blk[name] for blk in params["blocks"]])
    # Pad lm_head columns to a multiple of 128 -> lane-dense output store.
    w_lm_pad = jnp.pad(params["w_lm"], ((0, 0), (0, Vpad - V)))

    kernel = partial(_forward_kernel, n_layer=N_LAYER, n_head=N_HEAD,
                     batch=B, seq=T)
    vmem_spec = pl.BlockSpec(memory_space=pltpu.MemorySpace.VMEM)

    logits_pad = pl.pallas_call(
        kernel,
        out_shape=jax.ShapeDtypeStruct((B * T, Vpad), jnp.float32),
        in_specs=[vmem_spec] * 16,
        out_specs=vmem_spec,
    )(x,
      st("ln1_g"), st("ln1_b"), st("w_qkv"), st("b_qkv"),
      st("w_o"), st("b_o"), st("ln2_g"), st("ln2_b"),
      st("w_fc"), st("b_fc"), st("w_pr"), st("b_pr"),
      params["lnf_g"], params["lnf_b"], w_lm_pad)

    # TODO(synk): cross-entropy loss path (targets != None) not implemented; returns logits only.
    return logits_pad[:, :V].reshape(B, T, V)


# --------------------------- pure-JAX reference ---------------------------
def reference_forward(idx, params):
    B, T = idx.shape
    x = jnp.take(params["wte"], idx, axis=0) + params["wpe"][:T][None]
    causal = jnp.tril(jnp.ones((T, T), dtype=bool))
    D = N_EMBD // N_HEAD
    for p in params["blocks"]:
        h = _layernorm(x, p["ln1_g"], p["ln1_b"])
        qkv = h @ p["w_qkv"] + p["b_qkv"]
        q, k, v = jnp.split(qkv, 3, axis=-1)
        sh = lambda a: a.reshape(B, T, N_HEAD, D).transpose(0, 2, 1, 3)
        q, k, v = sh(q), sh(k), sh(v)
        att = (q @ jnp.swapaxes(k, -1, -2)) / math.sqrt(D)
        att = jnp.where(causal[None, None], att, -1e30)
        att = jax.nn.softmax(att, axis=-1)
        y = (att @ v).transpose(0, 2, 1, 3).reshape(B, T, N_EMBD)
        x = x + (y @ p["w_o"] + p["b_o"])
        h2 = _layernorm(x, p["ln2_g"], p["ln2_b"])
        x = x + (_new_gelu(h2 @ p["w_fc"] + p["b_fc"]) @ p["w_pr"] + p["b_pr"])
    x = _layernorm(x, params["lnf_g"], params["lnf_b"])
    return x @ params["w_lm"]


# ------------------------------ params ------------------------------
def init_params(key):
    def nrm(k, shape, scale=0.02):
        return (scale * jax.random.normal(k, shape)).astype(jnp.float32)

    ks = jax.random.split(key, 3 + N_LAYER)
    params = {
        "wte": nrm(ks[0], (VOCAB, N_EMBD)),
        "wpe": nrm(ks[1], (BLOCK_SIZE, N_EMBD)),
        "lnf_g": jnp.ones((1, N_EMBD), jnp.float32),
        "lnf_b": jnp.zeros((1, N_EMBD), jnp.float32),
        "w_lm": nrm(ks[2], (N_EMBD, VOCAB)),   # lm_head (no bias)
        "blocks": [],
    }
    for i in range(N_LAYER):
        bk = jax.random.split(ks[3 + i], 8)
        params["blocks"].append({
            "ln1_g": jnp.ones((1, N_EMBD), jnp.float32),
            "ln1_b": jnp.zeros((1, N_EMBD), jnp.float32),
            "w_qkv": nrm(bk[0], (N_EMBD, 3 * N_EMBD)),
            "b_qkv": nrm(bk[1], (1, 3 * N_EMBD)),
            "w_o":   nrm(bk[2], (N_EMBD, N_EMBD)),
            "b_o":   nrm(bk[3], (1, N_EMBD)),
            "ln2_g": jnp.ones((1, N_EMBD), jnp.float32),
            "ln2_b": jnp.zeros((1, N_EMBD), jnp.float32),
            "w_fc":  nrm(bk[4], (N_EMBD, 4 * N_EMBD)),
            "b_fc":  nrm(bk[5], (1, 4 * N_EMBD)),
            "w_pr":  nrm(bk[6], (4 * N_EMBD, N_EMBD)),
            "b_pr":  nrm(bk[7], (1, N_EMBD)),
        })
    return params


# ------------------------------- main -------------------------------
if __name__ == "__main__":
    key = jax.random.PRNGKey(0)
    pkey, ikey = jax.random.split(key)
    params = init_params(pkey)

    B, T = 2, 8
    idx = jax.random.randint(ikey, (B, T), 0, VOCAB, dtype=jnp.int32)

    logits = transformer_forward(idx, params)
    logits = jax.block_until_ready(logits)
    assert logits.shape == (B, T, VOCAB)

    ref = reference_forward(idx, params)
    # Slightly loosened tolerance: kernel uses the EUP approximate reciprocal
    # for the softmax denominator.
    np.testing.assert_allclose(np.asarray(logits), np.asarray(ref),
                               rtol=2e-3, atol=2e-3)
    print("KERNEL_OK")
</pallas_src>

<mosaic_0001>
module attributes {stable_mosaic.version = 11 : i64} {
  func.func @_forward_kernel(%arg0: memref<16x32xf32, #tpu.memory_space<vmem>>, %arg1: memref<2x1x32xf32, #tpu.memory_space<vmem>>, %arg2: memref<2x1x32xf32, #tpu.memory_space<vmem>>, %arg3: memref<2x32x96xf32, #tpu.memory_space<vmem>>, %arg4: memref<2x1x96xf32, #tpu.memory_space<vmem>>, %arg5: memref<2x32x32xf32, #tpu.memory_space<vmem>>, %arg6: memref<2x1x32xf32, #tpu.memory_space<vmem>>, %arg7: memref<2x1x32xf32, #tpu.memory_space<vmem>>, %arg8: memref<2x1x32xf32, #tpu.memory_space<vmem>>, %arg9: memref<2x32x128xf32, #tpu.memory_space<vmem>>, %arg10: memref<2x1x128xf32, #tpu.memory_space<vmem>>, %arg11: memref<2x128x32xf32, #tpu.memory_space<vmem>>, %arg12: memref<2x1x32xf32, #tpu.memory_space<vmem>>, %arg13: memref<1x32xf32, #tpu.memory_space<vmem>>, %arg14: memref<1x32xf32, #tpu.memory_space<vmem>>, %arg15: memref<32x128xf32, #tpu.memory_space<vmem>>, %arg16: memref<16x128xf32, #tpu.memory_space<vmem>>) attributes {dimension_semantics = [], scalar_prefetch = 0 : i64, scratch_operands = 0 : i64, tpu.core_type = #tpu.core_type<tc>} {
    %c0 = arith.constant 0 : index
    %c0_0 = arith.constant 0 : index
    %0 = vector.load %arg0[%c0, %c0_0] : memref<16x32xf32, #tpu.memory_space<vmem>>, vector<16x32xf32>
    %1 = tpu.iota {dimensions = array<i32: 1>} : vector<2x8x8xi32>
    %2 = tpu.iota {dimensions = array<i32: 2>} : vector<2x8x8xi32>
    %3 = arith.cmpi sge, %1, %2 : vector<2x8x8xi32>
    %c0_1 = arith.constant 0 : index
    %c0_2 = arith.constant 0 : index
    %c0_3 = arith.constant 0 : index
    %4 = vector.load %arg1[%c0_1, %c0_2, %c0_3] : memref<2x1x32xf32, #tpu.memory_space<vmem>>, vector<1x1x32xf32>
    %5 = vector.shape_cast %4 : vector<1x1x32xf32> to vector<1x32xf32>
    %c0_4 = arith.constant 0 : index
    %c0_5 = arith.constant 0 : index
    %c0_6 = arith.constant 0 : index
    %6 = vector.load %arg2[%c0_4, %c0_5, %c0_6] : memref<2x1x32xf32, #tpu.memory_space<vmem>>, vector<1x1x32xf32>
    %7 = vector.shape_cast %6 : vector<1x1x32xf32> to vector<1x32xf32>
    %cst = arith.constant dense<0.000000e+00> : vector<16xf32>
    %8 = vector.multi_reduction <add>, %0, %cst [1] : vector<16x32xf32> to vector<16xf32>
    %9 = vector.shape_cast %8 : vector<16xf32> to vector<16x1xf32>
    %cst_7 = arith.constant 3.200000e+01 : f32
    %10 = vector.broadcast %cst_7 : f32 to vector<16x1xf32>
    %11 = arith.divf %9, %10 : vector<16x1xf32>
    %12 = vector.broadcast %11 : vector<16x1xf32> to vector<16x32xf32>
    %13 = arith.subf %0, %12 : vector<16x32xf32>
    %14 = arith.mulf %13, %13 : vector<16x32xf32>
    %cst_8 = arith.constant dense<0.000000e+00> : vector<16xf32>
    %15 = vector.multi_reduction <add>, %14, %cst_8 [1] : vector<16x32xf32> to vector<16xf32>
    %16 = vector.shape_cast %15 : vector<16xf32> to vector<16x1xf32>
    %cst_9 = arith.constant 3.200000e+01 : f32
    %17 = vector.broadcast %cst_9 : f32 to vector<16x1xf32>
    %18 = arith.divf %16, %17 : vector<16x1xf32>
    %19 = vector.broadcast %11 : vector<16x1xf32> to vector<16x32xf32>
    %20 = arith.subf %0, %19 : vector<16x32xf32>
    %cst_10 = arith.constant 9.99999974E-6 : f32
    %21 = vector.broadcast %cst_10 : f32 to vector<16x1xf32>
    %22 = arith.addf %18, %21 : vector<16x1xf32>
    %23 = math.rsqrt %22 : vector<16x1xf32>
    %24 = vector.broadcast %23 : vector<16x1xf32> to vector<16x32xf32>
    %25 = arith.mulf %20, %24 : vector<16x32xf32>
    %26 = vector.broadcast %5 : vector<1x32xf32> to vector<16x32xf32>
    %27 = arith.mulf %25, %26 : vector<16x32xf32>
    %28 = vector.broadcast %7 : vector<1x32xf32> to vector<16x32xf32>
    %29 = arith.addf %27, %28 : vector<16x32xf32>
    %c0_11 = arith.constant 0 : index
    %c0_12 = arith.constant 0 : index
    %c0_13 = arith.constant 0 : index
    %30 = vector.load %arg3[%c0_11, %c0_12, %c0_13] : memref<2x32x96xf32, #tpu.memory_space<vmem>>, vector<1x32x96xf32>
    %31 = vector.shape_cast %30 : vector<1x32x96xf32> to vector<32x96xf32>
    %cst_14 = arith.constant dense<0.000000e+00> : vector<16x96xf32>
    %32 = tpu.matmul %29, %31, %cst_14 {dimension_numbers = #tpu.dot_dimension_numbers<[1], [0], [0], [1], [0, 0, 1, 1], [], []>} : vector<16x32xf32>, vector<32x96xf32>, vector<16x96xf32> -> vector<16x96xf32>
    %c0_15 = arith.constant 0 : index
    %c0_16 = arith.constant 0 : index
    %c0_17 = arith.constant 0 : index
    %33 = vector.load %arg4[%c0_15, %c0_16, %c0_17] : memref<2x1x96xf32, #tpu.memory_space<vmem>>, vector<1x1x96xf32>
    %34 = vector.shape_cast %33 : vector<1x1x96xf32> to vector<1x96xf32>
    %35 = vector.broadcast %34 : vector<1x96xf32> to vector<16x96xf32>
    %36 = arith.addf %32, %35 : vector<16x96xf32>
    %37 = vector.extract_strided_slice %36 {offsets = [0, 0], sizes = [16, 32], strides = [1, 1]} : vector<16x96xf32> to vector<16x32xf32>
    %38 = vector.shape_cast %37 : vector<16x32xf32> to vector<2x8x32xf32>
    %39 = vector.extract_strided_slice %36 {offsets = [0, 32], sizes = [16, 32], strides = [1, 1]} : vector<16x96xf32> to vector<16x32xf32>
    %40 = vector.shape_cast %39 : vector<16x32xf32> to vector<2x8x32xf32>
    %41 = vector.extract_strided_slice %36 {offsets = [0, 64], sizes = [16, 32], strides = [1, 1]} : vector<16x96xf32> to vector<16x32xf32>
    %42 = vector.shape_cast %41 : vector<16x32xf32> to vector<2x8x32xf32>
    %c0_18 = arith.constant 0 : index
    %c0_19 = arith.constant 0 : index
    %c0_20 = arith.constant 0 : index
    %43 = vector.load %arg5[%c0_18, %c0_19, %c0_20] : memref<2x32x32xf32, #tpu.memory_space<vmem>>, vector<1x32x32xf32>
    %44 = vector.shape_cast %43 : vector<1x32x32xf32> to vector<32x32xf32>
    %cst_21 = arith.constant 0.000000e+00 : f32
    %45 = vector.broadcast %cst_21 : f32 to vector<16x32xf32>
    %46 = vector.extract_strided_slice %38 {offsets = [0, 0, 0], sizes = [2, 8, 8], strides = [1, 1, 1]} : vector<2x8x32xf32> to vector<2x8x8xf32>
    %47 = vector.extract_strided_slice %40 {offsets = [0, 0, 0], sizes = [2, 8, 8], strides = [1, 1, 1]} : vector<2x8x32xf32> to vector<2x8x8xf32>
    %48 = vector.extract_strided_slice %42 {offsets = [0, 0, 0], sizes = [2, 8, 8], strides = [1, 1, 1]} : vector<2x8x32xf32> to vector<2x8x8xf32>
    "tpu.trace_start"() <{level = 10 : i32, message = "bqd,bkd->bqk"}> : () -> ()
    %cst_22 = arith.constant dense<0.000000e+00> : vector<2x8x8xf32>
    %49 = tpu.matmul %46, %47, %cst_22 {dimension_numbers = #tpu.dot_dimension_numbers<[2], [2], [1], [1], [0, 0, 0, 1, 1, 1], [0], [0]>} : vector<2x8x8xf32>, vector<2x8x8xf32>, vector<2x8x8xf32> -> vector<2x8x8xf32>
    "tpu.trace_stop"() : () -> ()
    %cst_23 = arith.constant 0.353553385 : f32
    %50 = vector.broadcast %cst_23 : f32 to vector<2x8x8xf32>
    %51 = arith.mulf %49, %50 : vector<2x8x8xf32>
    %cst_24 = arith.constant -1.000000e+30 : f32
    %52 = vector.broadcast %cst_24 : f32 to vector<2x8x8xf32>
    %53 = arith.select %3, %51, %52 : vector<2x8x8xi1>, vector<2x8x8xf32>
    %cst_25 = arith.constant dense<0xFF800000> : vector<2x8xf32>
    %54 = vector.multi_reduction <maximumf>, %53, %cst_25 [2] : vector<2x8x8xf32> to vector<2x8xf32>
    %55 = vector.shape_cast %54 : vector<2x8xf32> to vector<2x8x1xf32>
    %56 = vector.broadcast %55 : vector<2x8x1xf32> to vector<2x8x8xf32>
    %57 = arith.subf %53, %56 : vector<2x8x8xf32>
    %58 = math.exp %57 : vector<2x8x8xf32>
    %cst_26 = arith.constant dense<0.000000e+00> : vector<2x8xf32>
    %59 = vector.multi_reduction <add>, %58, %cst_26 [2] : vector<2x8x8xf32> to vector<2x8xf32>
    %60 = vector.shape_cast %59 : vector<2x8xf32> to vector<2x8x1xf32>
    %61 = tpu.reciprocal %60 {approx = true} : vector<2x8x1xf32> -> vector<2x8x1xf32>
    %62 = vector.broadcast %61 : vector<2x8x1xf32> to vector<2x8x8xf32>
    %63 = arith.mulf %58, %62 : vector<2x8x8xf32>
    "tpu.trace_start"() <{level = 10 : i32, message = "bqk,bkd->bqd"}> : () -> ()
    %cst_27 = arith.constant dense<0.000000e+00> : vector<2x8x8xf32>
    %64 = tpu.matmul %63, %48, %cst_27 {dimension_numbers = #tpu.dot_dimension_numbers<[2], [1], [1], [2], [0, 0, 0, 1, 1, 2], [0], [0]>} : vector<2x8x8xf32>, vector<2x8x8xf32>, vector<2x8x8xf32> -> vector<2x8x8xf32>
    "tpu.trace_stop"() : () -> ()
    %65 = vector.shape_cast %64 : vector<2x8x8xf32> to vector<16x8xf32>
    %66 = vector.extract_strided_slice %44 {offsets = [0, 0], sizes = [8, 32], strides = [1, 1]} : vector<32x32xf32> to vector<8x32xf32>
    %cst_28 = arith.constant dense<0.000000e+00> : vector<16x32xf32>
    %67 = tpu.matmul %65, %66, %cst_28 {dimension_numbers = #tpu.dot_dimension_numbers<[1], [0], [0], [1], [0, 0, 1, 1], [], []>} : vector<16x8xf32>, vector<8x32xf32>, vector<16x32xf32> -> vector<16x32xf32>
    %68 = arith.addf %45, %67 : vector<16x32xf32>
    %69 = vector.extract_strided_slice %38 {offsets = [0, 0, 8], sizes = [2, 8, 8], strides = [1, 1, 1]} : vector<2x8x32xf32> to vector<2x8x8xf32>
    %70 = vector.extract_strided_slice %40 {offsets = [0, 0, 8], sizes = [2, 8, 8], strides = [1, 1, 1]} : vector<2x8x32xf32> to vector<2x8x8xf32>
    %71 = vector.extract_strided_slice %42 {offsets = [0, 0, 8], sizes = [2, 8, 8], strides = [1, 1, 1]} : vector<2x8x32xf32> to vector<2x8x8xf32>
    "tpu.trace_start"() <{level = 10 : i32, message = "bqd,bkd->bqk"}> : () -> ()
    %cst_29 = arith.constant dense<0.000000e+00> : vector<2x8x8xf32>
    %72 = tpu.matmul %69, %70, %cst_29 {dimension_numbers = #tpu.dot_dimension_numbers<[2], [2], [1], [1], [0, 0, 0, 1, 1, 1], [0], [0]>} : vector<2x8x8xf32>, vector<2x8x8xf32>, vector<2x8x8xf32> -> vector<2x8x8xf32>
    "tpu.trace_stop"() : () -> ()
    %cst_30 = arith.constant 0.353553385 : f32
    %73 = vector.broadcast %cst_30 : f32 to vector<2x8x8xf32>
    %74 = arith.mulf %72, %73 : vector<2x8x8xf32>
    %cst_31 = arith.constant -1.000000e+30 : f32
    %75 = vector.broadcast %cst_31 : f32 to vector<2x8x8xf32>
    %76 = arith.select %3, %74, %75 : vector<2x8x8xi1>, vector<2x8x8xf32>
    %cst_32 = arith.constant dense<0xFF800000> : vector<2x8xf32>
    %77 = vector.multi_reduction <maximumf>, %76, %cst_32 [2] : vector<2x8x8xf32> to vector<2x8xf32>
    %78 = vector.shape_cast %77 : vector<2x8xf32> to vector<2x8x1xf32>
    %79 = vector.broadcast %78 : vector<2x8x1xf32> to vector<2x8x8xf32>
    %80 = arith.subf %76, %79 : vector<2x8x8xf32>
    %81 = math.exp %80 : vector<2x8x8xf32>
    %cst_33 = arith.constant dense<0.000000e+00> : vector<2x8xf32>
    %82 = vector.multi_reduction <add>, %81, %cst_33 [2] : vector<2x8x8xf32> to vector<2x8xf32>
    %83 = vector.shape_cast %82 : vector<2x8xf32> to vector<2x8x1xf32>
    %84 = tpu.reciprocal %83 {approx = true} : vector<2x8x1xf32> -> vector<2x8x1xf32>
    %85 = vector.broadcast %84 : vector<2x8x1xf32> to vector<2x8x8xf32>
    %86 = arith.mulf %81, %85 : vector<2x8x8xf32>
    "tpu.trace_start"() <{level = 10 : i32, message = "bqk,bkd->bqd"}> : () -> ()
    %cst_34 = arith.constant dense<0.000000e+00> : vector<2x8x8xf32>
    %87 = tpu.matmul %86, %71, %cst_34 {dimension_numbers = #tpu.dot_dimension_numbers<[2], [1], [1], [2], [0, 0, 0, 1, 1, 2], [0], [0]>} : vector<2x8x8xf32>, vector<2x8x8xf32>, vector<2x8x8xf32> -> vector<2x8x8xf32>
    "tpu.trace_stop"() : () -> ()
    %88 = vector.shape_cast %87 : vector<2x8x8xf32> to vector<16x8xf32>
    %89 = vector.extract_strided_slice %44 {offsets = [8, 0], sizes = [8, 32], strides = [1, 1]} : vector<32x32xf32> to vector<8x32xf32>
    %cst_35 = arith.constant dense<0.000000e+00> : vector<16x32xf32>
    %90 = tpu.matmul %88, %89, %cst_35 {dimension_numbers = #tpu.dot_dimension_numbers<[1], [0], [0], [1], [0, 0, 1, 1], [], []>} : vector<16x8xf32>, vector<8x32xf32>, vector<16x32xf32> -> vector<16x32xf32>
    %91 = arith.addf %68, %90 : vector<16x32xf32>
    %92 = vector.extract_strided_slice %38 {offsets = [0, 0, 16], sizes = [2, 8, 8], strides = [1, 1, 1]} : vector<2x8x32xf32> to vector<2x8x8xf32>
    %93 = vector.extract_strided_slice %40 {offsets = [0, 0, 16], sizes = [2, 8, 8], strides = [1, 1, 1]} : vector<2x8x32xf32> to vector<2x8x8xf32>
    %94 = vector.extract_strided_slice %42 {offsets = [0, 0, 16], sizes = [2, 8, 8], strides = [1, 1, 1]} : vector<2x8x32xf32> to vector<2x8x8xf32>
    "tpu.trace_start"() <{level = 10 : i32, message = "bqd,bkd->bqk"}> : () -> ()
    %cst_36 = arith.constant dense<0.000000e+00> : vector<2x8x8xf32>
    %95 = tpu.matmul %92, %93, %cst_36 {dimension_numbers = #tpu.dot_dimension_numbers<[2], [2], [1], [1], [0, 0, 0, 1, 1, 1], [0], [0]>} : vector<2x8x8xf32>, vector<2x8x8xf32>, vector<2x8x8xf32> -> vector<2x8x8xf32>
    "tpu.trace_stop"() : () -> ()
    %cst_37 = arith.constant 0.353553385 : f32
    %96 = vector.broadcast %cst_37 : f32 to vector<2x8x8xf32>
    %97 = arith.mulf %95, %96 : vector<2x8x8xf32>
    %cst_38 = arith.constant -1.000000e+30 : f32
    %98 = vector.broadcast %cst_38 : f32 to vector<2x8x8xf32>
    %99 = arith.select %3, %97, %98 : vector<2x8x8xi1>, vector<2x8x8xf32>
    %cst_39 = arith.constant dense<0xFF800000> : vector<2x8xf32>
    %100 = vector.multi_reduction <maximumf>, %99, %cst_39 [2] : vector<2x8x8xf32> to vector<2x8xf32>
    %101 = vector.shape_cast %100 : vector<2x8xf32> to vector<2x8x1xf32>
    %102 = vector.broadcast %101 : vector<2x8x1xf32> to vector<2x8x8xf32>
    %103 = arith.subf %99, %102 : vector<2x8x8xf32>
    %104 = math.exp %103 : vector<2x8x8xf32>
    %cst_40 = arith.constant dense<0.000000e+00> : vector<2x8xf32>
    %105 = vector.multi_reduction <add>, %104, %cst_40 [2] : vector<2x8x8xf32> to vector<2x8xf32>
    %106 = vector.shape_cast %105 : vector<2x8xf32> to vector<2x8x1xf32>
    %107 = tpu.reciprocal %106 {approx = true} : vector<2x8x1xf32> -> vector<2x8x1xf32>
    %108 = vector.broadcast %107 : vector<2x8x1xf32> to vector<2x8x8xf32>
    %109 = arith.mulf %104, %108 : vector<2x8x8xf32>
    "tpu.trace_start"() <{level = 10 : i32, message = "bqk,bkd->bqd"}> : () -> ()
    %cst_41 = arith.constant dense<0.000000e+00> : vector<2x8x8xf32>
    %110 = tpu.matmul %109, %94, %cst_41 {dimension_numbers = #tpu.dot_dimension_numbers<[2], [1], [1], [2], [0, 0, 0, 1, 1, 2], [0], [0]>} : vector<2x8x8xf32>, vector<2x8x8xf32>, vector<2x8x8xf32> -> vector<2x8x8xf32>
    "tpu.trace_stop"() : () -> ()
    %111 = vector.shape_cast %110 : vector<2x8x8xf32> to vector<16x8xf32>
    %112 = vector.extract_strided_slice %44 {offsets = [16, 0], sizes = [8, 32], strides = [1, 1]} : vector<32x32xf32> to vector<8x32xf32>
    %cst_42 = arith.constant dense<0.000000e+00> : vector<16x32xf32>
    %113 = tpu.matmul %111, %112, %cst_42 {dimension_numbers = #tpu.dot_dimension_numbers<[1], [0], [0], [1], [0, 0, 1, 1], [], []>} : vector<16x8xf32>, vector<8x32xf32>, vector<16x32xf32> -> vector<16x32xf32>
    %114 = arith.addf %91, %113 : vector<16x32xf32>
    %115 = vector.extract_strided_slice %38 {offsets = [0, 0, 24], sizes = [2, 8, 8], strides = [1, 1, 1]} : vector<2x8x32xf32> to vector<2x8x8xf32>
    %116 = vector.extract_strided_slice %40 {offsets = [0, 0, 24], sizes = [2, 8, 8], strides = [1, 1, 1]} : vector<2x8x32xf32> to vector<2x8x8xf32>
    %117 = vector.extract_strided_slice %42 {offsets = [0, 0, 24], sizes = [2, 8, 8], strides = [1, 1, 1]} : vector<2x8x32xf32> to vector<2x8x8xf32>
    "tpu.trace_start"() <{level = 10 : i32, message = "bqd,bkd->bqk"}> : () -> ()
    %cst_43 = arith.constant dense<0.000000e+00> : vector<2x8x8xf32>
    %118 = tpu.matmul %115, %116, %cst_43 {dimension_numbers = #tpu.dot_dimension_numbers<[2], [2], [1], [1], [0, 0, 0, 1, 1, 1], [0], [0]>} : vector<2x8x8xf32>, vector<2x8x8xf32>, vector<2x8x8xf32> -> vector<2x8x8xf32>
    "tpu.trace_stop"() : () -> ()
    %cst_44 = arith.constant 0.353553385 : f32
    %119 = vector.broadcast %cst_44 : f32 to vector<2x8x8xf32>
    %120 = arith.mulf %118, %119 : vector<2x8x8xf32>
    %cst_45 = arith.constant -1.000000e+30 : f32
    %121 = vector.broadcast %cst_45 : f32 to vector<2x8x8xf32>
    %122 = arith.select %3, %120, %121 : vector<2x8x8xi1>, vector<2x8x8xf32>
    %cst_46 = arith.constant dense<0xFF800000> : vector<2x8xf32>
    %123 = vector.multi_reduction <maximumf>, %122, %cst_46 [2] : vector<2x8x8xf32> to vector<2x8xf32>
    %124 = vector.shape_cast %123 : vector<2x8xf32> to vector<2x8x1xf32>
    %125 = vector.broadcast %124 : vector<2x8x1xf32> to vector<2x8x8xf32>
    %126 = arith.subf %122, %125 : vector<2x8x8xf32>
    %127 = math.exp %126 : vector<2x8x8xf32>
    %cst_47 = arith.constant dense<0.000000e+00> : vector<2x8xf32>
    %128 = vector.multi_reduction <add>, %127, %cst_47 [2] : vector<2x8x8xf32> to vector<2x8xf32>
    %129 = vector.shape_cast %128 : vector<2x8xf32> to vector<2x8x1xf32>
    %130 = tpu.reciprocal %129 {approx = true} : vector<2x8x1xf32> -> vector<2x8x1xf32>
    %131 = vector.broadcast %130 : vector<2x8x1xf32> to vector<2x8x8xf32>
    %132 = arith.mulf %127, %131 : vector<2x8x8xf32>
    "tpu.trace_start"() <{level = 10 : i32, message = "bqk,bkd->bqd"}> : () -> ()
    %cst_48 = arith.constant dense<0.000000e+00> : vector<2x8x8xf32>
    %133 = tpu.matmul %132, %117, %cst_48 {dimension_numbers = #tpu.dot_dimension_numbers<[2], [1], [1], [2], [0, 0, 0, 1, 1, 2], [0], [0]>} : vector<2x8x8xf32>, vector<2x8x8xf32>, vector<2x8x8xf32> -> vector<2x8x8xf32>
    "tpu.trace_stop"() : () -> ()
    %134 = vector.shape_cast %133 : vector<2x8x8xf32> to vector<16x8xf32>
    %135 = vector.extract_strided_slice %44 {offsets = [24, 0], sizes = [8, 32], strides = [1, 1]} : vector<32x32xf32> to vector<8x32xf32>
    %cst_49 = arith.constant dense<0.000000e+00> : vector<16x32xf32>
    %136 = tpu.matmul %134, %135, %cst_49 {dimension_numbers = #tpu.dot_dimension_numbers<[1], [0], [0], [1], [0, 0, 1, 1], [], []>} : vector<16x8xf32>, vector<8x32xf32>, vector<16x32xf32> -> vector<16x32xf32>
    %137 = arith.addf %114, %136 : vector<16x32xf32>
    %138 = arith.addf %0, %137 : vector<16x32xf32>
    %c0_50 = arith.constant 0 : index
    %c0_51 = arith.constant 0 : index
    %c0_52 = arith.constant 0 : index
    %139 = vector.load %arg6[%c0_50, %c0_51, %c0_52] : memref<2x1x32xf32, #tpu.memory_space<vmem>>, vector<1x1x32xf32>
    %140 = vector.shape_cast %139 : vector<1x1x32xf32> to vector<1x32xf32>
    %141 = vector.broadcast %140 : vector<1x32xf32> to vector<16x32xf32>
    %142 = arith.addf %138, %141 : vector<16x32xf32>
    %c0_53 = arith.constant 0 : index
    %c0_54 = arith.constant 0 : index
    %c0_55 = arith.constant 0 : index
    %143 = vector.load %arg7[%c0_53, %c0_54, %c0_55] : memref<2x1x32xf32, #tpu.memory_space<vmem>>, vector<1x1x32xf32>
    %144 = vector.shape_cast %143 : vector<1x1x32xf32> to vector<1x32xf32>
    %c0_56 = arith.constant 0 : index
    %c0_57 = arith.constant 0 : index
    %c0_58 = arith.constant 0 : index
    %145 = vector.load %arg8[%c0_56, %c0_57, %c0_58] : memref<2x1x32xf32, #tpu.memory_space<vmem>>, vector<1x1x32xf32>
    %146 = vector.shape_cast %145 : vector<1x1x32xf32> to vector<1x32xf32>
    %cst_59 = arith.constant dense<0.000000e+00> : vector<16xf32>
    %147 = vector.multi_reduction <add>, %142, %cst_59 [1] : vector<16x32xf32> to vector<16xf32>
    %148 = vector.shape_cast %147 : vector<16xf32> to vector<16x1xf32>
    %cst_60 = arith.constant 3.200000e+01 : f32
    %149 = vector.broadcast %cst_60 : f32 to vector<16x1xf32>
    %150 = arith.divf %148, %149 : vector<16x1xf32>
    %151 = vector.broadcast %150 : vector<16x1xf32> to vector<16x32xf32>
    %152 = arith.subf %142, %151 : vector<16x32xf32>
    %153 = arith.mulf %152, %152 : vector<16x32xf32>
    %cst_61 = arith.constant dense<0.000000e+00> : vector<16xf32>
    %154 = vector.multi_reduction <add>, %153, %cst_61 [1] : vector<16x32xf32> to vector<16xf32>
    %155 = vector.shape_cast %154 : vector<16xf32> to vector<16x1xf32>
    %cst_62 = arith.constant 3.200000e+01 : f32
    %156 = vector.broadcast %cst_62 : f32 to vector<16x1xf32>
    %157 = arith.divf %155, %156 : vector<16x1xf32>
    %158 = vector.broadcast %150 : vector<16x1xf32> to vector<16x32xf32>
    %159 = arith.subf %142, %158 : vector<16x32xf32>
    %cst_63 = arith.constant 9.99999974E-6 : f32
    %160 = vector.broadcast %cst_63 : f32 to vector<16x1xf32>
    %161 = arith.addf %157, %160 : vector<16x1xf32>
    %162 = math.rsqrt %161 : vector<16x1xf32>
    %163 = vector.broadcast %162 : vector<16x1xf32> to vector<16x32xf32>
    %164 = arith.mulf %159, %163 : vector<16x32xf32>
    %165 = vector.broadcast %144 : vector<1x32xf32> to vector<16x32xf32>
    %166 = arith.mulf %164, %165 : vector<16x32xf32>
    %167 = vector.broadcast %146 : vector<1x32xf32> to vector<16x32xf32>
    %168 = arith.addf %166, %167 : vector<16x32xf32>
    %c0_64 = arith.constant 0 : index
    %c0_65 = arith.constant 0 : index
    %c0_66 = arith.constant 0 : index
    %169 = vector.load %arg9[%c0_64, %c0_65, %c0_66] : memref<2x32x128xf32, #tpu.memory_space<vmem>>, vector<1x32x128xf32>
    %170 = vector.shape_cast %169 : vector<1x32x128xf32> to vector<32x128xf32>
    %cst_67 = arith.constant dense<0.000000e+00> : vector<16x128xf32>
    %171 = tpu.matmul %168, %170, %cst_67 {dimension_numbers = #tpu.dot_dimension_numbers<[1], [0], [0], [1], [0, 0, 1, 1], [], []>} : vector<16x32xf32>, vector<32x128xf32>, vector<16x128xf32> -> vector<16x128xf32>
    %c0_68 = arith.constant 0 : index
    %c0_69 = arith.constant 0 : index
    %c0_70 = arith.constant 0 : index
    %172 = vector.load %arg10[%c0_68, %c0_69, %c0_70] : memref<2x1x128xf32, #tpu.memory_space<vmem>>, vector<1x1x128xf32>
    %173 = vector.shape_cast %172 : vector<1x1x128xf32> to vector<1x128xf32>
    %174 = vector.broadcast %173 : vector<1x128xf32> to vector<16x128xf32>
    %175 = arith.addf %171, %174 : vector<16x128xf32>
    %cst_71 = arith.constant 5.000000e-01 : f32
    %176 = vector.broadcast %cst_71 : f32 to vector<16x128xf32>
    %177 = arith.mulf %176, %175 : vector<16x128xf32>
    %178 = arith.mulf %175, %175 : vector<16x128xf32>
    %179 = arith.mulf %175, %178 : vector<16x128xf32>
    %cst_72 = arith.constant 4.471500e-02 : f32
    %180 = vector.broadcast %cst_72 : f32 to vector<16x128xf32>
    %181 = arith.mulf %180, %179 : vector<16x128xf32>
    %182 = arith.addf %175, %181 : vector<16x128xf32>
    %cst_73 = arith.constant 0.797884583 : f32
    %183 = vector.broadcast %cst_73 : f32 to vector<16x128xf32>
    %184 = arith.mulf %183, %182 : vector<16x128xf32>
    %185 = math.tanh %184 : vector<16x128xf32>
    %cst_74 = arith.constant 1.000000e+00 : f32
    %186 = vector.broadcast %cst_74 : f32 to vector<16x128xf32>
    %187 = arith.addf %186, %185 : vector<16x128xf32>
    %188 = arith.mulf %177, %187 : vector<16x128xf32>
    %c0_75 = arith.constant 0 : index
    %c0_76 = arith.constant 0 : index
    %c0_77 = arith.constant 0 : index
    %189 = vector.load %arg11[%c0_75, %c0_76, %c0_77] : memref<2x128x32xf32, #tpu.memory_space<vmem>>, vector<1x128x32xf32>
    %190 = vector.shape_cast %189 : vector<1x128x32xf32> to vector<128x32xf32>
    %cst_78 = arith.constant dense<0.000000e+00> : vector<16x32xf32>
    %191 = tpu.matmul %188, %190, %cst_78 {dimension_numbers = #tpu.dot_dimension_numbers<[1], [0], [0], [1], [0, 0, 1, 1], [], []>} : vector<16x128xf32>, vector<128x32xf32>, vector<16x32xf32> -> vector<16x32xf32>
    %192 = arith.addf %142, %191 : vector<16x32xf32>
    %c0_79 = arith.constant 0 : index
    %c0_80 = arith.constant 0 : index
    %c0_81 = arith.constant 0 : index
    %193 = vector.load %arg12[%c0_79, %c0_80, %c0_81] : memref<2x1x32xf32, #tpu.memory_space<vmem>>, vector<1x1x32xf32>
    %194 = vector.shape_cast %193 : vector<1x1x32xf32> to vector<1x32xf32>
    %195 = vector.broadcast %194 : vector<1x32xf32> to vector<16x32xf32>
    %196 = arith.addf %192, %195 : vector<16x32xf32>
    %c1 = arith.constant 1 : index
    %c0_82 = arith.constant 0 : index
    %c0_83 = arith.constant 0 : index
    %197 = vector.load %arg1[%c1, %c0_82, %c0_83] : memref<2x1x32xf32, #tpu.memory_space<vmem>>, vector<1x1x32xf32>
    %198 = vector.shape_cast %197 : vector<1x1x32xf32> to vector<1x32xf32>
    %c1_84 = arith.constant 1 : index
    %c0_85 = arith.constant 0 : index
    %c0_86 = arith.constant 0 : index
    %199 = vector.load %arg2[%c1_84, %c0_85, %c0_86] : memref<2x1x32xf32, #tpu.memory_space<vmem>>, vector<1x1x32xf32>
    %200 = vector.shape_cast %199 : vector<1x1x32xf32> to vector<1x32xf32>
    %cst_87 = arith.constant dense<0.000000e+00> : vector<16xf32>
    %201 = vector.multi_reduction <add>, %196, %cst_87 [1] : vector<16x32xf32> to vector<16xf32>
    %202 = vector.shape_cast %201 : vector<16xf32> to vector<16x1xf32>
    %cst_88 = arith.constant 3.200000e+01 : f32
    %203 = vector.broadcast %cst_88 : f32 to vector<16x1xf32>
    %204 = arith.divf %202, %203 : vector<16x1xf32>
    %205 = vector.broadcast %204 : vector<16x1xf32> to vector<16x32xf32>
    %206 = arith.subf %196, %205 : vector<16x32xf32>
    %207 = arith.mulf %206, %206 : vector<16x32xf32>
    %cst_89 = arith.constant dense<0.000000e+00> : vector<16xf32>
    %208 = vector.multi_reduction <add>, %207, %cst_89 [1] : vector<16x32xf32> to vector<16xf32>
    %209 = vector.shape_cast %208 : vector<16xf32> to vector<16x1xf32>
    %cst_90 = arith.constant 3.200000e+01 : f32
    %210 = vector.broadcast %cst_90 : f32 to vector<16x1xf32>
    %211 = arith.divf %209, %210 : vector<16x1xf32>
    %212 = vector.broadcast %204 : vector<16x1xf32> to vector<16x32xf32>
    %213 = arith.subf %196, %212 : vector<16x32xf32>
    %cst_91 = arith.constant 9.99999974E-6 : f32
    %214 = vector.broadcast %cst_91 : f32 to vector<16x1xf32>
    %215 = arith.addf %211, %214 : vector<16x1xf32>
    %216 = math.rsqrt %215 : vector<16x1xf32>
    %217 = vector.broadcast %216 : vector<16x1xf32> to vector<16x32xf32>
    %218 = arith.mulf %213, %217 : vector<16x32xf32>
    %219 = vector.broadcast %198 : vector<1x32xf32> to vector<16x32xf32>
    %220 = arith.mulf %218, %219 : vector<16x32xf32>
    %221 = vector.broadcast %200 : vector<1x32xf32> to vector<16x32xf32>
    %222 = arith.addf %220, %221 : vector<16x32xf32>
    %c1_92 = arith.constant 1 : index
    %c0_93 = arith.constant 0 : index
    %c0_94 = arith.constant 0 : index
    %223 = vector.load %arg3[%c1_92, %c0_93, %c0_94] : memref<2x32x96xf32, #tpu.memory_space<vmem>>, vector<1x32x96xf32>
    %224 = vector.shape_cast %223 : vector<1x32x96xf32> to vector<32x96xf32>
    %cst_95 = arith.constant dense<0.000000e+00> : vector<16x96xf32>
    %225 = tpu.matmul %222, %224, %cst_95 {dimension_numbers = #tpu.dot_dimension_numbers<[1], [0], [0], [1], [0, 0, 1, 1], [], []>} : vector<16x32xf32>, vector<32x96xf32>, vector<16x96xf32> -> vector<16x96xf32>
    %c1_96 = arith.constant 1 : index
    %c0_97 = arith.constant 0 : index
    %c0_98 = arith.constant 0 : index
    %226 = vector.load %arg4[%c1_96, %c0_97, %c0_98] : memref<2x1x96xf32, #tpu.memory_space<vmem>>, vector<1x1x96xf32>
    %227 = vector.shape_cast %226 : vector<1x1x96xf32> to vector<1x96xf32>
    %228 = vector.broadcast %227 : vector<1x96xf32> to vector<16x96xf32>
    %229 = arith.addf %225, %228 : vector<16x96xf32>
    %230 = vector.extract_strided_slice %229 {offsets = [0, 0], sizes = [16, 32], strides = [1, 1]} : vector<16x96xf32> to vector<16x32xf32>
    %231 = vector.shape_cast %230 : vector<16x32xf32> to vector<2x8x32xf32>
    %232 = vector.extract_strided_slice %229 {offsets = [0, 32], sizes = [16, 32], strides = [1, 1]} : vector<16x96xf32> to vector<16x32xf32>
    %233 = vector.shape_cast %232 : vector<16x32xf32> to vector<2x8x32xf32>
    %234 = vector.extract_strided_slice %229 {offsets = [0, 64], sizes = [16, 32], strides = [1, 1]} : vector<16x96xf32> to vector<16x32xf32>
    %235 = vector.shape_cast %234 : vector<16x32xf32> to vector<2x8x32xf32>
    %c1_99 = arith.constant 1 : index
    %c0_100 = arith.constant 0 : index
    %c0_101 = arith.constant 0 : index
    %236 = vector.load %arg5[%c1_99, %c0_100, %c0_101] : memref<2x32x32xf32, #tpu.memory_space<vmem>>, vector<1x32x32xf32>
    %237 = vector.shape_cast %236 : vector<1x32x32xf32> to vector<32x32xf32>
    %cst_102 = arith.constant 0.000000e+00 : f32
    %238 = vector.broadcast %cst_102 : f32 to vector<16x32xf32>
    %239 = vector.extract_strided_slice %231 {offsets = [0, 0, 0], sizes = [2, 8, 8], strides = [1, 1, 1]} : vector<2x8x32xf32> to vector<2x8x8xf32>
    %240 = vector.extract_strided_slice %233 {offsets = [0, 0, 0], sizes = [2, 8, 8], strides = [1, 1, 1]} : vector<2x8x32xf32> to vector<2x8x8xf32>
    %241 = vector.extract_strided_slice %235 {offsets = [0, 0, 0], sizes = [2, 8, 8], strides = [1, 1, 1]} : vector<2x8x32xf32> to vector<2x8x8xf32>
    "tpu.trace_start"() <{level = 10 : i32, message = "bqd,bkd->bqk"}> : () -> ()
    %cst_103 = arith.constant dense<0.000000e+00> : vector<2x8x8xf32>
    %242 = tpu.matmul %239, %240, %cst_103 {dimension_numbers = #tpu.dot_dimension_numbers<[2], [2], [1], [1], [0, 0, 0, 1, 1, 1], [0], [0]>} : vector<2x8x8xf32>, vector<2x8x8xf32>, vector<2x8x8xf32> -> vector<2x8x8xf32>
    "tpu.trace_stop"() : () -> ()
    %cst_104 = arith.constant 0.353553385 : f32
    %243 = vector.broadcast %cst_104 : f32 to vector<2x8x8xf32>
    %244 = arith.mulf %242, %243 : vector<2x8x8xf32>
    %cst_105 = arith.constant -1.000000e+30 : f32
    %245 = vector.broadcast %cst_105 : f32 to vector<2x8x8xf32>
    %246 = arith.select %3, %244, %245 : vector<2x8x8xi1>, vector<2x8x8xf32>
    %cst_106 = arith.constant dense<0xFF800000> : vector<2x8xf32>
    %247 = vector.multi_reduction <maximumf>, %246, %cst_106 [2] : vector<2x8x8xf32> to vector<2x8xf32>
    %248 = vector.shape_cast %247 : vector<2x8xf32> to vector<2x8x1xf32>
    %249 = vector.broadcast %248 : vector<2x8x1xf32> to vector<2x8x8xf32>
    %250 = arith.subf %246, %249 : vector<2x8x8xf32>
    %251 = math.exp %250 : vector<2x8x8xf32>
    %cst_107 = arith.constant dense<0.000000e+00> : vector<2x8xf32>
    %252 = vector.multi_reduction <add>, %251, %cst_107 [2] : vector<2x8x8xf32> to vector<2x8xf32>
    %253 = vector.shape_cast %252 : vector<2x8xf32> to vector<2x8x1xf32>
    %254 = tpu.reciprocal %253 {approx = true} : vector<2x8x1xf32> -> vector<2x8x1xf32>
    %255 = vector.broadcast %254 : vector<2x8x1xf32> to vector<2x8x8xf32>
    %256 = arith.mulf %251, %255 : vector<2x8x8xf32>
    "tpu.trace_start"() <{level = 10 : i32, message = "bqk,bkd->bqd"}> : () -> ()
    %cst_108 = arith.constant dense<0.000000e+00> : vector<2x8x8xf32>
    %257 = tpu.matmul %256, %241, %cst_108 {dimension_numbers = #tpu.dot_dimension_numbers<[2], [1], [1], [2], [0, 0, 0, 1, 1, 2], [0], [0]>} : vector<2x8x8xf32>, vector<2x8x8xf32>, vector<2x8x8xf32> -> vector<2x8x8xf32>
    "tpu.trace_stop"() : () -> ()
    %258 = vector.shape_cast %257 : vector<2x8x8xf32> to vector<16x8xf32>
    %259 = vector.extract_strided_slice %237 {offsets = [0, 0], sizes = [8, 32], strides = [1, 1]} : vector<32x32xf32> to vector<8x32xf32>
    %cst_109 = arith.constant dense<0.000000e+00> : vector<16x32xf32>
    %260 = tpu.matmul %258, %259, %cst_109 {dimension_numbers = #tpu.dot_dimension_numbers<[1], [0], [0], [1], [0, 0, 1, 1], [], []>} : vector<16x8xf32>, vector<8x32xf32>, vector<16x32xf32> -> vector<16x32xf32>
    %261 = arith.addf %238, %260 : vector<16x32xf32>
    %262 = vector.extract_strided_slice %231 {offsets = [0, 0, 8], sizes = [2, 8, 8], strides = [1, 1, 1]} : vector<2x8x32xf32> to vector<2x8x8xf32>
    %263 = vector.extract_strided_slice %233 {offsets = [0, 0, 8], sizes = [2, 8, 8], strides = [1, 1, 1]} : vector<2x8x32xf32> to vector<2x8x8xf32>
    %264 = vector.extract_strided_slice %235 {offsets = [0, 0, 8], sizes = [2, 8, 8], strides = [1, 1, 1]} : vector<2x8x32xf32> to vector<2x8x8xf32>
    "tpu.trace_start"() <{level = 10 : i32, message = "bqd,bkd->bqk"}> : () -> ()
    %cst_110 = arith.constant dense<0.000000e+00> : vector<2x8x8xf32>
    %265 = tpu.matmul %262, %263, %cst_110 {dimension_numbers = #tpu.dot_dimension_numbers<[2], [2], [1], [1], [0, 0, 0, 1, 1, 1], [0], [0]>} : vector<2x8x8xf32>, vector<2x8x8xf32>, vector<2x8x8xf32> -> vector<2x8x8xf32>
    "tpu.trace_stop"() : () -> ()
    %cst_111 = arith.constant 0.353553385 : f32
    %266 = vector.broadcast %cst_111 : f32 to vector<2x8x8xf32>
    %267 = arith.mulf %265, %266 : vector<2x8x8xf32>
    %cst_112 = arith.constant -1.000000e+30 : f32
    %268 = vector.broadcast %cst_112 : f32 to vector<2x8x8xf32>
    %269 = arith.select %3, %267, %268 : vector<2x8x8xi1>, vector<2x8x8xf32>
    %cst_113 = arith.constant dense<0xFF800000> : vector<2x8xf32>
    %270 = vector.multi_reduction <maximumf>, %269, %cst_113 [2] : vector<2x8x8xf32> to vector<2x8xf32>
    %271 = vector.shape_cast %270 : vector<2x8xf32> to vector<2x8x1xf32>
    %272 = vector.broadcast %271 : vector<2x8x1xf32> to vector<2x8x8xf32>
    %273 = arith.subf %269, %272 : vector<2x8x8xf32>
    %274 = math.exp %273 : vector<2x8x8xf32>
    %cst_114 = arith.constant dense<0.000000e+00> : vector<2x8xf32>
    %275 = vector.multi_reduction <add>, %274, %cst_114 [2] : vector<2x8x8xf32> to vector<2x8xf32>
    %276 = vector.shape_cast %275 : vector<2x8xf32> to vector<2x8x1xf32>
    %277 = tpu.reciprocal %276 {approx = true} : vector<2x8x1xf32> -> vector<2x8x1xf32>
    %278 = vector.broadcast %277 : vector<2x8x1xf32> to vector<2x8x8xf32>
    %279 = arith.mulf %274, %278 : vector<2x8x8xf32>
    "tpu.trace_start"() <{level = 10 : i32, message = "bqk,bkd->bqd"}> : () -> ()
    %cst_115 = arith.constant dense<0.000000e+00> : vector<2x8x8xf32>
    %280 = tpu.matmul %279, %264, %cst_115 {dimension_numbers = #tpu.dot_dimension_numbers<[2], [1], [1], [2], [0, 0, 0, 1, 1, 2], [0], [0]>} : vector<2x8x8xf32>, vector<2x8x8xf32>, vector<2x8x8xf32> -> vector<2x8x8xf32>
    "tpu.trace_stop"() : () -> ()
    %281 = vector.shape_cast %280 : vector<2x8x8xf32> to vector<16x8xf32>
    %282 = vector.extract_strided_slice %237 {offsets = [8, 0], sizes = [8, 32], strides = [1, 1]} : vector<32x32xf32> to vector<8x32xf32>
    %cst_116 = arith.constant dense<0.000000e+00> : vector<16x32xf32>
    %283 = tpu.matmul %281, %282, %cst_116 {dimension_numbers = #tpu.dot_dimension_numbers<[1], [0], [0], [1], [0, 0, 1, 1], [], []>} : vector<16x8xf32>, vector<8x32xf32>, vector<16x32xf32> -> vector<16x32xf32>
    %284 = arith.addf %261, %283 : vector<16x32xf32>
    %285 = vector.extract_strided_slice %231 {offsets = [0, 0, 16], sizes = [2, 8, 8], strides = [1, 1, 1]} : vector<2x8x32xf32> to vector<2x8x8xf32>
    %286 = vector.extract_strided_slice %233 {offsets = [0, 0, 16], sizes = [2, 8, 8], strides = [1, 1, 1]} : vector<2x8x32xf32> to vector<2x8x8xf32>
    %287 = vector.extract_strided_slice %235 {offsets = [0, 0, 16], sizes = [2, 8, 8], strides = [1, 1, 1]} : vector<2x8x32xf32> to vector<2x8x8xf32>
    "tpu.trace_start"() <{level = 10 : i32, message = "bqd,bkd->bqk"}> : () -> ()
    %cst_117 = arith.constant dense<0.000000e+00> : vector<2x8x8xf32>
    %288 = tpu.matmul %285, %286, %cst_117 {dimension_numbers = #tpu.dot_dimension_numbers<[2], [2], [1], [1], [0, 0, 0, 1, 1, 1], [0], [0]>} : vector<2x8x8xf32>, vector<2x8x8xf32>, vector<2x8x8xf32> -> vector<2x8x8xf32>
    "tpu.trace_stop"() : () -> ()
    %cst_118 = arith.constant 0.353553385 : f32
    %289 = vector.broadcast %cst_118 : f32 to vector<2x8x8xf32>
    %290 = arith.mulf %288, %289 : vector<2x8x8xf32>
    %cst_119 = arith.constant -1.000000e+30 : f32
    %291 = vector.broadcast %cst_119 : f32 to vector<2x8x8xf32>
    %292 = arith.select %3, %290, %291 : vector<2x8x8xi1>, vector<2x8x8xf32>
    %cst_120 = arith.constant dense<0xFF800000> : vector<2x8xf32>
    %293 = vector.multi_reduction <maximumf>, %292, %cst_120 [2] : vector<2x8x8xf32> to vector<2x8xf32>
    %294 = vector.shape_cast %293 : vector<2x8xf32> to vector<2x8x1xf32>
    %295 = vector.broadcast %294 : vector<2x8x1xf32> to vector<2x8x8xf32>
    %296 = arith.subf %292, %295 : vector<2x8x8xf32>
    %297 = math.exp %296 : vector<2x8x8xf32>
    %cst_121 = arith.constant dense<0.000000e+00> : vector<2x8xf32>
    %298 = vector.multi_reduction <add>, %297, %cst_121 [2] : vector<2x8x8xf32> to vector<2x8xf32>
    %299 = vector.shape_cast %298 : vector<2x8xf32> to vector<2x8x1xf32>
    %300 = tpu.reciprocal %299 {approx = true} : vector<2x8x1xf32> -> vector<2x8x1xf32>
    %301 = vector.broadcast %300 : vector<2x8x1xf32> to vector<2x8x8xf32>
    %302 = arith.mulf %297, %301 : vector<2x8x8xf32>
    "tpu.trace_start"() <{level = 10 : i32, message = "bqk,bkd->bqd"}> : () -> ()
    %cst_122 = arith.constant dense<0.000000e+00> : vector<2x8x8xf32>
    %303 = tpu.matmul %302, %287, %cst_122 {dimension_numbers = #tpu.dot_dimension_numbers<[2], [1], [1], [2], [0, 0, 0, 1, 1, 2], [0], [0]>} : vector<2x8x8xf32>, vector<2x8x8xf32>, vector<2x8x8xf32> -> vector<2x8x8xf32>
    "tpu.trace_stop"() : () -> ()
    %304 = vector.shape_cast %303 : vector<2x8x8xf32> to vector<16x8xf32>
    %305 = vector.extract_strided_slice %237 {offsets = [16, 0], sizes = [8, 32], strides = [1, 1]} : vector<32x32xf32> to vector<8x32xf32>
    %cst_123 = arith.constant dense<0.000000e+00> : vector<16x32xf32>
    %306 = tpu.matmul %304, %305, %cst_123 {dimension_numbers = #tpu.dot_dimension_numbers<[1], [0], [0], [1], [0, 0, 1, 1], [], []>} : vector<16x8xf32>, vector<8x32xf32>, vector<16x32xf32> -> vector<16x32xf32>
    %307 = arith.addf %284, %306 : vector<16x32xf32>
    %308 = vector.extract_strided_slice %231 {offsets = [0, 0, 24], sizes = [2, 8, 8], strides = [1, 1, 1]} : vector<2x8x32xf32> to vector<2x8x8xf32>
    %309 = vector.extract_strided_slice %233 {offsets = [0, 0, 24], sizes = [2, 8, 8], strides = [1, 1, 1]} : vector<2x8x32xf32> to vector<2x8x8xf32>
    %310 = vector.extract_strided_slice %235 {offsets = [0, 0, 24], sizes = [2, 8, 8], strides = [1, 1, 1]} : vector<2x8x32xf32> to vector<2x8x8xf32>
    "tpu.trace_start"() <{level = 10 : i32, message = "bqd,bkd->bqk"}> : () -> ()
    %cst_124 = arith.constant dense<0.000000e+00> : vector<2x8x8xf32>
    %311 = tpu.matmul %308, %309, %cst_124 {dimension_numbers = #tpu.dot_dimension_numbers<[2], [2], [1], [1], [0, 0, 0, 1, 1, 1], [0], [0]>} : vector<2x8x8xf32>, vector<2x8x8xf32>, vector<2x8x8xf32> -> vector<2x8x8xf32>
    "tpu.trace_stop"() : () -> ()
    %cst_125 = arith.constant 0.353553385 : f32
    %312 = vector.broadcast %cst_125 : f32 to vector<2x8x8xf32>
    %313 = arith.mulf %311, %312 : vector<2x8x8xf32>
    %cst_126 = arith.constant -1.000000e+30 : f32
    %314 = vector.broadcast %cst_126 : f32 to vector<2x8x8xf32>
    %315 = arith.select %3, %313, %314 : vector<2x8x8xi1>, vector<2x8x8xf32>
    %cst_127 = arith.constant dense<0xFF800000> : vector<2x8xf32>
    %316 = vector.multi_reduction <maximumf>, %315, %cst_127 [2] : vector<2x8x8xf32> to vector<2x8xf32>
    %317 = vector.shape_cast %316 : vector<2x8xf32> to vector<2x8x1xf32>
    %318 = vector.broadcast %317 : vector<2x8x1xf32> to vector<2x8x8xf32>
    %319 = arith.subf %315, %318 : vector<2x8x8xf32>
    %320 = math.exp %319 : vector<2x8x8xf32>
    %cst_128 = arith.constant dense<0.000000e+00> : vector<2x8xf32>
    %321 = vector.multi_reduction <add>, %320, %cst_128 [2] : vector<2x8x8xf32> to vector<2x8xf32>
    %322 = vector.shape_cast %321 : vector<2x8xf32> to vector<2x8x1xf32>
    %323 = tpu.reciprocal %322 {approx = true} : vector<2x8x1xf32> -> vector<2x8x1xf32>
    %324 = vector.broadcast %323 : vector<2x8x1xf32> to vector<2x8x8xf32>
    %325 = arith.mulf %320, %324 : vector<2x8x8xf32>
    "tpu.trace_start"() <{level = 10 : i32, message = "bqk,bkd->bqd"}> : () -> ()
    %cst_129 = arith.constant dense<0.000000e+00> : vector<2x8x8xf32>
    %326 = tpu.matmul %325, %310, %cst_129 {dimension_numbers = #tpu.dot_dimension_numbers<[2], [1], [1], [2], [0, 0, 0, 1, 1, 2], [0], [0]>} : vector<2x8x8xf32>, vector<2x8x8xf32>, vector<2x8x8xf32> -> vector<2x8x8xf32>
    "tpu.trace_stop"() : () -> ()
    %327 = vector.shape_cast %326 : vector<2x8x8xf32> to vector<16x8xf32>
    %328 = vector.extract_strided_slice %237 {offsets = [24, 0], sizes = [8, 32], strides = [1, 1]} : vector<32x32xf32> to vector<8x32xf32>
    %cst_130 = arith.constant dense<0.000000e+00> : vector<16x32xf32>
    %329 = tpu.matmul %327, %328, %cst_130 {dimension_numbers = #tpu.dot_dimension_numbers<[1], [0], [0], [1], [0, 0, 1, 1], [], []>} : vector<16x8xf32>, vector<8x32xf32>, vector<16x32xf32> -> vector<16x32xf32>
    %330 = arith.addf %307, %329 : vector<16x32xf32>
    %331 = arith.addf %196, %330 : vector<16x32xf32>
    %c1_131 = arith.constant 1 : index
    %c0_132 = arith.constant 0 : index
    %c0_133 = arith.constant 0 : index
    %332 = vector.load %arg6[%c1_131, %c0_132, %c0_133] : memref<2x1x32xf32, #tpu.memory_space<vmem>>, vector<1x1x32xf32>
    %333 = vector.shape_cast %332 : vector<1x1x32xf32> to vector<1x32xf32>
    %334 = vector.broadcast %333 : vector<1x32xf32> to vector<16x32xf32>
    %335 = arith.addf %331, %334 : vector<16x32xf32>
    %c1_134 = arith.constant 1 : index
    %c0_135 = arith.constant 0 : index
    %c0_136 = arith.constant 0 : index
    %336 = vector.load %arg7[%c1_134, %c0_135, %c0_136] : memref<2x1x32xf32, #tpu.memory_space<vmem>>, vector<1x1x32xf32>
    %337 = vector.shape_cast %336 : vector<1x1x32xf32> to vector<1x32xf32>
    %c1_137 = arith.constant 1 : index
    %c0_138 = arith.constant 0 : index
    %c0_139 = arith.constant 0 : index
    %338 = vector.load %arg8[%c1_137, %c0_138, %c0_139] : memref<2x1x32xf32, #tpu.memory_space<vmem>>, vector<1x1x32xf32>
    %339 = vector.shape_cast %338 : vector<1x1x32xf32> to vector<1x32xf32>
    %cst_140 = arith.constant dense<0.000000e+00> : vector<16xf32>
    %340 = vector.multi_reduction <add>, %335, %cst_140 [1] : vector<16x32xf32> to vector<16xf32>
    %341 = vector.shape_cast %340 : vector<16xf32> to vector<16x1xf32>
    %cst_141 = arith.constant 3.200000e+01 : f32
    %342 = vector.broadcast %cst_141 : f32 to vector<16x1xf32>
    %343 = arith.divf %341, %342 : vector<16x1xf32>
    %344 = vector.broadcast %343 : vector<16x1xf32> to vector<16x32xf32>
    %345 = arith.subf %335, %344 : vector<16x32xf32>
    %346 = arith.mulf %345, %345 : vector<16x32xf32>
    %cst_142 = arith.constant dense<0.000000e+00> : vector<16xf32>
    %347 = vector.multi_reduction <add>, %346, %cst_142 [1] : vector<16x32xf32> to vector<16xf32>
    %348 = vector.shape_cast %347 : vector<16xf32> to vector<16x1xf32>
    %cst_143 = arith.constant 3.200000e+01 : f32
    %349 = vector.broadcast %cst_143 : f32 to vector<16x1xf32>
    %350 = arith.divf %348, %349 : vector<16x1xf32>
    %351 = vector.broadcast %343 : vector<16x1xf32> to vector<16x32xf32>
    %352 = arith.subf %335, %351 : vector<16x32xf32>
    %cst_144 = arith.constant 9.99999974E-6 : f32
    %353 = vector.broadcast %cst_144 : f32 to vector<16x1xf32>
    %354 = arith.addf %350, %353 : vector<16x1xf32>
    %355 = math.rsqrt %354 : vector<16x1xf32>
    %356 = vector.broadcast %355 : vector<16x1xf32> to vector<16x32xf32>
    %357 = arith.mulf %352, %356 : vector<16x32xf32>
    %358 = vector.broadcast %337 : vector<1x32xf32> to vector<16x32xf32>
    %359 = arith.mulf %357, %358 : vector<16x32xf32>
    %360 = vector.broadcast %339 : vector<1x32xf32> to vector<16x32xf32>
    %361 = arith.addf %359, %360 : vector<16x32xf32>
    %c1_145 = arith.constant 1 : index
    %c0_146 = arith.constant 0 : index
    %c0_147 = arith.constant 0 : index
    %362 = vector.load %arg9[%c1_145, %c0_146, %c0_147] : memref<2x32x128xf32, #tpu.memory_space<vmem>>, vector<1x32x128xf32>
    %363 = vector.shape_cast %362 : vector<1x32x128xf32> to vector<32x128xf32>
    %cst_148 = arith.constant dense<0.000000e+00> : vector<16x128xf32>
    %364 = tpu.matmul %361, %363, %cst_148 {dimension_numbers = #tpu.dot_dimension_numbers<[1], [0], [0], [1], [0, 0, 1, 1], [], []>} : vector<16x32xf32>, vector<32x128xf32>, vector<16x128xf32> -> vector<16x128xf32>
    %c1_149 = arith.constant 1 : index
    %c0_150 = arith.constant 0 : index
    %c0_151 = arith.constant 0 : index
    %365 = vector.load %arg10[%c1_149, %c0_150, %c0_151] : memref<2x1x128xf32, #tpu.memory_space<vmem>>, vector<1x1x128xf32>
    %366 = vector.shape_cast %365 : vector<1x1x128xf32> to vector<1x128xf32>
    %367 = vector.broadcast %366 : vector<1x128xf32> to vector<16x128xf32>
    %368 = arith.addf %364, %367 : vector<16x128xf32>
    %cst_152 = arith.constant 5.000000e-01 : f32
    %369 = vector.broadcast %cst_152 : f32 to vector<16x128xf32>
    %370 = arith.mulf %369, %368 : vector<16x128xf32>
    %371 = arith.mulf %368, %368 : vector<16x128xf32>
    %372 = arith.mulf %368, %371 : vector<16x128xf32>
    %cst_153 = arith.constant 4.471500e-02 : f32
    %373 = vector.broadcast %cst_153 : f32 to vector<16x128xf32>
    %374 = arith.mulf %373, %372 : vector<16x128xf32>
    %375 = arith.addf %368, %374 : vector<16x128xf32>
    %cst_154 = arith.constant 0.797884583 : f32
    %376 = vector.broadcast %cst_154 : f32 to vector<16x128xf32>
    %377 = arith.mulf %376, %375 : vector<16x128xf32>
    %378 = math.tanh %377 : vector<16x128xf32>
    %cst_155 = arith.constant 1.000000e+00 : f32
    %379 = vector.broadcast %cst_155 : f32 to vector<16x128xf32>
    %380 = arith.addf %379, %378 : vector<16x128xf32>
    %381 = arith.mulf %370, %380 : vector<16x128xf32>
    %c1_156 = arith.constant 1 : index
    %c0_157 = arith.constant 0 : index
    %c0_158 = arith.constant 0 : index
    %382 = vector.load %arg11[%c1_156, %c0_157, %c0_158] : memref<2x128x32xf32, #tpu.memory_space<vmem>>, vector<1x128x32xf32>
    %383 = vector.shape_cast %382 : vector<1x128x32xf32> to vector<128x32xf32>
    %cst_159 = arith.constant dense<0.000000e+00> : vector<16x32xf32>
    %384 = tpu.matmul %381, %383, %cst_159 {dimension_numbers = #tpu.dot_dimension_numbers<[1], [0], [0], [1], [0, 0, 1, 1], [], []>} : vector<16x128xf32>, vector<128x32xf32>, vector<16x32xf32> -> vector<16x32xf32>
    %385 = arith.addf %335, %384 : vector<16x32xf32>
    %c1_160 = arith.constant 1 : index
    %c0_161 = arith.constant 0 : index
    %c0_162 = arith.constant 0 : index
    %386 = vector.load %arg12[%c1_160, %c0_161, %c0_162] : memref<2x1x32xf32, #tpu.memory_space<vmem>>, vector<1x1x32xf32>
    %387 = vector.shape_cast %386 : vector<1x1x32xf32> to vector<1x32xf32>
    %388 = vector.broadcast %387 : vector<1x32xf32> to vector<16x32xf32>
    %389 = arith.addf %385, %388 : vector<16x32xf32>
    %c0_163 = arith.constant 0 : index
    %c0_164 = arith.constant 0 : index
    %390 = vector.load %arg13[%c0_163, %c0_164] : memref<1x32xf32, #tpu.memory_space<vmem>>, vector<1x32xf32>
    %c0_165 = arith.constant 0 : index
    %c0_166 = arith.constant 0 : index
    %391 = vector.load %arg14[%c0_165, %c0_166] : memref<1x32xf32, #tpu.memory_space<vmem>>, vector<1x32xf32>
    %cst_167 = arith.constant dense<0.000000e+00> : vector<16xf32>
    %392 = vector.multi_reduction <add>, %389, %cst_167 [1] : vector<16x32xf32> to vector<16xf32>
    %393 = vector.shape_cast %392 : vector<16xf32> to vector<16x1xf32>
    %cst_168 = arith.constant 3.200000e+01 : f32
    %394 = vector.broadcast %cst_168 : f32 to vector<16x1xf32>
    %395 = arith.divf %393, %394 : vector<16x1xf32>
    %396 = vector.broadcast %395 : vector<16x1xf32> to vector<16x32xf32>
    %397 = arith.subf %389, %396 : vector<16x32xf32>
    %398 = arith.mulf %397, %397 : vector<16x32xf32>
    %cst_169 = arith.constant dense<0.000000e+00> : vector<16xf32>
    %399 = vector.multi_reduction <add>, %398, %cst_169 [1] : vector<16x32xf32> to vector<16xf32>
    %400 = vector.shape_cast %399 : vector<16xf32> to vector<16x1xf32>
    %cst_170 = arith.constant 3.200000e+01 : f32
    %401 = vector.broadcast %cst_170 : f32 to vector<16x1xf32>
    %402 = arith.divf %400, %401 : vector<16x1xf32>
    %403 = vector.broadcast %395 : vector<16x1xf32> to vector<16x32xf32>
    %404 = arith.subf %389, %403 : vector<16x32xf32>
    %cst_171 = arith.constant 9.99999974E-6 : f32
    %405 = vector.broadcast %cst_171 : f32 to vector<16x1xf32>
    %406 = arith.addf %402, %405 : vector<16x1xf32>
    %407 = math.rsqrt %406 : vector<16x1xf32>
    %408 = vector.broadcast %407 : vector<16x1xf32> to vector<16x32xf32>
    %409 = arith.mulf %404, %408 : vector<16x32xf32>
    %410 = vector.broadcast %390 : vector<1x32xf32> to vector<16x32xf32>
    %411 = arith.mulf %409, %410 : vector<16x32xf32>
    %412 = vector.broadcast %391 : vector<1x32xf32> to vector<16x32xf32>
    %413 = arith.addf %411, %412 : vector<16x32xf32>
    %c0_172 = arith.constant 0 : index
    %c0_173 = arith.constant 0 : index
    %414 = vector.load %arg15[%c0_172, %c0_173] : memref<32x128xf32, #tpu.memory_space<vmem>>, vector<32x128xf32>
    %cst_174 = arith.constant dense<0.000000e+00> : vector<16x128xf32>
    %415 = tpu.matmul %413, %414, %cst_174 {dimension_numbers = #tpu.dot_dimension_numbers<[1], [0], [0], [1], [0, 0, 1, 1], [], []>} : vector<16x32xf32>, vector<32x128xf32>, vector<16x128xf32> -> vector<16x128xf32>
    %c0_175 = arith.constant 0 : index
    %c0_176 = arith.constant 0 : index
    %416 = vector.load %arg16[%c0_175, %c0_176] : memref<16x128xf32, #tpu.memory_space<vmem>>, vector<16x128xf32>
    tpu.vector_store %arg16[%c0_175, %c0_176], %415 {strides = array<i32>} : memref<16x128xf32, #tpu.memory_space<vmem>>, vector<16x128xf32>,
    return
  }
}

</mosaic_0001>

<llo_original>
// kernel: tpu_custom_call.1
$region0: #{tpu_custom_call.1}
  #allocation0 [shape = 'u32[]', space=smem, size = 0x4, offset = 0x4, fixed_abs, tag = 'smem constant byte address 0x4 - core index']
  #allocation1 [shape = 'u32[144,128]{1,0:T(1,128)}', space=vmem, size = 0x12000, scoped, tag = 'internal scratch']
  %s0 = inlined_call_operand.vmem [shape: f32[16,32], index: 0, kind: input, shape index: {}]
  %s1 = inlined_call_operand.vmem [shape: f32[2,1,32], index: 1, kind: input, shape index: {}]
  %s2 = inlined_call_operand.vmem [shape: f32[2,1,32], index: 2, kind: input, shape index: {}]
  %s3 = inlined_call_operand.vmem [shape: f32[2,32,96], index: 3, kind: input, shape index: {}]
  %s4 = inlined_call_operand.vmem [shape: f32[2,1,96], index: 4, kind: input, shape index: {}]
  %s5 = inlined_call_operand.vmem [shape: f32[2,32,32], index: 5, kind: input, shape index: {}]
  %s6 = inlined_call_operand.vmem [shape: f32[2,1,32], index: 6, kind: input, shape index: {}]
  %s7 = inlined_call_operand.vmem [shape: f32[2,1,32], index: 7, kind: input, shape index: {}]
  %s8 = inlined_call_operand.vmem [shape: f32[2,1,32], index: 8, kind: input, shape index: {}]
  %s9 = inlined_call_operand.vmem [shape: f32[2,32,128], index: 9, kind: input, shape index: {}]
  %s10 = inlined_call_operand.vmem [shape: f32[2,1,128], index: 10, kind: input, shape index: {}]
  %s11 = inlined_call_operand.vmem [shape: f32[2,128,32], index: 11, kind: input, shape index: {}]
  %s12 = inlined_call_operand.vmem [shape: f32[2,1,32], index: 12, kind: input, shape index: {}]
  %s13 = inlined_call_operand.vmem [shape: f32[1,32], index: 13, kind: input, shape index: {}]
  %s14 = inlined_call_operand.vmem [shape: f32[1,32], index: 14, kind: input, shape index: {}]
  %s15 = inlined_call_operand.vmem [shape: f32[32,128], index: 15, kind: input, shape index: {}]
  %s16 = inlined_call_operand.hbm [shape: f32[16,128], index: 16, kind: output, shape index: {}]
  %s17 = sld [smem:[#allocation0]]
  $region74: #{tpu_custom_call.1} parent=0
    _
  %s19 = ssub.s32 1, %s17
  %s20 = scalar_select 0, %s19, %s17
  $region1: #{tpu_custom_call.1} parent=0
    #allocation2 [shape = 'u8[8192]{0}', space=vmem, size = 0x2000, scoped, tag = 'output window, operand 0, single buffered']
    #allocation3 [shape = 's32[1]{0}', space=sflag, size = 0x4, scoped, tag = 'scoped memory for tpu_custom_call.1']
    %21 = vsyncpa [#allocation3], 0
    // Predicated region
    $region2: #{tpu_custom_call.1} parent=1 // pred_check
      _
    $region3: #{tpu_custom_call.1} parent=1 // pred_check_branch
      %23 = sbr.rel (0) target = $region5
    $region4: #{tpu_custom_call.1} parent=1 // pred_region
      _
    $region5: #{tpu_custom_call.1} parent=1 // pred_fallthru
      _
    // Predicated region
    $region6: #{tpu_custom_call.1} parent=1 // pred_check
      _
    $region7: #{tpu_custom_call.1} parent=1 // pred_check_branch
      %25 = sbr.rel (0) target = $region9
    $region8: #{tpu_custom_call.1} parent=1 // pred_region
      _
    $region9: #{tpu_custom_call.1} parent=1 // pred_fallthru
      _
    // Predicated region
    $region10: #{tpu_custom_call.1} parent=1 // pred_check
      _
    $region11: #{tpu_custom_call.1} parent=1 // pred_check_branch
      %27 = sbr.rel (0) target = $region13
    $region12: #{tpu_custom_call.1} parent=1 // pred_region
      _
    $region13: #{tpu_custom_call.1} parent=1 // pred_fallthru
      _
    // Predicated region
    $region14: #{tpu_custom_call.1} parent=1 // pred_check
      _
    $region15: #{tpu_custom_call.1} parent=1 // pred_check_branch
      %29 = sbr.rel (0) target = $region17
    $region16: #{tpu_custom_call.1} parent=1 // pred_region
      _
    $region17: #{tpu_custom_call.1} parent=1 // pred_fallthru
      _
    // Predicated region
    $region18: #{tpu_custom_call.1} parent=1 // pred_check
      _
    $region19: #{tpu_custom_call.1} parent=1 // pred_check_branch
      %31 = sbr.rel (0) target = $region21
    $region20: #{tpu_custom_call.1} parent=1 // pred_region
      _
    $region21: #{tpu_custom_call.1} parent=1 // pred_fallthru
      _
    // Predicated region
    $region22: #{tpu_custom_call.1} parent=1 // pred_check
      _
    $region23: #{tpu_custom_call.1} parent=1 // pred_check_branch
      %33 = sbr.rel (0) target = $region25
    $region24: #{tpu_custom_call.1} parent=1 // pred_region
      _
    $region25: #{tpu_custom_call.1} parent=1 // pred_fallthru
      _
    // Predicated region
    $region26: #{tpu_custom_call.1} parent=1 // pred_check
      _
    $region27: #{tpu_custom_call.1} parent=1 // pred_check_branch
      %35 = sbr.rel (0) target = $region29
    $region28: #{tpu_custom_call.1} parent=1 // pred_region
      _
    $region29: #{tpu_custom_call.1} parent=1 // pred_fallthru
      _
    // Predicated region
    $region30: #{tpu_custom_call.1} parent=1 // pred_check
      _
    $region31: #{tpu_custom_call.1} parent=1 // pred_check_branch
      %37 = sbr.rel (0) target = $region33
    $region32: #{tpu_custom_call.1} parent=1 // pred_region
      _
    $region33: #{tpu_custom_call.1} parent=1 // pred_fallthru
      _
    // Predicated region
    $region34: #{tpu_custom_call.1} parent=1 // pred_check
      _
    $region35: #{tpu_custom_call.1} parent=1 // pred_check_branch
      %39 = sbr.rel (0) target = $region37
    $region36: #{tpu_custom_call.1} parent=1 // pred_region
      _
    $region37: #{tpu_custom_call.1} parent=1 // pred_fallthru
      _
    // Predicated region
    $region38: #{tpu_custom_call.1} parent=1 // pred_check
      _
    $region39: #{tpu_custom_call.1} parent=1 // pred_check_branch
      %41 = sbr.rel (0) target = $region41
    $region40: #{tpu_custom_call.1} parent=1 // pred_region
      _
    $region41: #{tpu_custom_call.1} parent=1 // pred_fallthru
      _
    // Predicated region
    $region42: #{tpu_custom_call.1} parent=1 // pred_check
      _
    $region43: #{tpu_custom_call.1} parent=1 // pred_check_branch
      %43 = sbr.rel (0) target = $region45
    $region44: #{tpu_custom_call.1} parent=1 // pred_region
      _
    $region45: #{tpu_custom_call.1} parent=1 // pred_fallthru
      _
    // Predicated region
    $region46: #{tpu_custom_call.1} parent=1 // pred_check
      _
    $region47: #{tpu_custom_call.1} parent=1 // pred_check_branch
      %45 = sbr.rel (0) target = $region49
    $region48: #{tpu_custom_call.1} parent=1 // pred_region
      _
    $region49: #{tpu_custom_call.1} parent=1 // pred_fallthru
      _
    // Predicated region
    $region50: #{tpu_custom_call.1} parent=1 // pred_check
      _
    $region51: #{tpu_custom_call.1} parent=1 // pred_check_branch
      %47 = sbr.rel (0) target = $region53
    $region52: #{tpu_custom_call.1} parent=1 // pred_region
      _
    $region53: #{tpu_custom_call.1} parent=1 // pred_fallthru
      _
    // Predicated region
    $region54: #{tpu_custom_call.1} parent=1 // pred_check
      _
    $region55: #{tpu_custom_call.1} parent=1 // pred_check_branch
      %49 = sbr.rel (0) target = $region57
    $region56: #{tpu_custom_call.1} parent=1 // pred_region
      _
    $region57: #{tpu_custom_call.1} parent=1 // pred_fallthru
      _
    // Predicated region
    $region58: #{tpu_custom_call.1} parent=1 // pred_check
      _
    $region59: #{tpu_custom_call.1} parent=1 // pred_check_branch
      %51 = sbr.rel (0) target = $region61
    $region60: #{tpu_custom_call.1} parent=1 // pred_region
      _
    $region61: #{tpu_custom_call.1} parent=1 // pred_fallthru
      _
    // Predicated region
    $region62: #{tpu_custom_call.1} parent=1 // pred_check
      _
    $region63: #{tpu_custom_call.1} parent=1 // pred_check_branch
      %53 = sbr.rel (0) target = $region65
    $region64: #{tpu_custom_call.1} parent=1 // pred_region
      _
    $region65: #{tpu_custom_call.1} parent=1 // pred_fallthru
      _
    %v54 = vld [vmem:[%s0] sm:$0xff]
    %v55 = vld [vmem:[%s0 + $0x8] sm:$0xff]
    %v56 = vlaneseq
    %v57 = vshrl.u32 %v56, 7
    %v58 = vlaneseq
    %v59 = vand.u32 %v58, 127
    %vm60 = vcmp.ge.s32.totalorder %v57, %v59
    %v61 = vld [vmem:[%s1] sm:$0x1]
    %v62 = vld [vmem:[%s2] sm:$0x1]
    %vm63 = vcmask 261120
    %v64 = vsel %vm63, %v54, 0.0
    %65 = vadd.xlane.f32.xlu0 %v64
    %v66 = vpop.xlane.xlu0 %65
    %v67 = vsel %vm63, %v55, 0.0
    %68 = vadd.xlane.f32.xlu0 %v67
    %v69 = vpop.xlane.xlu0 %68
    %v70 = vrcp.pop 32.0
    %v71 = vmul.f32 %v66, %v70
    %v72 = vmul.f32 %v69, %v70
    %v73 = vsub.f32 %v54, %v71
    %v74 = vsub.f32 %v55, %v72
    %v75 = vmul.f32 %v73, %v73
    %v76 = vmul.f32 %v74, %v74
    %v77 = vsel %vm63, %v75, 0.0
    %78 = vadd.xlane.f32.xlu0 %v77
    %v79 = vpop.xlane.xlu0 %78
    %v80 = vsel %vm63, %v76, 0.0
    %81 = vadd.xlane.f32.xlu0 %v80
    %v82 = vpop.xlane.xlu0 %81
    %v83 = vmul.f32 %v79, %v70
    %v84 = vmul.f32 %v82, %v70
    %v85 = vadd.f32 %v83, 1e-05
    %v86 = vadd.f32 %v84, 1e-05
    %v87 = vrsqrt.pop %v85
    %v88 = vrsqrt.pop %v86
    %v89 = vmul.f32 %v73, %v87
    %v90 = vmul.f32 %v74, %v88
    %v92 = vlaneseq
    %v93 = vshrl.u32 %v92, 7
    %v94 = vsub.s32 0, %v93
    %v95 = vrot.slane %v61, %v94
    %v97 = vmul.f32 %v89, %v95
    %v98 = vmul.f32 %v90, %v95
    %v100 = vlaneseq
    %v101 = vshrl.u32 %v100, 7
    %v102 = vsub.s32 0, %v101
    %v103 = vrot.slane %v62, %v102
    %v105 = vadd.f32 %v97, %v103
    %v106 = vadd.f32 %v98, %v103
    %v107 = vld [vmem:[%s3] sm:$0xff]
    %v108 = vld [vmem:[%s3 + $0x8] sm:$0xff]
    %v109 = vld [vmem:[%s3 + $0x10] sm:$0xff]
    %v110 = vld [vmem:[%s3 + $0x18] sm:$0xff]
    %v111 = vld [vmem:[%s4] sm:$0x1]
    %v113 = vlaneseq
    %v114 = vshrl.u32 %v113, 7
    %v115 = vsub.s32 0, %v114
    %v116 = vrot.slane %v111, %v115
    %v119 = vsel %vm63, %v105, 0
    %v122 = vsel %vm63, %v106, 0
    %124 = vmatprep.subr.mxu0 0.0
    %125 = vmatpush1.msra.mxu0 %v107
    %126 = vmatprep.subr.mxu0 0.0
    %127 = vmatpush1.msra.mxu0 %v108
    %128 = vmatprep.subr.mxu0 0.0
    %129 = vmatpush1.msra.mxu0 %v109
    %130 = vmatprep.subr.mxu0 0.0
    %131 = vmatpush1.msra.mxu0 %v110
    %132 = vmatprep.subr.mxu0 0.0
    %133 = vmatpush1.msra.mxu0 0.0
    %134 = vmatprep.subr.mxu0 0.0
    %135 = vmatpush1.msra.mxu0 0.0
    %136 = vmatprep.subr.mxu0 0.0
    %137 = vmatpush1.msra.mxu0 0.0
    %138 = vmatprep.subr.mxu0 0.0
    %139 = vmatpush1.msra.mxu0 0.0
    %140 = vmatprep.subr.mxu0 0.0
    %141 = vmatpush1.msra.mxu0 0.0
    %142 = vmatprep.subr.mxu0 0.0
    %143 = vmatpush1.msra.mxu0 0.0
    %144 = vmatprep.subr.mxu0 0.0
    %145 = vmatpush1.msra.mxu0 0.0
    %146 = vmatprep.subr.mxu0 0.0
    %147 = vmatpush1.msra.mxu0 0.0
    %148 = vmatprep.subr.mxu0 0.0
    %149 = vmatpush1.msra.mxu0 0.0
    %150 = vmatprep.subr.mxu0 0.0
    %151 = vmatpush1.msra.mxu0 0.0
    %152 = vmatprep.subr.mxu0 0.0
    %153 = vmatpush1.msra.mxu0 0.0
    %154 = vmatprep.subr.mxu0 0.0
    %155 = vmatpush1.msra.mxu0 0.0
    %156 = vmatprep.subr.mxu0 0.0
    %157 = vmatpush1.msra.mxu0 0.0
    %158 = vmatprep.subr.mxu0 0.0
    %159 = vmatpush1.msra.mxu0 0.0
    %160 = vmatprep.subr.mxu0 0.0
    %161 = vmatpush1.msra.mxu0 0.0
    %162 = vmatprep.subr.mxu0 0.0
    %163 = vmatpush1.msra.mxu0 0.0
    %164 = vmatprep.subr.mxu0 0.0
    %165 = vmatpush1.msra.mxu0 0.0
    %166 = vmatprep.subr.mxu0 0.0
    %167 = vmatpush1.msra.mxu0 0.0
    %168 = vmatprep.subr.mxu0 0.0
    %169 = vmatpush1.msra.mxu0 0.0
    %170 = vmatprep.subr.mxu0 0.0
    %171 = vmatpush1.msra.mxu0 0.0
    %172 = vmatprep.subr.mxu0 0.0
    %173 = vmatpush1.msra.mxu0 0.0
    %174 = vmatprep.subr.mxu0 0.0
    %175 = vmatpush1.msra.mxu0 0.0
    %176 = vmatprep.subr.mxu0 0.0
    %177 = vmatpush1.msra.mxu0 0.0
    %178 = vmatprep.subr.mxu0 0.0
    %179 = vmatpush1.msra.mxu0 0.0
    %180 = vmatprep.subr.mxu0 0.0
    %181 = vmatpush1.msra.mxu0 0.0
    %182 = vmatprep.subr.mxu0 0.0
    %183 = vmatpush1.msra.mxu0 0.0
    %184 = vmatprep.subr.mxu0 0.0
    %185 = vmatpush1.msra.mxu0 0.0
    %186 = vmatprep.subr.mxu0 0.0
    %187 = vmatpush1.msra.mxu0 0.0
    %188 = vmatprep.mubr.f32.mxu0 0.0
    %189 = vmatmul.mubr.f32.gmra.mrb[0].mxu0 %v119
    %v190 = vpop.f32.mrb[0].mxu0
    %v191 = vadd.f32 %v116, %v190
    %v192 = vpop.f32.mrb[0].mxu0
    %193 = vmatprep.mubr.f32.mxu0 0.0
    %194 = vmatmul.mubr.f32.gmra.mrb[0].mxu0 %v122
    %v195 = vpop.f32.mrb[0].mxu0
    %v196 = vadd.f32 %v116, %v195
    %v197 = vpop.f32.mrb[0].mxu0
    %198 = vdwg.mxu0
    %v199 = vld [vmem:[%s5] sm:$0xff]
    %v200 = vld [vmem:[%s5 + $0x8] sm:$0xff]
    %v201 = vld [vmem:[%s5 + $0x10] sm:$0xff]
    %v202 = vld [vmem:[%s5 + $0x18] sm:$0xff]
    %204 = vrot.lane.b32.xlu0 %v191, 96
    %v205 = vpop.permute.xlu0 %204
    %vm206 = vcmask 64512
    %v207 = vsel %vm206, %v191, 0
    %v209 = vsel %vm206, %v205, 0
    %211 = vmatprep.subr.mxu0 0.0
    %212 = vmatpush1.xpose.msra.mxu0 %v209
    %213 = vmatprep.subr.mxu0 0.0
    %214 = vmatpush1.xpose.msra.mxu0 0.0
    %215 = vmatprep.subr.mxu0 0.0
    %216 = vmatpush1.xpose.msra.mxu0 0.0
    %217 = vmatprep.subr.mxu0 0.0
    %218 = vmatpush1.xpose.msra.mxu0 0.0
    %219 = vmatprep.subr.mxu0 0.0
    %220 = vmatpush1.xpose.msra.mxu0 0.0
    %221 = vmatprep.subr.mxu0 0.0
    %222 = vmatpush1.xpose.msra.mxu0 0.0
    %223 = vmatprep.subr.mxu0 0.0
    %224 = vmatpush1.xpose.msra.mxu0 0.0
    %225 = vmatprep.subr.mxu0 0.0
    %226 = vmatpush1.xpose.msra.mxu0 0.0
    %227 = vmatprep.subr.mxu0 0.0
    %228 = vmatpush1.xpose.msra.mxu0 0.0
    %229 = vmatprep.subr.mxu0 0.0
    %230 = vmatpush1.xpose.msra.mxu0 0.0
    %231 = vmatprep.subr.mxu0 0.0
    %232 = vmatpush1.xpose.msra.mxu0 0.0
    %233 = vmatprep.subr.mxu0 0.0
    %234 = vmatpush1.xpose.msra.mxu0 0.0
    %235 = vmatprep.subr.mxu0 0.0
    %236 = vmatpush1.xpose.msra.mxu0 0.0
    %237 = vmatprep.subr.mxu0 0.0
    %238 = vmatpush1.xpose.msra.mxu0 0.0
    %239 = vmatprep.subr.mxu0 0.0
    %240 = vmatpush1.xpose.msra.mxu0 0.0
    %241 = vmatprep.subr.mxu0 0.0
    %242 = vmatpush1.xpose.msra.mxu0 0.0
    %243 = vmatprep.subr.mxu0 0.0
    %244 = vmatpush1.xpose.msra.mxu0 0.0
    %245 = vmatprep.subr.mxu0 0.0
    %246 = vmatpush1.xpose.msra.mxu0 0.0
    %247 = vmatprep.subr.mxu0 0.0
    %248 = vmatpush1.xpose.msra.mxu0 0.0
    %249 = vmatprep.subr.mxu0 0.0
    %250 = vmatpush1.xpose.msra.mxu0 0.0
    %251 = vmatprep.subr.mxu0 0.0
    %252 = vmatpush1.xpose.msra.mxu0 0.0
    %253 = vmatprep.subr.mxu0 0.0
    %254 = vmatpush1.xpose.msra.mxu0 0.0
    %255 = vmatprep.subr.mxu0 0.0
    %256 = vmatpush1.xpose.msra.mxu0 0.0
    %257 = vmatprep.subr.mxu0 0.0
    %258 = vmatpush1.xpose.msra.mxu0 0.0
    %259 = vmatprep.subr.mxu0 0.0
    %260 = vmatpush1.xpose.msra.mxu0 0.0
    %261 = vmatprep.subr.mxu0 0.0
    %262 = vmatpush1.xpose.msra.mxu0 0.0
    %263 = vmatprep.subr.mxu0 0.0
    %264 = vmatpush1.xpose.msra.mxu0 0.0
    %265 = vmatprep.subr.mxu0 0.0
    %266 = vmatpush1.xpose.msra.mxu0 0.0
    %267 = vmatprep.subr.mxu0 0.0
    %268 = vmatpush1.xpose.msra.mxu0 0.0
    %269 = vmatprep.subr.mxu0 0.0
    %270 = vmatpush1.xpose.msra.mxu0 0.0
    %271 = vmatprep.subr.mxu0 0.0
    %272 = vmatpush1.xpose.msra.mxu0 0.0
    %273 = vmatprep.subr.mxu0 0.0
    %274 = vmatpush1.xpose.msra.mxu0 0.0
    %275 = vmatprep.mubr.f32.mxu0 0.0
    %276 = vmatmul.mubr.f32.gmra.mrb[0].mxu0 %v207
    %v277 = vpop.f32.mrb[0].mxu0
    %v278 = vadd.f32 0.0, %v277
    %v279 = vpop.f32.mrb[0].mxu0
    %280 = vdwg.mxu0
    %282 = vrot.lane.b32.xlu0 %v196, 96
    %v283 = vpop.permute.xlu0 %282
    %v284 = vsel %vm206, %v196, 0
    %v286 = vsel %vm206, %v283, 0
    %288 = vmatprep.subr.mxu0 0.0
    %289 = vmatpush1.xpose.msra.mxu0 %v286
    %290 = vmatprep.subr.mxu0 0.0
    %291 = vmatpush1.xpose.msra.mxu0 0.0
    %292 = vmatprep.subr.mxu0 0.0
    %293 = vmatpush1.xpose.msra.mxu0 0.0
    %294 = vmatprep.subr.mxu0 0.0
    %295 = vmatpush1.xpose.msra.mxu0 0.0
    %296 = vmatprep.subr.mxu0 0.0
    %297 = vmatpush1.xpose.msra.mxu0 0.0
    %298 = vmatprep.subr.mxu0 0.0
    %299 = vmatpush1.xpose.msra.mxu0 0.0
    %300 = vmatprep.subr.mxu0 0.0
    %301 = vmatpush1.xpose.msra.mxu0 0.0
    %302 = vmatprep.subr.mxu0 0.0
    %303 = vmatpush1.xpose.msra.mxu0 0.0
    %304 = vmatprep.subr.mxu0 0.0
    %305 = vmatpush1.xpose.msra.mxu0 0.0
    %306 = vmatprep.subr.mxu0 0.0
    %307 = vmatpush1.xpose.msra.mxu0 0.0
    %308 = vmatprep.subr.mxu0 0.0
    %309 = vmatpush1.xpose.msra.mxu0 0.0
    %310 = vmatprep.subr.mxu0 0.0
    %311 = vmatpush1.xpose.msra.mxu0 0.0
    %312 = vmatprep.subr.mxu0 0.0
    %313 = vmatpush1.xpose.msra.mxu0 0.0
    %314 = vmatprep.subr.mxu0 0.0
    %315 = vmatpush1.xpose.msra.mxu0 0.0
    %316 = vmatprep.subr.mxu0 0.0
    %317 = vmatpush1.xpose.msra.mxu0 0.0
    %318 = vmatprep.subr.mxu0 0.0
    %319 = vmatpush1.xpose.msra.mxu0 0.0
    %320 = vmatprep.subr.mxu0 0.0
    %321 = vmatpush1.xpose.msra.mxu0 0.0
    %322 = vmatprep.subr.mxu0 0.0
    %323 = vmatpush1.xpose.msra.mxu0 0.0
    %324 = vmatprep.subr.mxu0 0.0
    %325 = vmatpush1.xpose.msra.mxu0 0.0
    %326 = vmatprep.subr.mxu0 0.0
    %327 = vmatpush1.xpose.msra.mxu0 0.0
    %328 = vmatprep.subr.mxu0 0.0
    %329 = vmatpush1.xpose.msra.mxu0 0.0
    %330 = vmatprep.subr.mxu0 0.0
    %331 = vmatpush1.xpose.msra.mxu0 0.0
    %332 = vmatprep.subr.mxu0 0.0
    %333 = vmatpush1.xpose.msra.mxu0 0.0
    %334 = vmatprep.subr.mxu0 0.0
    %335 = vmatpush1.xpose.msra.mxu0 0.0
    %336 = vmatprep.subr.mxu0 0.0
    %337 = vmatpush1.xpose.msra.mxu0 0.0
    %338 = vmatprep.subr.mxu0 0.0
    %339 = vmatpush1.xpose.msra.mxu0 0.0
    %340 = vmatprep.subr.mxu0 0.0
    %341 = vmatpush1.xpose.msra.mxu0 0.0
    %342 = vmatprep.subr.mxu0 0.0
    %343 = vmatpush1.xpose.msra.mxu0 0.0
    %344 = vmatprep.subr.mxu0 0.0
    %345 = vmatpush1.xpose.msra.mxu0 0.0
    %346 = vmatprep.subr.mxu0 0.0
    %347 = vmatpush1.xpose.msra.mxu0 0.0
    %348 = vmatprep.subr.mxu0 0.0
    %349 = vmatpush1.xpose.msra.mxu0 0.0
    %350 = vmatprep.subr.mxu0 0.0
    %351 = vmatpush1.xpose.msra.mxu0 0.0
    %352 = vmatprep.mubr.f32.mxu0 0.0
    %353 = vmatmul.mubr.f32.gmra.mrb[0].mxu0 %v284
    %v354 = vpop.f32.mrb[0].mxu0
    %v355 = vadd.f32 0.0, %v354
    %v356 = vpop.f32.mrb[0].mxu0
    %357 = vdwg.mxu0
    %v358 = vmul.f32 %v278, 0.35355338
    %v359 = vmul.f32 %v355, 0.35355338
    %v360 = vsel %vm60, %v358, -1e+30
    %v361 = vsel %vm60, %v359, -1e+30
    %v362 = vsel %vm206, %v360, -inf
    %363 = vmax.xlane.f32.xlu0 %v362
    %v364 = vpop.xlane.xlu0 %363
    %v365 = vsel %vm206, %v361, -inf
    %366 = vmax.xlane.f32.xlu0 %v365
    %v367 = vpop.xlane.xlu0 %366
    %v368 = vsub.f32 %v360, %v364
    %v369 = vsub.f32 %v361, %v367
    %v370 = vmul.f32 %v368, 1.442695
    %v371 = vpow.pop %v370
    %v372 = vmul.f32 %v369, 1.442695
    %v373 = vpow.pop %v372
    %v374 = vsel %vm206, %v371, 0.0
    %375 = vadd.xlane.f32.xlu0 %v374
    %v376 = vpop.xlane.xlu0 %375
    %v377 = vsel %vm206, %v373, 0.0
    %378 = vadd.xlane.f32.xlu0 %v377
    %v379 = vpop.xlane.xlu0 %378
    %v380 = vrcp.pop %v376
    %v381 = vrcp.pop %v379
    %v382 = vmul.f32 %v371, %v380
    %v383 = vmul.f32 %v373, %v381
    %384 = vrot.lane.b32.xlu0 %v191, 64
    %v385 = vpop.permute.xlu0 %384
    %v388 = vsel %vm206, %v382, 0
    %390 = vmatprep.subr.mxu0 0.0
    %391 = vmatpush1.msra.mxu0 %v385
    %392 = vmatprep.subr.mxu0 0.0
    %393 = vmatpush1.msra.mxu0 0.0
    %394 = vmatprep.subr.mxu0 0.0
    %395 = vmatpush1.msra.mxu0 0.0
    %396 = vmatprep.subr.mxu0 0.0
    %397 = vmatpush1.msra.mxu0 0.0
    %398 = vmatprep.subr.mxu0 0.0
    %399 = vmatpush1.msra.mxu0 0.0
    %400 = vmatprep.subr.mxu0 0.0
    %401 = vmatpush1.msra.mxu0 0.0
    %402 = vmatprep.subr.mxu0 0.0
    %403 = vmatpush1.msra.mxu0 0.0
    %404 = vmatprep.subr.mxu0 0.0
    %405 = vmatpush1.msra.mxu0 0.0
    %406 = vmatprep.subr.mxu0 0.0
    %407 = vmatpush1.msra.mxu0 0.0
    %408 = vmatprep.subr.mxu0 0.0
    %409 = vmatpush1.msra.mxu0 0.0
    %410 = vmatprep.subr.mxu0 0.0
    %411 = vmatpush1.msra.mxu0 0.0
    %412 = vmatprep.subr.mxu0 0.0
    %413 = vmatpush1.msra.mxu0 0.0
    %414 = vmatprep.subr.mxu0 0.0
    %415 = vmatpush1.msra.mxu0 0.0
    %416 = vmatprep.subr.mxu0 0.0
    %417 = vmatpush1.msra.mxu0 0.0
    %418 = vmatprep.subr.mxu0 0.0
    %419 = vmatpush1.msra.mxu0 0.0
    %420 = vmatprep.subr.mxu0 0.0
    %421 = vmatpush1.msra.mxu0 0.0
    %422 = vmatprep.subr.mxu0 0.0
    %423 = vmatpush1.msra.mxu0 0.0
    %424 = vmatprep.subr.mxu0 0.0
    %425 = vmatpush1.msra.mxu0 0.0
    %426 = vmatprep.subr.mxu0 0.0
    %427 = vmatpush1.msra.mxu0 0.0
    %428 = vmatprep.subr.mxu0 0.0
    %429 = vmatpush1.msra.mxu0 0.0
    %430 = vmatprep.subr.mxu0 0.0
    %431 = vmatpush1.msra.mxu0 0.0
    %432 = vmatprep.subr.mxu0 0.0
    %433 = vmatpush1.msra.mxu0 0.0
    %434 = vmatprep.subr.mxu0 0.0
    %435 = vmatpush1.msra.mxu0 0.0
    %436 = vmatprep.subr.mxu0 0.0
    %437 = vmatpush1.msra.mxu0 0.0
    %438 = vmatprep.subr.mxu0 0.0
    %439 = vmatpush1.msra.mxu0 0.0
    %440 = vmatprep.subr.mxu0 0.0
    %441 = vmatpush1.msra.mxu0 0.0
    %442 = vmatprep.subr.mxu0 0.0
    %443 = vmatpush1.msra.mxu0 0.0
    %444 = vmatprep.subr.mxu0 0.0
    %445 = vmatpush1.msra.mxu0 0.0
    %446 = vmatprep.subr.mxu0 0.0
    %447 = vmatpush1.msra.mxu0 0.0
    %448 = vmatprep.subr.mxu0 0.0
    %449 = vmatpush1.msra.mxu0 0.0
    %450 = vmatprep.subr.mxu0 0.0
    %451 = vmatpush1.msra.mxu0 0.0
    %452 = vmatprep.subr.mxu0 0.0
    %453 = vmatpush1.msra.mxu0 0.0
    %454 = vmatprep.mubr.f32.mxu0 0.0
    %455 = vmatmul.mubr.f32.gmra.mrb[0].mxu0 %v388
    %v456 = vpop.f32.mrb[0].mxu0
    %v457 = vadd.f32 0.0, %v456
    %v458 = vpop.f32.mrb[0].mxu0
    %459 = vdwg.mxu0
    %460 = vrot.lane.b32.xlu0 %v196, 64
    %v461 = vpop.permute.xlu0 %460
    %v464 = vsel %vm206, %v383, 0
    %466 = vmatprep.subr.mxu0 0.0
    %467 = vmatpush1.msra.mxu0 %v461
    %468 = vmatprep.subr.mxu0 0.0
    %469 = vmatpush1.msra.mxu0 0.0
    %470 = vmatprep.subr.mxu0 0.0
    %471 = vmatpush1.msra.mxu0 0.0
    %472 = vmatprep.subr.mxu0 0.0
    %473 = vmatpush1.msra.mxu0 0.0
    %474 = vmatprep.subr.mxu0 0.0
    %475 = vmatpush1.msra.mxu0 0.0
    %476 = vmatprep.subr.mxu0 0.0
    %477 = vmatpush1.msra.mxu0 0.0
    %478 = vmatprep.subr.mxu0 0.0
    %479 = vmatpush1.msra.mxu0 0.0
    %480 = vmatprep.subr.mxu0 0.0
    %481 = vmatpush1.msra.mxu0 0.0
    %482 = vmatprep.subr.mxu0 0.0
    %483 = vmatpush1.msra.mxu0 0.0
    %484 = vmatprep.subr.mxu0 0.0
    %485 = vmatpush1.msra.mxu0 0.0
    %486 = vmatprep.subr.mxu0 0.0
    %487 = vmatpush1.msra.mxu0 0.0
    %488 = vmatprep.subr.mxu0 0.0
    %489 = vmatpush1.msra.mxu0 0.0
    %490 = vmatprep.subr.mxu0 0.0
    %491 = vmatpush1.msra.mxu0 0.0
    %492 = vmatprep.subr.mxu0 0.0
    %493 = vmatpush1.msra.mxu0 0.0
    %494 = vmatprep.subr.mxu0 0.0
    %495 = vmatpush1.msra.mxu0 0.0
    %496 = vmatprep.subr.mxu0 0.0
    %497 = vmatpush1.msra.mxu0 0.0
    %498 = vmatprep.subr.mxu0 0.0
    %499 = vmatpush1.msra.mxu0 0.0
    %500 = vmatprep.subr.mxu0 0.0
    %501 = vmatpush1.msra.mxu0 0.0
    %502 = vmatprep.subr.mxu0 0.0
    %503 = vmatpush1.msra.mxu0 0.0
    %504 = vmatprep.subr.mxu0 0.0
    %505 = vmatpush1.msra.mxu0 0.0
    %506 = vmatprep.subr.mxu0 0.0
    %507 = vmatpush1.msra.mxu0 0.0
    %508 = vmatprep.subr.mxu0 0.0
    %509 = vmatpush1.msra.mxu0 0.0
    %510 = vmatprep.subr.mxu0 0.0
    %511 = vmatpush1.msra.mxu0 0.0
    %512 = vmatprep.subr.mxu0 0.0
    %513 = vmatpush1.msra.mxu0 0.0
    %514 = vmatprep.subr.mxu0 0.0
    %515 = vmatpush1.msra.mxu0 0.0
    %516 = vmatprep.subr.mxu0 0.0
    %517 = vmatpush1.msra.mxu0 0.0
    %518 = vmatprep.subr.mxu0 0.0
    %519 = vmatpush1.msra.mxu0 0.0
    %520 = vmatprep.subr.mxu0 0.0
    %521 = vmatpush1.msra.mxu0 0.0
    %522 = vmatprep.subr.mxu0 0.0
    %523 = vmatpush1.msra.mxu0 0.0
    %524 = vmatprep.subr.mxu0 0.0
    %525 = vmatpush1.msra.mxu0 0.0
    %526 = vmatprep.subr.mxu0 0.0
    %527 = vmatpush1.msra.mxu0 0.0
    %528 = vmatprep.subr.mxu0 0.0
    %529 = vmatpush1.msra.mxu0 0.0
    %530 = vmatprep.mubr.f32.mxu0 0.0
    %531 = vmatmul.mubr.f32.gmra.mrb[0].mxu0 %v464
    %v532 = vpop.f32.mrb[0].mxu0
    %v533 = vadd.f32 0.0, %v532
    %v534 = vpop.f32.mrb[0].mxu0
    %535 = vdwg.mxu0
    %536 = vrot.lane.b32.xlu0 %v191, 120
    %v537 = vpop.permute.xlu0 %536
    %538 = vrot.lane.b32.xlu0 %v191, 88
    %v539 = vpop.permute.xlu0 %538
    %v540 = vsel %vm206, %v537, 0
    %v542 = vsel %vm206, %v539, 0
    %544 = vmatprep.subr.mxu0 0.0
    %545 = vmatpush1.xpose.msra.mxu0 %v542
    %546 = vmatprep.subr.mxu0 0.0
    %547 = vmatpush1.xpose.msra.mxu0 0.0
    %548 = vmatprep.subr.mxu0 0.0
    %549 = vmatpush1.xpose.msra.mxu0 0.0
    %550 = vmatprep.subr.mxu0 0.0
    %551 = vmatpush1.xpose.msra.mxu0 0.0
    %552 = vmatprep.subr.mxu0 0.0
    %553 = vmatpush1.xpose.msra.mxu0 0.0
    %554 = vmatprep.subr.mxu0 0.0
    %555 = vmatpush1.xpose.msra.mxu0 0.0
    %556 = vmatprep.subr.mxu0 0.0
    %557 = vmatpush1.xpose.msra.mxu0 0.0
    %558 = vmatprep.subr.mxu0 0.0
    %559 = vmatpush1.xpose.msra.mxu0 0.0
    %560 = vmatprep.subr.mxu0 0.0
    %561 = vmatpush1.xpose.msra.mxu0 0.0
    %562 = vmatprep.subr.mxu0 0.0
    %563 = vmatpush1.xpose.msra.mxu0 0.0
    %564 = vmatprep.subr.mxu0 0.0
    %565 = vmatpush1.xpose.msra.mxu0 0.0
    %566 = vmatprep.subr.mxu0 0.0
    %567 = vmatpush1.xpose.msra.mxu0 0.0
    %568 = vmatprep.subr.mxu0 0.0
    %569 = vmatpush1.xpose.msra.mxu0 0.0
    %570 = vmatprep.subr.mxu0 0.0
    %571 = vmatpush1.xpose.msra.mxu0 0.0
    %572 = vmatprep.subr.mxu0 0.0
    %573 = vmatpush1.xpose.msra.mxu0 0.0
    %574 = vmatprep.subr.mxu0 0.0
    %575 = vmatpush1.xpose.msra.mxu0 0.0
    %576 = vmatprep.subr.mxu0 0.0
    %577 = vmatpush1.xpose.msra.mxu0 0.0
    %578 = vmatprep.subr.mxu0 0.0
    %579 = vmatpush1.xpose.msra.mxu0 0.0
    %580 = vmatprep.subr.mxu0 0.0
    %581 = vmatpush1.xpose.msra.mxu0 0.0
    %582 = vmatprep.subr.mxu0 0.0
    %583 = vmatpush1.xpose.msra.mxu0 0.0
    %584 = vmatprep.subr.mxu0 0.0
    %585 = vmatpush1.xpose.msra.mxu0 0.0
    %586 = vmatprep.subr.mxu0 0.0
    %587 = vmatpush1.xpose.msra.mxu0 0.0
    %588 = vmatprep.subr.mxu0 0.0
    %589 = vmatpush1.xpose.msra.mxu0 0.0
    %590 = vmatprep.subr.mxu0 0.0
    %591 = vmatpush1.xpose.msra.mxu0 0.0
    %592 = vmatprep.subr.mxu0 0.0
    %593 = vmatpush1.xpose.msra.mxu0 0.0
    %594 = vmatprep.subr.mxu0 0.0
    %595 = vmatpush1.xpose.msra.mxu0 0.0
    %596 = vmatprep.subr.mxu0 0.0
    %597 = vmatpush1.xpose.msra.mxu0 0.0
    %598 = vmatprep.subr.mxu0 0.0
    %599 = vmatpush1.xpose.msra.mxu0 0.0
    %600 = vmatprep.subr.mxu0 0.0
    %601 = vmatpush1.xpose.msra.mxu0 0.0
    %602 = vmatprep.subr.mxu0 0.0
    %603 = vmatpush1.xpose.msra.mxu0 0.0
    %604 = vmatprep.subr.mxu0 0.0
    %605 = vmatpush1.xpose.msra.mxu0 0.0
    %606 = vmatprep.subr.mxu0 0.0
    %607 = vmatpush1.xpose.msra.mxu0 0.0
    %608 = vmatprep.mubr.f32.mxu0 0.0
    %609 = vmatmul.mubr.f32.gmra.mrb[0].mxu0 %v540
    %v610 = vpop.f32.mrb[0].mxu0
    %v611 = vadd.f32 0.0, %v610
    %v612 = vpop.f32.mrb[0].mxu0
    %613 = vdwg.mxu0
    %614 = vrot.lane.b32.xlu0 %v196, 120
    %v615 = vpop.permute.xlu0 %614
    %616 = vrot.lane.b32.xlu0 %v196, 88
    %v617 = vpop.permute.xlu0 %616
    %v618 = vsel %vm206, %v615, 0
    %v620 = vsel %vm206, %v617, 0
    %622 = vmatprep.subr.mxu0 0.0
    %623 = vmatpush1.xpose.msra.mxu0 %v620
    %624 = vmatprep.subr.mxu0 0.0
    %625 = vmatpush1.xpose.msra.mxu0 0.0
    %626 = vmatprep.subr.mxu0 0.0
    %627 = vmatpush1.xpose.msra.mxu0 0.0
    %628 = vmatprep.subr.mxu0 0.0
    %629 = vmatpush1.xpose.msra.mxu0 0.0
    %630 = vmatprep.subr.mxu0 0.0
    %631 = vmatpush1.xpose.msra.mxu0 0.0
    %632 = vmatprep.subr.mxu0 0.0
    %633 = vmatpush1.xpose.msra.mxu0 0.0
    %634 = vmatprep.subr.mxu0 0.0
    %635 = vmatpush1.xpose.msra.mxu0 0.0
    %636 = vmatprep.subr.mxu0 0.0
    %637 = vmatpush1.xpose.msra.mxu0 0.0
    %638 = vmatprep.subr.mxu0 0.0
    %639 = vmatpush1.xpose.msra.mxu0 0.0
    %640 = vmatprep.subr.mxu0 0.0
    %641 = vmatpush1.xpose.msra.mxu0 0.0
    %642 = vmatprep.subr.mxu0 0.0
    %643 = vmatpush1.xpose.msra.mxu0 0.0
    %644 = vmatprep.subr.mxu0 0.0
    %645 = vmatpush1.xpose.msra.mxu0 0.0
    %646 = vmatprep.subr.mxu0 0.0
    %647 = vmatpush1.xpose.msra.mxu0 0.0
    %648 = vmatprep.subr.mxu0 0.0
    %649 = vmatpush1.xpose.msra.mxu0 0.0
    %650 = vmatprep.subr.mxu0 0.0
    %651 = vmatpush1.xpose.msra.mxu0 0.0
    %652 = vmatprep.subr.mxu0 0.0
    %653 = vmatpush1.xpose.msra.mxu0 0.0
    %654 = vmatprep.subr.mxu0 0.0
    %655 = vmatpush1.xpose.msra.mxu0 0.0
    %656 = vmatprep.subr.mxu0 0.0
    %657 = vmatpush1.xpose.msra.mxu0 0.0
    %658 = vmatprep.subr.mxu0 0.0
    %659 = vmatpush1.xpose.msra.mxu0 0.0
    %660 = vmatprep.subr.mxu0 0.0
    %661 = vmatpush1.xpose.msra.mxu0 0.0
    %662 = vmatprep.subr.mxu0 0.0
    %663 = vmatpush1.xpose.msra.mxu0 0.0
    %664 = vmatprep.subr.mxu0 0.0
    %665 = vmatpush1.xpose.msra.mxu0 0.0
    %666 = vmatprep.subr.mxu0 0.0
    %667 = vmatpush1.xpose.msra.mxu0 0.0
    %668 = vmatprep.subr.mxu0 0.0
    %669 = vmatpush1.xpose.msra.mxu0 0.0
    %670 = vmatprep.subr.mxu0 0.0
    %671 = vmatpush1.xpose.msra.mxu0 0.0
    %672 = vmatprep.subr.mxu0 0.0
    %673 = vmatpush1.xpose.msra.mxu0 0.0
    %674 = vmatprep.subr.mxu0 0.0
    %675 = vmatpush1.xpose.msra.mxu0 0.0
    %676 = vmatprep.subr.mxu0 0.0
    %677 = vmatpush1.xpose.msra.mxu0 0.0
    %678 = vmatprep.subr.mxu0 0.0
    %679 = vmatpush1.xpose.msra.mxu0 0.0
    %680 = vmatprep.subr.mxu0 0.0
    %681 = vmatpush1.xpose.msra.mxu0 0.0
    %682 = vmatprep.subr.mxu0 0.0
    %683 = vmatpush1.xpose.msra.mxu0 0.0
    %684 = vmatprep.subr.mxu0 0.0
    %685 = vmatpush1.xpose.msra.mxu0 0.0
    %686 = vmatprep.mubr.f32.mxu0 0.0
    %687 = vmatmul.mubr.f32.gmra.mrb[0].mxu0 %v618
    %v688 = vpop.f32.mrb[0].mxu0
    %v689 = vadd.f32 0.0, %v688
    %v690 = vpop.f32.mrb[0].mxu0
    %691 = vdwg.mxu0
    %v692 = vmul.f32 %v611, 0.35355338
    %v693 = vmul.f32 %v689, 0.35355338
    %v694 = vsel %vm60, %v692, -1e+30
    %v695 = vsel %vm60, %v693, -1e+30
    %v696 = vsel %vm206, %v694, -inf
    %697 = vmax.xlane.f32.xlu0 %v696
    %v698 = vpop.xlane.xlu0 %697
    %v699 = vsel %vm206, %v695, -inf
    %700 = vmax.xlane.f32.xlu0 %v699
    %v701 = vpop.xlane.xlu0 %700
    %v702 = vsub.f32 %v694, %v698
    %v703 = vsub.f32 %v695, %v701
    %v704 = vmul.f32 %v702, 1.442695
    %v705 = vpow.pop %v704
    %v706 = vmul.f32 %v703, 1.442695
    %v707 = vpow.pop %v706
    %v708 = vsel %vm206, %v705, 0.0
    %709 = vadd.xlane.f32.xlu0 %v708
    %v710 = vpop.xlane.xlu0 %709
    %v711 = vsel %vm206, %v707, 0.0
    %712 = vadd.xlane.f32.xlu0 %v711
    %v713 = vpop.xlane.xlu0 %712
    %v714 = vrcp.pop %v710
    %v715 = vrcp.pop %v713
    %v716 = vmul.f32 %v705, %v714
    %v717 = vmul.f32 %v707, %v715
    %718 = vrot.lane.b32.xlu0 %v191, 56
    %v719 = vpop.permute.xlu0 %718
    %v722 = vsel %vm206, %v716, 0
    %724 = vmatprep.subr.mxu0 0.0
    %725 = vmatpush1.msra.mxu0 %v719
    %726 = vmatprep.subr.mxu0 0.0
    %727 = vmatpush1.msra.mxu0 0.0
    %728 = vmatprep.subr.mxu0 0.0
    %729 = vmatpush1.msra.mxu0 0.0
    %730 = vmatprep.subr.mxu0 0.0
    %731 = vmatpush1.msra.mxu0 0.0
    %732 = vmatprep.subr.mxu0 0.0
    %733 = vmatpush1.msra.mxu0 0.0
    %734 = vmatprep.subr.mxu0 0.0
    %735 = vmatpush1.msra.mxu0 0.0
    %736 = vmatprep.subr.mxu0 0.0
    %737 = vmatpush1.msra.mxu0 0.0
    %738 = vmatprep.subr.mxu0 0.0
    %739 = vmatpush1.msra.mxu0 0.0
    %740 = vmatprep.subr.mxu0 0.0
    %741 = vmatpush1.msra.mxu0 0.0
    %742 = vmatprep.subr.mxu0 0.0
    %743 = vmatpush1.msra.mxu0 0.0
    %744 = vmatprep.subr.mxu0 0.0
    %745 = vmatpush1.msra.mxu0 0.0
    %746 = vmatprep.subr.mxu0 0.0
    %747 = vmatpush1.msra.mxu0 0.0
    %748 = vmatprep.subr.mxu0 0.0
    %749 = vmatpush1.msra.mxu0 0.0
    %750 = vmatprep.subr.mxu0 0.0
    %751 = vmatpush1.msra.mxu0 0.0
    %752 = vmatprep.subr.mxu0 0.0
    %753 = vmatpush1.msra.mxu0 0.0
    %754 = vmatprep.subr.mxu0 0.0
    %755 = vmatpush1.msra.mxu0 0.0
    %756 = vmatprep.subr.mxu0 0.0
    %757 = vmatpush1.msra.mxu0 0.0
    %758 = vmatprep.subr.mxu0 0.0
    %759 = vmatpush1.msra.mxu0 0.0
    %760 = vmatprep.subr.mxu0 0.0
    %761 = vmatpush1.msra.mxu0 0.0
    %762 = vmatprep.subr.mxu0 0.0
    %763 = vmatpush1.msra.mxu0 0.0
    %764 = vmatprep.subr.mxu0 0.0
    %765 = vmatpush1.msra.mxu0 0.0
    %766 = vmatprep.subr.mxu0 0.0
    %767 = vmatpush1.msra.mxu0 0.0
    %768 = vmatprep.subr.mxu0 0.0
    %769 = vmatpush1.msra.mxu0 0.0
    %770 = vmatprep.subr.mxu0 0.0
    %771 = vmatpush1.msra.mxu0 0.0
    %772 = vmatprep.subr.mxu0 0.0
    %773 = vmatpush1.msra.mxu0 0.0
    %774 = vmatprep.subr.mxu0 0.0
    %775 = vmatpush1.msra.mxu0 0.0
    %776 = vmatprep.subr.mxu0 0.0
    %777 = vmatpush1.msra.mxu0 0.0
    %778 = vmatprep.subr.mxu0 0.0
    %779 = vmatpush1.msra.mxu0 0.0
    %780 = vmatprep.subr.mxu0 0.0
    %781 = vmatpush1.msra.mxu0 0.0
    %782 = vmatprep.subr.mxu0 0.0
    %783 = vmatpush1.msra.mxu0 0.0
    %784 = vmatprep.subr.mxu0 0.0
    %785 = vmatpush1.msra.mxu0 0.0
    %786 = vmatprep.subr.mxu0 0.0
    %787 = vmatpush1.msra.mxu0 0.0
    %788 = vmatprep.mubr.f32.mxu0 0.0
    %789 = vmatmul.mubr.f32.gmra.mrb[0].mxu0 %v722
    %v790 = vpop.f32.mrb[0].mxu0
    %v791 = vadd.f32 0.0, %v790
    %v792 = vpop.f32.mrb[0].mxu0
    %793 = vdwg.mxu0
    %794 = vrot.lane.b32.xlu0 %v196, 56
    %v795 = vpop.permute.xlu0 %794
    %v798 = vsel %vm206, %v717, 0
    %800 = vmatprep.subr.mxu0 0.0
    %801 = vmatpush1.msra.mxu0 %v795
    %802 = vmatprep.subr.mxu0 0.0
    %803 = vmatpush1.msra.mxu0 0.0
    %804 = vmatprep.subr.mxu0 0.0
    %805 = vmatpush1.msra.mxu0 0.0
    %806 = vmatprep.subr.mxu0 0.0
    %807 = vmatpush1.msra.mxu0 0.0
    %808 = vmatprep.subr.mxu0 0.0
    %809 = vmatpush1.msra.mxu0 0.0
    %810 = vmatprep.subr.mxu0 0.0
    %811 = vmatpush1.msra.mxu0 0.0
    %812 = vmatprep.subr.mxu0 0.0
    %813 = vmatpush1.msra.mxu0 0.0
    %814 = vmatprep.subr.mxu0 0.0
    %815 = vmatpush1.msra.mxu0 0.0
    %816 = vmatprep.subr.mxu0 0.0
    %817 = vmatpush1.msra.mxu0 0.0
    %818 = vmatprep.subr.mxu0 0.0
    %819 = vmatpush1.msra.mxu0 0.0
    %820 = vmatprep.subr.mxu0 0.0
    %821 = vmatpush1.msra.mxu0 0.0
    %822 = vmatprep.subr.mxu0 0.0
    %823 = vmatpush1.msra.mxu0 0.0
    %824 = vmatprep.subr.mxu0 0.0
    %825 = vmatpush1.msra.mxu0 0.0
    %826 = vmatprep.subr.mxu0 0.0
    %827 = vmatpush1.msra.mxu0 0.0
    %828 = vmatprep.subr.mxu0 0.0
    %829 = vmatpush1.msra.mxu0 0.0
    %830 = vmatprep.subr.mxu0 0.0
    %831 = vmatpush1.msra.mxu0 0.0
    %832 = vmatprep.subr.mxu0 0.0
    %833 = vmatpush1.msra.mxu0 0.0
    %834 = vmatprep.subr.mxu0 0.0
    %835 = vmatpush1.msra.mxu0 0.0
    %836 = vmatprep.subr.mxu0 0.0
    %837 = vmatpush1.msra.mxu0 0.0
    %838 = vmatprep.subr.mxu0 0.0
    %839 = vmatpush1.msra.mxu0 0.0
    %840 = vmatprep.subr.mxu0 0.0
    %841 = vmatpush1.msra.mxu0 0.0
    %842 = vmatprep.subr.mxu0 0.0
    %843 = vmatpush1.msra.mxu0 0.0
    %844 = vmatprep.subr.mxu0 0.0
    %845 = vmatpush1.msra.mxu0 0.0
    %846 = vmatprep.subr.mxu0 0.0
    %847 = vmatpush1.msra.mxu0 0.0
    %848 = vmatprep.subr.mxu0 0.0
    %849 = vmatpush1.msra.mxu0 0.0
    %850 = vmatprep.subr.mxu0 0.0
    %851 = vmatpush1.msra.mxu0 0.0
    %852 = vmatprep.subr.mxu0 0.0
    %853 = vmatpush1.msra.mxu0 0.0
    %854 = vmatprep.subr.mxu0 0.0
    %855 = vmatpush1.msra.mxu0 0.0
    %856 = vmatprep.subr.mxu0 0.0
    %857 = vmatpush1.msra.mxu0 0.0
    %858 = vmatprep.subr.mxu0 0.0
    %859 = vmatpush1.msra.mxu0 0.0
    %860 = vmatprep.subr.mxu0 0.0
    %861 = vmatpush1.msra.mxu0 0.0
    %862 = vmatprep.subr.mxu0 0.0
    %863 = vmatpush1.msra.mxu0 0.0
    %864 = vmatprep.mubr.f32.mxu0 0.0
    %865 = vmatmul.mubr.f32.gmra.mrb[0].mxu0 %v798
    %v866 = vpop.f32.mrb[0].mxu0
    %v867 = vadd.f32 0.0, %v866
    %v868 = vpop.f32.mrb[0].mxu0
    %869 = vdwg.mxu0
    %v871 = vsel %vm206, %v791, 0
    %v874 = vsel %vm206, %v867, 0
    %876 = vmatprep.subr.mxu0 0.0
    %877 = vmatpush1.msra.mxu0 %v200
    %878 = vmatprep.subr.mxu0 0.0
    %879 = vmatpush1.msra.mxu0 0.0
    %880 = vmatprep.subr.mxu0 0.0
    %881 = vmatpush1.msra.mxu0 0.0
    %882 = vmatprep.subr.mxu0 0.0
    %883 = vmatpush1.msra.mxu0 0.0
    %884 = vmatprep.subr.mxu0 0.0
    %885 = vmatpush1.msra.mxu0 0.0
    %886 = vmatprep.subr.mxu0 0.0
    %887 = vmatpush1.msra.mxu0 0.0
    %888 = vmatprep.subr.mxu0 0.0
    %889 = vmatpush1.msra.mxu0 0.0
    %890 = vmatprep.subr.mxu0 0.0
    %891 = vmatpush1.msra.mxu0 0.0
    %892 = vmatprep.subr.mxu0 0.0
    %893 = vmatpush1.msra.mxu0 0.0
    %894 = vmatprep.subr.mxu0 0.0
    %895 = vmatpush1.msra.mxu0 0.0
    %896 = vmatprep.subr.mxu0 0.0
    %897 = vmatpush1.msra.mxu0 0.0
    %898 = vmatprep.subr.mxu0 0.0
    %899 = vmatpush1.msra.mxu0 0.0
    %900 = vmatprep.subr.mxu0 0.0
    %901 = vmatpush1.msra.mxu0 0.0
    %902 = vmatprep.subr.mxu0 0.0
    %903 = vmatpush1.msra.mxu0 0.0
    %904 = vmatprep.subr.mxu0 0.0
    %905 = vmatpush1.msra.mxu0 0.0
    %906 = vmatprep.subr.mxu0 0.0
    %907 = vmatpush1.msra.mxu0 0.0
    %908 = vmatprep.subr.mxu0 0.0
    %909 = vmatpush1.msra.mxu0 0.0
    %910 = vmatprep.subr.mxu0 0.0
    %911 = vmatpush1.msra.mxu0 0.0
    %912 = vmatprep.subr.mxu0 0.0
    %913 = vmatpush1.msra.mxu0 0.0
    %914 = vmatprep.subr.mxu0 0.0
    %915 = vmatpush1.msra.mxu0 0.0
    %916 = vmatprep.subr.mxu0 0.0
    %917 = vmatpush1.msra.mxu0 0.0
    %918 = vmatprep.subr.mxu0 0.0
    %919 = vmatpush1.msra.mxu0 0.0
    %920 = vmatprep.subr.mxu0 0.0
    %921 = vmatpush1.msra.mxu0 0.0
    %922 = vmatprep.subr.mxu0 0.0
    %923 = vmatpush1.msra.mxu0 0.0
    %924 = vmatprep.subr.mxu0 0.0
    %925 = vmatpush1.msra.mxu0 0.0
    %926 = vmatprep.subr.mxu0 0.0
    %927 = vmatpush1.msra.mxu0 0.0
    %928 = vmatprep.subr.mxu0 0.0
    %929 = vmatpush1.msra.mxu0 0.0
    %930 = vmatprep.subr.mxu0 0.0
    %931 = vmatpush1.msra.mxu0 0.0
    %932 = vmatprep.subr.mxu0 0.0
    %933 = vmatpush1.msra.mxu0 0.0
    %934 = vmatprep.subr.mxu0 0.0
    %935 = vmatpush1.msra.mxu0 0.0
    %936 = vmatprep.subr.mxu0 0.0
    %937 = vmatpush1.msra.mxu0 0.0
    %938 = vmatprep.subr.mxu0 0.0
    %939 = vmatpush1.msra.mxu0 0.0
    %940 = vmatprep.mubr.f32.mxu0 0.0
    %941 = vmatmul.mubr.f32.gmra.mrb[0].mxu0 %v871
    %v942 = vpop.f32.mrb[0].mxu0
    %v943 = vadd.f32 0.0, %v942
    %v944 = vpop.f32.mrb[0].mxu0
    %945 = vmatprep.mubr.f32.mxu0 0.0
    %946 = vmatmul.mubr.f32.gmra.mrb[0].mxu0 %v874
    %v947 = vpop.f32.mrb[0].mxu0
    %v948 = vadd.f32 0.0, %v947
    %v949 = vpop.f32.mrb[0].mxu0
    %950 = vdwg.mxu0
    %v952 = vsel %vm206, %v457, 0
    %v955 = vsel %vm206, %v533, 0
    %957 = vmatprep.subr.mxu0 0.0
    %958 = vmatpush1.msra.mxu0 %v199
    %959 = vmatprep.subr.mxu0 0.0
    %960 = vmatpush1.msra.mxu0 0.0
    %961 = vmatprep.subr.mxu0 0.0
    %962 = vmatpush1.msra.mxu0 0.0
    %963 = vmatprep.subr.mxu0 0.0
    %964 = vmatpush1.msra.mxu0 0.0
    %965 = vmatprep.subr.mxu0 0.0
    %966 = vmatpush1.msra.mxu0 0.0
    %967 = vmatprep.subr.mxu0 0.0
    %968 = vmatpush1.msra.mxu0 0.0
    %969 = vmatprep.subr.mxu0 0.0
    %970 = vmatpush1.msra.mxu0 0.0
    %971 = vmatprep.subr.mxu0 0.0
    %972 = vmatpush1.msra.mxu0 0.0
    %973 = vmatprep.subr.mxu0 0.0
    %974 = vmatpush1.msra.mxu0 0.0
    %975 = vmatprep.subr.mxu0 0.0
    %976 = vmatpush1.msra.mxu0 0.0
    %977 = vmatprep.subr.mxu0 0.0
    %978 = vmatpush1.msra.mxu0 0.0
    %979 = vmatprep.subr.mxu0 0.0
    %980 = vmatpush1.msra.mxu0 0.0
    %981 = vmatprep.subr.mxu0 0.0
    %982 = vmatpush1.msra.mxu0 0.0
    %983 = vmatprep.subr.mxu0 0.0
    %984 = vmatpush1.msra.mxu0 0.0
    %985 = vmatprep.subr.mxu0 0.0
    %986 = vmatpush1.msra.mxu0 0.0
    %987 = vmatprep.subr.mxu0 0.0
    %988 = vmatpush1.msra.mxu0 0.0
    %989 = vmatprep.subr.mxu0 0.0
    %990 = vmatpush1.msra.mxu0 0.0
    %991 = vmatprep.subr.mxu0 0.0
    %992 = vmatpush1.msra.mxu0 0.0
    %993 = vmatprep.subr.mxu0 0.0
    %994 = vmatpush1.msra.mxu0 0.0
    %995 = vmatprep.subr.mxu0 0.0
    %996 = vmatpush1.msra.mxu0 0.0
    %997 = vmatprep.subr.mxu0 0.0
    %998 = vmatpush1.msra.mxu0 0.0
    %999 = vmatprep.subr.mxu0 0.0
    %1000 = vmatpush1.msra.mxu0 0.0
    %1001 = vmatprep.subr.mxu0 0.0
    %1002 = vmatpush1.msra.mxu0 0.0
    %1003 = vmatprep.subr.mxu0 0.0
    %1004 = vmatpush1.msra.mxu0 0.0
    %1005 = vmatprep.subr.mxu0 0.0
    %1006 = vmatpush1.msra.mxu0 0.0
    %1007 = vmatprep.subr.mxu0 0.0
    %1008 = vmatpush1.msra.mxu0 0.0
    %1009 = vmatprep.subr.mxu0 0.0
    %1010 = vmatpush1.msra.mxu0 0.0
    %1011 = vmatprep.subr.mxu0 0.0
    %1012 = vmatpush1.msra.mxu0 0.0
    %1013 = vmatprep.subr.mxu0 0.0
    %1014 = vmatpush1.msra.mxu0 0.0
    %1015 = vmatprep.subr.mxu0 0.0
    %1016 = vmatpush1.msra.mxu0 0.0
    %1017 = vmatprep.subr.mxu0 0.0
    %1018 = vmatpush1.msra.mxu0 0.0
    %1019 = vmatprep.subr.mxu0 0.0
    %1020 = vmatpush1.msra.mxu0 0.0
    %1021 = vmatprep.mubr.f32.mxu0 0.0
    %1022 = vmatmul.mubr.f32.gmra.mrb[0].mxu0 %v952
    %v1023 = vpop.f32.mrb[0].mxu0
    %v1024 = vadd.f32 %v943, %v1023
    %v1025 = vpop.f32.mrb[0].mxu0
    %1026 = vmatprep.mubr.f32.mxu0 0.0
    %1027 = vmatmul.mubr.f32.gmra.mrb[0].mxu0 %v955
    %v1028 = vpop.f32.mrb[0].mxu0
    %v1029 = vadd.f32 %v948, %v1028
    %v1030 = vpop.f32.mrb[0].mxu0
    %1031 = vdwg.mxu0
    %1032 = vrot.lane.b32.xlu0 %v191, 112
    %v1033 = vpop.permute.xlu0 %1032
    %1034 = vrot.lane.b32.xlu0 %v191, 80
    %v1035 = vpop.permute.xlu0 %1034
    %v1036 = vsel %vm206, %v1033, 0
    %v1038 = vsel %vm206, %v1035, 0
    %1040 = vmatprep.subr.mxu0 0.0
    %1041 = vmatpush1.xpose.msra.mxu0 %v1038
    %1042 = vmatprep.subr.mxu0 0.0
    %1043 = vmatpush1.xpose.msra.mxu0 0.0
    %1044 = vmatprep.subr.mxu0 0.0
    %1045 = vmatpush1.xpose.msra.mxu0 0.0
    %1046 = vmatprep.subr.mxu0 0.0
    %1047 = vmatpush1.xpose.msra.mxu0 0.0
    %1048 = vmatprep.subr.mxu0 0.0
    %1049 = vmatpush1.xpose.msra.mxu0 0.0
    %1050 = vmatprep.subr.mxu0 0.0
    %1051 = vmatpush1.xpose.msra.mxu0 0.0
    %1052 = vmatprep.subr.mxu0 0.0
    %1053 = vmatpush1.xpose.msra.mxu0 0.0
    %1054 = vmatprep.subr.mxu0 0.0
    %1055 = vmatpush1.xpose.msra.mxu0 0.0
    %1056 = vmatprep.subr.mxu0 0.0
    %1057 = vmatpush1.xpose.msra.mxu0 0.0
    %1058 = vmatprep.subr.mxu0 0.0
    %1059 = vmatpush1.xpose.msra.mxu0 0.0
    %1060 = vmatprep.subr.mxu0 0.0
    %1061 = vmatpush1.xpose.msra.mxu0 0.0
    %1062 = vmatprep.subr.mxu0 0.0
    %1063 = vmatpush1.xpose.msra.mxu0 0.0
    %1064 = vmatprep.subr.mxu0 0.0
    %1065 = vmatpush1.xpose.msra.mxu0 0.0
    %1066 = vmatprep.subr.mxu0 0.0
    %1067 = vmatpush1.xpose.msra.mxu0 0.0
    %1068 = vmatprep.subr.mxu0 0.0
    %1069 = vmatpush1.xpose.msra.mxu0 0.0
    %1070 = vmatprep.subr.mxu0 0.0
    %1071 = vmatpush1.xpose.msra.mxu0 0.0
    %1072 = vmatprep.subr.mxu0 0.0
    %1073 = vmatpush1.xpose.msra.mxu0 0.0
    %1074 = vmatprep.subr.mxu0 0.0
    %1075 = vmatpush1.xpose.msra.mxu0 0.0
    %1076 = vmatprep.subr.mxu0 0.0
    %1077 = vmatpush1.xpose.msra.mxu0 0.0
    %1078 = vmatprep.subr.mxu0 0.0
    %1079 = vmatpush1.xpose.msra.mxu0 0.0
    %1080 = vmatprep.subr.mxu0 0.0
    %1081 = vmatpush1.xpose.msra.mxu0 0.0
    %1082 = vmatprep.subr.mxu0 0.0
    %1083 = vmatpush1.xpose.msra.mxu0 0.0
    %1084 = vmatprep.subr.mxu0 0.0
    %1085 = vmatpush1.xpose.msra.mxu0 0.0
    %1086 = vmatprep.subr.mxu0 0.0
    %1087 = vmatpush1.xpose.msra.mxu0 0.0
    %1088 = vmatprep.subr.mxu0 0.0
    %1089 = vmatpush1.xpose.msra.mxu0 0.0
    %1090 = vmatprep.subr.mxu0 0.0
    %1091 = vmatpush1.xpose.msra.mxu0 0.0
    %1092 = vmatprep.subr.mxu0 0.0
    %1093 = vmatpush1.xpose.msra.mxu0 0.0
    %1094 = vmatprep.subr.mxu0 0.0
    %1095 = vmatpush1.xpose.msra.mxu0 0.0
    %1096 = vmatprep.subr.mxu0 0.0
    %1097 = vmatpush1.xpose.msra.mxu0 0.0
    %1098 = vmatprep.subr.mxu0 0.0
    %1099 = vmatpush1.xpose.msra.mxu0 0.0
    %1100 = vmatprep.subr.mxu0 0.0
    %1101 = vmatpush1.xpose.msra.mxu0 0.0
    %1102 = vmatprep.subr.mxu0 0.0
    %1103 = vmatpush1.xpose.msra.mxu0 0.0
    %1104 = vmatprep.mubr.f32.mxu0 0.0
    %1105 = vmatmul.mubr.f32.gmra.mrb[0].mxu0 %v1036
    %v1106 = vpop.f32.mrb[0].mxu0
    %v1107 = vadd.f32 0.0, %v1106
    %v1108 = vpop.f32.mrb[0].mxu0
    %1109 = vdwg.mxu0
    %1110 = vrot.lane.b32.xlu0 %v196, 112
    %v1111 = vpop.permute.xlu0 %1110
    %1112 = vrot.lane.b32.xlu0 %v196, 80
    %v1113 = vpop.permute.xlu0 %1112
    %v1114 = vsel %vm206, %v1111, 0
    %v1116 = vsel %vm206, %v1113, 0
    %1118 = vmatprep.subr.mxu0 0.0
    %1119 = vmatpush1.xpose.msra.mxu0 %v1116
    %1120 = vmatprep.subr.mxu0 0.0
    %1121 = vmatpush1.xpose.msra.mxu0 0.0
    %1122 = vmatprep.subr.mxu0 0.0
    %1123 = vmatpush1.xpose.msra.mxu0 0.0
    %1124 = vmatprep.subr.mxu0 0.0
    %1125 = vmatpush1.xpose.msra.mxu0 0.0
    %1126 = vmatprep.subr.mxu0 0.0
    %1127 = vmatpush1.xpose.msra.mxu0 0.0
    %1128 = vmatprep.subr.mxu0 0.0
    %1129 = vmatpush1.xpose.msra.mxu0 0.0
    %1130 = vmatprep.subr.mxu0 0.0
    %1131 = vmatpush1.xpose.msra.mxu0 0.0
    %1132 = vmatprep.subr.mxu0 0.0
    %1133 = vmatpush1.xpose.msra.mxu0 0.0
    %1134 = vmatprep.subr.mxu0 0.0
    %1135 = vmatpush1.xpose.msra.mxu0 0.0
    %1136 = vmatprep.subr.mxu0 0.0
    %1137 = vmatpush1.xpose.msra.mxu0 0.0
    %1138 = vmatprep.subr.mxu0 0.0
    %1139 = vmatpush1.xpose.msra.mxu0 0.0
    %1140 = vmatprep.subr.mxu0 0.0
    %1141 = vmatpush1.xpose.msra.mxu0 0.0
    %1142 = vmatprep.subr.mxu0 0.0
    %1143 = vmatpush1.xpose.msra.mxu0 0.0
    %1144 = vmatprep.subr.mxu0 0.0
    %1145 = vmatpush1.xpose.msra.mxu0 0.0
    %1146 = vmatprep.subr.mxu0 0.0
    %1147 = vmatpush1.xpose.msra.mxu0 0.0
    %1148 = vmatprep.subr.mxu0 0.0
    %1149 = vmatpush1.xpose.msra.mxu0 0.0
    %1150 = vmatprep.subr.mxu0 0.0
    %1151 = vmatpush1.xpose.msra.mxu0 0.0
    %1152 = vmatprep.subr.mxu0 0.0
    %1153 = vmatpush1.xpose.msra.mxu0 0.0
    %1154 = vmatprep.subr.mxu0 0.0
    %1155 = vmatpush1.xpose.msra.mxu0 0.0
    %1156 = vmatprep.subr.mxu0 0.0
    %1157 = vmatpush1.xpose.msra.mxu0 0.0
    %1158 = vmatprep.subr.mxu0 0.0
    %1159 = vmatpush1.xpose.msra.mxu0 0.0
    %1160 = vmatprep.subr.mxu0 0.0
    %1161 = vmatpush1.xpose.msra.mxu0 0.0
    %1162 = vmatprep.subr.mxu0 0.0
    %1163 = vmatpush1.xpose.msra.mxu0 0.0
    %1164 = vmatprep.subr.mxu0 0.0
    %1165 = vmatpush1.xpose.msra.mxu0 0.0
    %1166 = vmatprep.subr.mxu0 0.0
    %1167 = vmatpush1.xpose.msra.mxu0 0.0
    %1168 = vmatprep.subr.mxu0 0.0
    %1169 = vmatpush1.xpose.msra.mxu0 0.0
    %1170 = vmatprep.subr.mxu0 0.0
    %1171 = vmatpush1.xpose.msra.mxu0 0.0
    %1172 = vmatprep.subr.mxu0 0.0
    %1173 = vmatpush1.xpose.msra.mxu0 0.0
    %1174 = vmatprep.subr.mxu0 0.0
    %1175 = vmatpush1.xpose.msra.mxu0 0.0
    %1176 = vmatprep.subr.mxu0 0.0
    %1177 = vmatpush1.xpose.msra.mxu0 0.0
    %1178 = vmatprep.subr.mxu0 0.0
    %1179 = vmatpush1.xpose.msra.mxu0 0.0
    %1180 = vmatprep.subr.mxu0 0.0
    %1181 = vmatpush1.xpose.msra.mxu0 0.0
    %1182 = vmatprep.mubr.f32.mxu0 0.0
    %1183 = vmatmul.mubr.f32.gmra.mrb[0].mxu0 %v1114
    %v1184 = vpop.f32.mrb[0].mxu0
    %v1185 = vadd.f32 0.0, %v1184
    %v1186 = vpop.f32.mrb[0].mxu0
    %1187 = vdwg.mxu0
    %v1188 = vmul.f32 %v1107, 0.35355338
    %v1189 = vmul.f32 %v1185, 0.35355338
    %v1190 = vsel %vm60, %v1188, -1e+30
    %v1191 = vsel %vm60, %v1189, -1e+30
    %v1192 = vsel %vm206, %v1190, -inf
    %1193 = vmax.xlane.f32.xlu0 %v1192
    %v1194 = vpop.xlane.xlu0 %1193
    %v1195 = vsel %vm206, %v1191, -inf
    %1196 = vmax.xlane.f32.xlu0 %v1195
    %v1197 = vpop.xlane.xlu0 %1196
    %v1198 = vsub.f32 %v1190, %v1194
    %v1199 = vsub.f32 %v1191, %v1197
    %v1200 = vmul.f32 %v1198, 1.442695
    %v1201 = vpow.pop %v1200
    %v1202 = vmul.f32 %v1199, 1.442695
    %v1203 = vpow.pop %v1202
    %v1204 = vsel %vm206, %v1201, 0.0
    %1205 = vadd.xlane.f32.xlu0 %v1204
    %v1206 = vpop.xlane.xlu0 %1205
    %v1207 = vsel %vm206, %v1203, 0.0
    %1208 = vadd.xlane.f32.xlu0 %v1207
    %v1209 = vpop.xlane.xlu0 %1208
    %v1210 = vrcp.pop %v1206
    %v1211 = vrcp.pop %v1209
    %v1212 = vmul.f32 %v1201, %v1210
    %v1213 = vmul.f32 %v1203, %v1211
    %1214 = vrot.lane.b32.xlu0 %v191, 48
    %v1215 = vpop.permute.xlu0 %1214
    %v1218 = vsel %vm206, %v1212, 0
    %1220 = vmatprep.subr.mxu0 0.0
    %1221 = vmatpush1.msra.mxu0 %v1215
    %1222 = vmatprep.subr.mxu0 0.0
    %1223 = vmatpush1.msra.mxu0 0.0
    %1224 = vmatprep.subr.mxu0 0.0
    %1225 = vmatpush1.msra.mxu0 0.0
    %1226 = vmatprep.subr.mxu0 0.0
    %1227 = vmatpush1.msra.mxu0 0.0
    %1228 = vmatprep.subr.mxu0 0.0
    %1229 = vmatpush1.msra.mxu0 0.0
    %1230 = vmatprep.subr.mxu0 0.0
    %1231 = vmatpush1.msra.mxu0 0.0
    %1232 = vmatprep.subr.mxu0 0.0
    %1233 = vmatpush1.msra.mxu0 0.0
    %1234 = vmatprep.subr.mxu0 0.0
    %1235 = vmatpush1.msra.mxu0 0.0
    %1236 = vmatprep.subr.mxu0 0.0
    %1237 = vmatpush1.msra.mxu0 0.0
    %1238 = vmatprep.subr.mxu0 0.0
    %1239 = vmatpush1.msra.mxu0 0.0
    %1240 = vmatprep.subr.mxu0 0.0
    %1241 = vmatpush1.msra.mxu0 0.0
    %1242 = vmatprep.subr.mxu0 0.0
    %1243 = vmatpush1.msra.mxu0 0.0
    %1244 = vmatprep.subr.mxu0 0.0
    %1245 = vmatpush1.msra.mxu0 0.0
    %1246 = vmatprep.subr.mxu0 0.0
    %1247 = vmatpush1.msra.mxu0 0.0
    %1248 = vmatprep.subr.mxu0 0.0
    %1249 = vmatpush1.msra.mxu0 0.0
    %1250 = vmatprep.subr.mxu0 0.0
    %1251 = vmatpush1.msra.mxu0 0.0
    %1252 = vmatprep.subr.mxu0 0.0
    %1253 = vmatpush1.msra.mxu0 0.0
    %1254 = vmatprep.subr.mxu0 0.0
    %1255 = vmatpush1.msra.mxu0 0.0
    %1256 = vmatprep.subr.mxu0 0.0
    %1257 = vmatpush1.msra.mxu0 0.0
    %1258 = vmatprep.subr.mxu0 0.0
    %1259 = vmatpush1.msra.mxu0 0.0
    %1260 = vmatprep.subr.mxu0 0.0
    %1261 = vmatpush1.msra.mxu0 0.0
    %1262 = vmatprep.subr.mxu0 0.0
    %1263 = vmatpush1.msra.mxu0 0.0
    %1264 = vmatprep.subr.mxu0 0.0
    %1265 = vmatpush1.msra.mxu0 0.0
    %1266 = vmatprep.subr.mxu0 0.0
    %1267 = vmatpush1.msra.mxu0 0.0
    %1268 = vmatprep.subr.mxu0 0.0
    %1269 = vmatpush1.msra.mxu0 0.0
    %1270 = vmatprep.subr.mxu0 0.0
    %1271 = vmatpush1.msra.mxu0 0.0
    %1272 = vmatprep.subr.mxu0 0.0
    %1273 = vmatpush1.msra.mxu0 0.0
    %1274 = vmatprep.subr.mxu0 0.0
    %1275 = vmatpush1.msra.mxu0 0.0
    %1276 = vmatprep.subr.mxu0 0.0
    %1277 = vmatpush1.msra.mxu0 0.0
    %1278 = vmatprep.subr.mxu0 0.0
    %1279 = vmatpush1.msra.mxu0 0.0
    %1280 = vmatprep.subr.mxu0 0.0
    %1281 = vmatpush1.msra.mxu0 0.0
    %1282 = vmatprep.subr.mxu0 0.0
    %1283 = vmatpush1.msra.mxu0 0.0
    %1284 = vmatprep.mubr.f32.mxu0 0.0
    %1285 = vmatmul.mubr.f32.gmra.mrb[0].mxu0 %v1218
    %v1286 = vpop.f32.mrb[0].mxu0
    %v1287 = vadd.f32 0.0, %v1286
    %v1288 = vpop.f32.mrb[0].mxu0
    %1289 = vdwg.mxu0
    %1290 = vrot.lane.b32.xlu0 %v196, 48
    %v1291 = vpop.permute.xlu0 %1290
    %v1294 = vsel %vm206, %v1213, 0
    %1296 = vmatprep.subr.mxu0 0.0
    %1297 = vmatpush1.msra.mxu0 %v1291
    %1298 = vmatprep.subr.mxu0 0.0
    %1299 = vmatpush1.msra.mxu0 0.0
    %1300 = vmatprep.subr.mxu0 0.0
    %1301 = vmatpush1.msra.mxu0 0.0
    %1302 = vmatprep.subr.mxu0 0.0
    %1303 = vmatpush1.msra.mxu0 0.0
    %1304 = vmatprep.subr.mxu0 0.0
    %1305 = vmatpush1.msra.mxu0 0.0
    %1306 = vmatprep.subr.mxu0 0.0
    %1307 = vmatpush1.msra.mxu0 0.0
    %1308 = vmatprep.subr.mxu0 0.0
    %1309 = vmatpush1.msra.mxu0 0.0
    %1310 = vmatprep.subr.mxu0 0.0
    %1311 = vmatpush1.msra.mxu0 0.0
    %1312 = vmatprep.subr.mxu0 0.0
    %1313 = vmatpush1.msra.mxu0 0.0
    %1314 = vmatprep.subr.mxu0 0.0
    %1315 = vmatpush1.msra.mxu0 0.0
    %1316 = vmatprep.subr.mxu0 0.0
    %1317 = vmatpush1.msra.mxu0 0.0
    %1318 = vmatprep.subr.mxu0 0.0
    %1319 = vmatpush1.msra.mxu0 0.0
    %1320 = vmatprep.subr.mxu0 0.0
    %1321 = vmatpush1.msra.mxu0 0.0
    %1322 = vmatprep.subr.mxu0 0.0
    %1323 = vmatpush1.msra.mxu0 0.0
    %1324 = vmatprep.subr.mxu0 0.0
    %1325 = vmatpush1.msra.mxu0 0.0
    %1326 = vmatprep.subr.mxu0 0.0
    %1327 = vmatpush1.msra.mxu0 0.0
    %1328 = vmatprep.subr.mxu0 0.0
    %1329 = vmatpush1.msra.mxu0 0.0
    %1330 = vmatprep.subr.mxu0 0.0
    %1331 = vmatpush1.msra.mxu0 0.0
    %1332 = vmatprep.subr.mxu0 0.0
    %1333 = vmatpush1.msra.mxu0 0.0
    %1334 = vmatprep.subr.mxu0 0.0
    %1335 = vmatpush1.msra.mxu0 0.0
    %1336 = vmatprep.subr.mxu0 0.0
    %1337 = vmatpush1.msra.mxu0 0.0
    %1338 = vmatprep.subr.mxu0 0.0
    %1339 = vmatpush1.msra.mxu0 0.0
    %1340 = vmatprep.subr.mxu0 0.0
    %1341 = vmatpush1.msra.mxu0 0.0
    %1342 = vmatprep.subr.mxu0 0.0
    %1343 = vmatpush1.msra.mxu0 0.0
    %1344 = vmatprep.subr.mxu0 0.0
    %1345 = vmatpush1.msra.mxu0 0.0
    %1346 = vmatprep.subr.mxu0 0.0
    %1347 = vmatpush1.msra.mxu0 0.0
    %1348 = vmatprep.subr.mxu0 0.0
    %1349 = vmatpush1.msra.mxu0 0.0
    %1350 = vmatprep.subr.mxu0 0.0
    %1351 = vmatpush1.msra.mxu0 0.0
    %1352 = vmatprep.subr.mxu0 0.0
    %1353 = vmatpush1.msra.mxu0 0.0
    %1354 = vmatprep.subr.mxu0 0.0
    %1355 = vmatpush1.msra.mxu0 0.0
    %1356 = vmatprep.subr.mxu0 0.0
    %1357 = vmatpush1.msra.mxu0 0.0
    %1358 = vmatprep.subr.mxu0 0.0
    %1359 = vmatpush1.msra.mxu0 0.0
    %1360 = vmatprep.mubr.f32.mxu0 0.0
    %1361 = vmatmul.mubr.f32.gmra.mrb[0].mxu0 %v1294
    %v1362 = vpop.f32.mrb[0].mxu0
    %v1363 = vadd.f32 0.0, %v1362
    %v1364 = vpop.f32.mrb[0].mxu0
    %1365 = vdwg.mxu0
    %v1367 = vsel %vm206, %v1287, 0
    %v1370 = vsel %vm206, %v1363, 0
    %1372 = vmatprep.subr.mxu0 0.0
    %1373 = vmatpush1.msra.mxu0 %v201
    %1374 = vmatprep.subr.mxu0 0.0
    %1375 = vmatpush1.msra.mxu0 0.0
    %1376 = vmatprep.subr.mxu0 0.0
    %1377 = vmatpush1.msra.mxu0 0.0
    %1378 = vmatprep.subr.mxu0 0.0
    %1379 = vmatpush1.msra.mxu0 0.0
    %1380 = vmatprep.subr.mxu0 0.0
    %1381 = vmatpush1.msra.mxu0 0.0
    %1382 = vmatprep.subr.mxu0 0.0
    %1383 = vmatpush1.msra.mxu0 0.0
    %1384 = vmatprep.subr.mxu0 0.0
    %1385 = vmatpush1.msra.mxu0 0.0
    %1386 = vmatprep.subr.mxu0 0.0
    %1387 = vmatpush1.msra.mxu0 0.0
    %1388 = vmatprep.subr.mxu0 0.0
    %1389 = vmatpush1.msra.mxu0 0.0
    %1390 = vmatprep.subr.mxu0 0.0
    %1391 = vmatpush1.msra.mxu0 0.0
    %1392 = vmatprep.subr.mxu0 0.0
    %1393 = vmatpush1.msra.mxu0 0.0
    %1394 = vmatprep.subr.mxu0 0.0
    %1395 = vmatpush1.msra.mxu0 0.0
    %1396 = vmatprep.subr.mxu0 0.0
    %1397 = vmatpush1.msra.mxu0 0.0
    %1398 = vmatprep.subr.mxu0 0.0
    %1399 = vmatpush1.msra.mxu0 0.0
    %1400 = vmatprep.subr.mxu0 0.0
    %1401 = vmatpush1.msra.mxu0 0.0
    %1402 = vmatprep.subr.mxu0 0.0
    %1403 = vmatpush1.msra.mxu0 0.0
    %1404 = vmatprep.subr.mxu0 0.0
    %1405 = vmatpush1.msra.mxu0 0.0
    %1406 = vmatprep.subr.mxu0 0.0
    %1407 = vmatpush1.msra.mxu0 0.0
    %1408 = vmatprep.subr.mxu0 0.0
    %1409 = vmatpush1.msra.mxu0 0.0
    %1410 = vmatprep.subr.mxu0 0.0
    %1411 = vmatpush1.msra.mxu0 0.0
    %1412 = vmatprep.subr.mxu0 0.0
    %1413 = vmatpush1.msra.mxu0 0.0
    %1414 = vmatprep.subr.mxu0 0.0
    %1415 = vmatpush1.msra.mxu0 0.0
    %1416 = vmatprep.subr.mxu0 0.0
    %1417 = vmatpush1.msra.mxu0 0.0
    %1418 = vmatprep.subr.mxu0 0.0
    %1419 = vmatpush1.msra.mxu0 0.0
    %1420 = vmatprep.subr.mxu0 0.0
    %1421 = vmatpush1.msra.mxu0 0.0
    %1422 = vmatprep.subr.mxu0 0.0
    %1423 = vmatpush1.msra.mxu0 0.0
    %1424 = vmatprep.subr.mxu0 0.0
    %1425 = vmatpush1.msra.mxu0 0.0
    %1426 = vmatprep.subr.mxu0 0.0
    %1427 = vmatpush1.msra.mxu0 0.0
    %1428 = vmatprep.subr.mxu0 0.0
    %1429 = vmatpush1.msra.mxu0 0.0
    %1430 = vmatprep.subr.mxu0 0.0
    %1431 = vmatpush1.msra.mxu0 0.0
    %1432 = vmatprep.subr.mxu0 0.0
    %1433 = vmatpush1.msra.mxu0 0.0
    %1434 = vmatprep.subr.mxu0 0.0
    %1435 = vmatpush1.msra.mxu0 0.0
    %1436 = vmatprep.mubr.f32.mxu0 0.0
    %1437 = vmatmul.mubr.f32.gmra.mrb[0].mxu0 %v1367
    %v1438 = vpop.f32.mrb[0].mxu0
    %v1439 = vadd.f32 0.0, %v1438
    %v1440 = vpop.f32.mrb[0].mxu0
    %1441 = vmatprep.mubr.f32.mxu0 0.0
    %1442 = vmatmul.mubr.f32.gmra.mrb[0].mxu0 %v1370
    %v1443 = vpop.f32.mrb[0].mxu0
    %v1444 = vadd.f32 0.0, %v1443
    %v1445 = vpop.f32.mrb[0].mxu0
    %1446 = vdwg.mxu0
    %v1447 = vadd.f32 %v1024, %v1439
    %v1448 = vadd.f32 %v1029, %v1444
    %1449 = vrot.lane.b32.xlu0 %v191, 104
    %v1450 = vpop.permute.xlu0 %1449
    %1451 = vrot.lane.b32.xlu0 %v191, 72
    %v1452 = vpop.permute.xlu0 %1451
    %v1453 = vsel %vm206, %v1450, 0
    %v1455 = vsel %vm206, %v1452, 0
    %1457 = vmatprep.subr.mxu0 0.0
    %1458 = vmatpush1.xpose.msra.mxu0 %v1455
    %1459 = vmatprep.subr.mxu0 0.0
    %1460 = vmatpush1.xpose.msra.mxu0 0.0
    %1461 = vmatprep.subr.mxu0 0.0
    %1462 = vmatpush1.xpose.msra.mxu0 0.0
    %1463 = vmatprep.subr.mxu0 0.0
    %1464 = vmatpush1.xpose.msra.mxu0 0.0
    %1465 = vmatprep.subr.mxu0 0.0
    %1466 = vmatpush1.xpose.msra.mxu0 0.0
    %1467 = vmatprep.subr.mxu0 0.0
    %1468 = vmatpush1.xpose.msra.mxu0 0.0
    %1469 = vmatprep.subr.mxu0 0.0
    %1470 = vmatpush1.xpose.msra.mxu0 0.0
    %1471 = vmatprep.subr.mxu0 0.0
    %1472 = vmatpush1.xpose.msra.mxu0 0.0
    %1473 = vmatprep.subr.mxu0 0.0
    %1474 = vmatpush1.xpose.msra.mxu0 0.0
    %1475 = vmatprep.subr.mxu0 0.0
    %1476 = vmatpush1.xpose.msra.mxu0 0.0
    %1477 = vmatprep.subr.mxu0 0.0
    %1478 = vmatpush1.xpose.msra.mxu0 0.0
    %1479 = vmatprep.subr.mxu0 0.0
    %1480 = vmatpush1.xpose.msra.mxu0 0.0
    %1481 = vmatprep.subr.mxu0 0.0
    %1482 = vmatpush1.xpose.msra.mxu0 0.0
    %1483 = vmatprep.subr.mxu0 0.0
    %1484 = vmatpush1.xpose.msra.mxu0 0.0
    %1485 = vmatprep.subr.mxu0 0.0
    %1486 = vmatpush1.xpose.msra.mxu0 0.0
    %1487 = vmatprep.subr.mxu0 0.0
    %1488 = vmatpush1.xpose.msra.mxu0 0.0
    %1489 = vmatprep.subr.mxu0 0.0
    %1490 = vmatpush1.xpose.msra.mxu0 0.0
    %1491 = vmatprep.subr.mxu0 0.0
    %1492 = vmatpush1.xpose.msra.mxu0 0.0
    %1493 = vmatprep.subr.mxu0 0.0
    %1494 = vmatpush1.xpose.msra.mxu0 0.0
    %1495 = vmatprep.subr.mxu0 0.0
    %1496 = vmatpush1.xpose.msra.mxu0 0.0
    %1497 = vmatprep.subr.mxu0 0.0
    %1498 = vmatpush1.xpose.msra.mxu0 0.0
    %1499 = vmatprep.subr.mxu0 0.0
    %1500 = vmatpush1.xpose.msra.mxu0 0.0
    %1501 = vmatprep.subr.mxu0 0.0
    %1502 = vmatpush1.xpose.msra.mxu0 0.0
    %1503 = vmatprep.subr.mxu0 0.0
    %1504 = vmatpush1.xpose.msra.mxu0 0.0
    %1505 = vmatprep.subr.mxu0 0.0
    %1506 = vmatpush1.xpose.msra.mxu0 0.0
    %1507 = vmatprep.subr.mxu0 0.0
    %1508 = vmatpush1.xpose.msra.mxu0 0.0
    %1509 = vmatprep.subr.mxu0 0.0
    %1510 = vmatpush1.xpose.msra.mxu0 0.0
    %1511 = vmatprep.subr.mxu0 0.0
    %1512 = vmatpush1.xpose.msra.mxu0 0.0
    %1513 = vmatprep.subr.mxu0 0.0
    %1514 = vmatpush1.xpose.msra.mxu0 0.0
    %1515 = vmatprep.subr.mxu0 0.0
    %1516 = vmatpush1.xpose.msra.mxu0 0.0
    %1517 = vmatprep.subr.mxu0 0.0
    %1518 = vmatpush1.xpose.msra.mxu0 0.0
    %1519 = vmatprep.subr.mxu0 0.0
    %1520 = vmatpush1.xpose.msra.mxu0 0.0
    %1521 = vmatprep.mubr.f32.mxu0 0.0
    %1522 = vmatmul.mubr.f32.gmra.mrb[0].mxu0 %v1453
    %v1523 = vpop.f32.mrb[0].mxu0
    %v1524 = vadd.f32 0.0, %v1523
    %v1525 = vpop.f32.mrb[0].mxu0
    %1526 = vdwg.mxu0
    %1527 = vrot.lane.b32.xlu0 %v196, 104
    %v1528 = vpop.permute.xlu0 %1527
    %1529 = vrot.lane.b32.xlu0 %v196, 72
    %v1530 = vpop.permute.xlu0 %1529
    %v1531 = vsel %vm206, %v1528, 0
    %v1533 = vsel %vm206, %v1530, 0
    %1535 = vmatprep.subr.mxu0 0.0
    %1536 = vmatpush1.xpose.msra.mxu0 %v1533
    %1537 = vmatprep.subr.mxu0 0.0
    %1538 = vmatpush1.xpose.msra.mxu0 0.0
    %1539 = vmatprep.subr.mxu0 0.0
    %1540 = vmatpush1.xpose.msra.mxu0 0.0
    %1541 = vmatprep.subr.mxu0 0.0
    %1542 = vmatpush1.xpose.msra.mxu0 0.0
    %1543 = vmatprep.subr.mxu0 0.0
    %1544 = vmatpush1.xpose.msra.mxu0 0.0
    %1545 = vmatprep.subr.mxu0 0.0
    %1546 = vmatpush1.xpose.msra.mxu0 0.0
    %1547 = vmatprep.subr.mxu0 0.0
    %1548 = vmatpush1.xpose.msra.mxu0 0.0
    %1549 = vmatprep.subr.mxu0 0.0
    %1550 = vmatpush1.xpose.msra.mxu0 0.0
    %1551 = vmatprep.subr.mxu0 0.0
    %1552 = vmatpush1.xpose.msra.mxu0 0.0
    %1553 = vmatprep.subr.mxu0 0.0
    %1554 = vmatpush1.xpose.msra.mxu0 0.0
    %1555 = vmatprep.subr.mxu0 0.0
    %1556 = vmatpush1.xpose.msra.mxu0 0.0
    %1557 = vmatprep.subr.mxu0 0.0
    %1558 = vmatpush1.xpose.msra.mxu0 0.0
    %1559 = vmatprep.subr.mxu0 0.0
    %1560 = vmatpush1.xpose.msra.mxu0 0.0
    %1561 = vmatprep.subr.mxu0 0.0
    %1562 = vmatpush1.xpose.msra.mxu0 0.0
    %1563 = vmatprep.subr.mxu0 0.0
    %1564 = vmatpush1.xpose.msra.mxu0 0.0
    %1565 = vmatprep.subr.mxu0 0.0
    %1566 = vmatpush1.xpose.msra.mxu0 0.0
    %1567 = vmatprep.subr.mxu0 0.0
    %1568 = vmatpush1.xpose.msra.mxu0 0.0
    %1569 = vmatprep.subr.mxu0 0.0
    %1570 = vmatpush1.xpose.msra.mxu0 0.0
    %1571 = vmatprep.subr.mxu0 0.0
    %1572 = vmatpush1.xpose.msra.mxu0 0.0
    %1573 = vmatprep.subr.mxu0 0.0
    %1574 = vmatpush1.xpose.msra.mxu0 0.0
    %1575 = vmatprep.subr.mxu0 0.0
    %1576 = vmatpush1.xpose.msra.mxu0 0.0
    %1577 = vmatprep.subr.mxu0 0.0
    %1578 = vmatpush1.xpose.msra.mxu0 0.0
    %1579 = vmatprep.subr.mxu0 0.0
    %1580 = vmatpush1.xpose.msra.mxu0 0.0
    %1581 = vmatprep.subr.mxu0 0.0
    %1582 = vmatpush1.xpose.msra.mxu0 0.0
    %1583 = vmatprep.subr.mxu0 0.0
    %1584 = vmatpush1.xpose.msra.mxu0 0.0
    %1585 = vmatprep.subr.mxu0 0.0
    %1586 = vmatpush1.xpose.msra.mxu0 0.0
    %1587 = vmatprep.subr.mxu0 0.0
    %1588 = vmatpush1.xpose.msra.mxu0 0.0
    %1589 = vmatprep.subr.mxu0 0.0
    %1590 = vmatpush1.xpose.msra.mxu0 0.0
    %1591 = vmatprep.subr.mxu0 0.0
    %1592 = vmatpush1.xpose.msra.mxu0 0.0
    %1593 = vmatprep.subr.mxu0 0.0
    %1594 = vmatpush1.xpose.msra.mxu0 0.0
    %1595 = vmatprep.subr.mxu0 0.0
    %1596 = vmatpush1.xpose.msra.mxu0 0.0
    %1597 = vmatprep.subr.mxu0 0.0
    %1598 = vmatpush1.xpose.msra.mxu0 0.0
    %1599 = vmatprep.mubr.f32.mxu0 0.0
    %1600 = vmatmul.mubr.f32.gmra.mrb[0].mxu0 %v1531
    %v1601 = vpop.f32.mrb[0].mxu0
    %v1602 = vadd.f32 0.0, %v1601
    %v1603 = vpop.f32.mrb[0].mxu0
    %1604 = vdwg.mxu0
    %v1605 = vmul.f32 %v1524, 0.35355338
    %v1606 = vmul.f32 %v1602, 0.35355338
    %v1607 = vsel %vm60, %v1605, -1e+30
    %v1608 = vsel %vm60, %v1606, -1e+30
    %v1609 = vsel %vm206, %v1607, -inf
    %1610 = vmax.xlane.f32.xlu0 %v1609
    %v1611 = vpop.xlane.xlu0 %1610
    %v1612 = vsel %vm206, %v1608, -inf
    %1613 = vmax.xlane.f32.xlu0 %v1612
    %v1614 = vpop.xlane.xlu0 %1613
    %v1615 = vsub.f32 %v1607, %v1611
    %v1616 = vsub.f32 %v1608, %v1614
    %v1617 = vmul.f32 %v1615, 1.442695
    %v1618 = vpow.pop %v1617
    %v1619 = vmul.f32 %v1616, 1.442695
    %v1620 = vpow.pop %v1619
    %v1621 = vsel %vm206, %v1618, 0.0
    %1622 = vadd.xlane.f32.xlu0 %v1621
    %v1623 = vpop.xlane.xlu0 %1622
    %v1624 = vsel %vm206, %v1620, 0.0
    %1625 = vadd.xlane.f32.xlu0 %v1624
    %v1626 = vpop.xlane.xlu0 %1625
    %v1627 = vrcp.pop %v1623
    %v1628 = vrcp.pop %v1626
    %v1629 = vmul.f32 %v1618, %v1627
    %v1630 = vmul.f32 %v1620, %v1628
    %1631 = vrot.lane.b32.xlu0 %v191, 40
    %v1632 = vpop.permute.xlu0 %1631
    %v1635 = vsel %vm206, %v1629, 0
    %1637 = vmatprep.subr.mxu0 0.0
    %1638 = vmatpush1.msra.mxu0 %v1632
    %1639 = vmatprep.subr.mxu0 0.0
    %1640 = vmatpush1.msra.mxu0 0.0
    %1641 = vmatprep.subr.mxu0 0.0
    %1642 = vmatpush1.msra.mxu0 0.0
    %1643 = vmatprep.subr.mxu0 0.0
    %1644 = vmatpush1.msra.mxu0 0.0
    %1645 = vmatprep.subr.mxu0 0.0
    %1646 = vmatpush1.msra.mxu0 0.0
    %1647 = vmatprep.subr.mxu0 0.0
    %1648 = vmatpush1.msra.mxu0 0.0
    %1649 = vmatprep.subr.mxu0 0.0
    %1650 = vmatpush1.msra.mxu0 0.0
    %1651 = vmatprep.subr.mxu0 0.0
    %1652 = vmatpush1.msra.mxu0 0.0
    %1653 = vmatprep.subr.mxu0 0.0
    %1654 = vmatpush1.msra.mxu0 0.0
    %1655 = vmatprep.subr.mxu0 0.0
    %1656 = vmatpush1.msra.mxu0 0.0
    %1657 = vmatprep.subr.mxu0 0.0
    %1658 = vmatpush1.msra.mxu0 0.0
    %1659 = vmatprep.subr.mxu0 0.0
    %1660 = vmatpush1.msra.mxu0 0.0
    %1661 = vmatprep.subr.mxu0 0.0
    %1662 = vmatpush1.msra.mxu0 0.0
    %1663 = vmatprep.subr.mxu0 0.0
    %1664 = vmatpush1.msra.mxu0 0.0
    %1665 = vmatprep.subr.mxu0 0.0
    %1666 = vmatpush1.msra.mxu0 0.0
    %1667 = vmatprep.subr.mxu0 0.0
    %1668 = vmatpush1.msra.mxu0 0.0
    %1669 = vmatprep.subr.mxu0 0.0
    %1670 = vmatpush1.msra.mxu0 0.0
    %1671 = vmatprep.subr.mxu0 0.0
    %1672 = vmatpush1.msra.mxu0 0.0
    %1673 = vmatprep.subr.mxu0 0.0
    %1674 = vmatpush1.msra.mxu0 0.0
    %1675 = vmatprep.subr.mxu0 0.0
    %1676 = vmatpush1.msra.mxu0 0.0
    %1677 = vmatprep.subr.mxu0 0.0
    %1678 = vmatpush1.msra.mxu0 0.0
    %1679 = vmatprep.subr.mxu0 0.0
    %1680 = vmatpush1.msra.mxu0 0.0
    %1681 = vmatprep.subr.mxu0 0.0
    %1682 = vmatpush1.msra.mxu0 0.0
    %1683 = vmatprep.subr.mxu0 0.0
    %1684 = vmatpush1.msra.mxu0 0.0
    %1685 = vmatprep.subr.mxu0 0.0
    %1686 = vmatpush1.msra.mxu0 0.0
    %1687 = vmatprep.subr.mxu0 0.0
    %1688 = vmatpush1.msra.mxu0 0.0
    %1689 = vmatprep.subr.mxu0 0.0
    %1690 = vmatpush1.msra.mxu0 0.0
    %1691 = vmatprep.subr.mxu0 0.0
    %1692 = vmatpush1.msra.mxu0 0.0
    %1693 = vmatprep.subr.mxu0 0.0
    %1694 = vmatpush1.msra.mxu0 0.0
    %1695 = vmatprep.subr.mxu0 0.0
    %1696 = vmatpush1.msra.mxu0 0.0
    %1697 = vmatprep.subr.mxu0 0.0
    %1698 = vmatpush1.msra.mxu0 0.0
    %1699 = vmatprep.subr.mxu0 0.0
    %1700 = vmatpush1.msra.mxu0 0.0
    %1701 = vmatprep.mubr.f32.mxu0 0.0
    %1702 = vmatmul.mubr.f32.gmra.mrb[0].mxu0 %v1635
    %v1703 = vpop.f32.mrb[0].mxu0
    %v1704 = vadd.f32 0.0, %v1703
    %v1705 = vpop.f32.mrb[0].mxu0
    %1706 = vdwg.mxu0
    %1707 = vrot.lane.b32.xlu0 %v196, 40
    %v1708 = vpop.permute.xlu0 %1707
    %v1711 = vsel %vm206, %v1630, 0
    %1713 = vmatprep.subr.mxu0 0.0
    %1714 = vmatpush1.msra.mxu0 %v1708
    %1715 = vmatprep.subr.mxu0 0.0
    %1716 = vmatpush1.msra.mxu0 0.0
    %1717 = vmatprep.subr.mxu0 0.0
    %1718 = vmatpush1.msra.mxu0 0.0
    %1719 = vmatprep.subr.mxu0 0.0
    %1720 = vmatpush1.msra.mxu0 0.0
    %1721 = vmatprep.subr.mxu0 0.0
    %1722 = vmatpush1.msra.mxu0 0.0
    %1723 = vmatprep.subr.mxu0 0.0
    %1724 = vmatpush1.msra.mxu0 0.0
    %1725 = vmatprep.subr.mxu0 0.0
    %1726 = vmatpush1.msra.mxu0 0.0
    %1727 = vmatprep.subr.mxu0 0.0
    %1728 = vmatpush1.msra.mxu0 0.0
    %1729 = vmatprep.subr.mxu0 0.0
    %1730 = vmatpush1.msra.mxu0 0.0
    %1731 = vmatprep.subr.mxu0 0.0
    %1732 = vmatpush1.msra.mxu0 0.0
    %1733 = vmatprep.subr.mxu0 0.0
    %1734 = vmatpush1.msra.mxu0 0.0
    %1735 = vmatprep.subr.mxu0 0.0
    %1736 = vmatpush1.msra.mxu0 0.0
    %1737 = vmatprep.subr.mxu0 0.0
    %1738 = vmatpush1.msra.mxu0 0.0
    %1739 = vmatprep.subr.mxu0 0.0
    %1740 = vmatpush1.msra.mxu0 0.0
    %1741 = vmatprep.subr.mxu0 0.0
    %1742 = vmatpush1.msra.mxu0 0.0
    %1743 = vmatprep.subr.mxu0 0.0
    %1744 = vmatpush1.msra.mxu0 0.0
    %1745 = vmatprep.subr.mxu0 0.0
    %1746 = vmatpush1.msra.mxu0 0.0
    %1747 = vmatprep.subr.mxu0 0.0
    %1748 = vmatpush1.msra.mxu0 0.0
    %1749 = vmatprep.subr.mxu0 0.0
    %1750 = vmatpush1.msra.mxu0 0.0
    %1751 = vmatprep.subr.mxu0 0.0
    %1752 = vmatpush1.msra.mxu0 0.0
    %1753 = vmatprep.subr.mxu0 0.0
    %1754 = vmatpush1.msra.mxu0 0.0
    %1755 = vmatprep.subr.mxu0 0.0
    %1756 = vmatpush1.msra.mxu0 0.0
    %1757 = vmatprep.subr.mxu0 0.0
    %1758 = vmatpush1.msra.mxu0 0.0
    %1759 = vmatprep.subr.mxu0 0.0
    %1760 = vmatpush1.msra.mxu0 0.0
    %1761 = vmatprep.subr.mxu0 0.0
    %1762 = vmatpush1.msra.mxu0 0.0
    %1763 = vmatprep.subr.mxu0 0.0
    %1764 = vmatpush1.msra.mxu0 0.0
    %1765 = vmatprep.subr.mxu0 0.0
    %1766 = vmatpush1.msra.mxu0 0.0
    %1767 = vmatprep.subr.mxu0 0.0
    %1768 = vmatpush1.msra.mxu0 0.0
    %1769 = vmatprep.subr.mxu0 0.0
    %1770 = vmatpush1.msra.mxu0 0.0
    %1771 = vmatprep.subr.mxu0 0.0
    %1772 = vmatpush1.msra.mxu0 0.0
    %1773 = vmatprep.subr.mxu0 0.0
    %1774 = vmatpush1.msra.mxu0 0.0
    %1775 = vmatprep.subr.mxu0 0.0
    %1776 = vmatpush1.msra.mxu0 0.0
    %1777 = vmatprep.mubr.f32.mxu0 0.0
    %1778 = vmatmul.mubr.f32.gmra.mrb[0].mxu0 %v1711
    %v1779 = vpop.f32.mrb[0].mxu0
    %v1780 = vadd.f32 0.0, %v1779
    %v1781 = vpop.f32.mrb[0].mxu0
    %1782 = vdwg.mxu0
    %v1784 = vsel %vm206, %v1704, 0
    %v1787 = vsel %vm206, %v1780, 0
    %1789 = vmatprep.subr.mxu0 0.0
    %1790 = vmatpush1.msra.mxu0 %v202
    %1791 = vmatprep.subr.mxu0 0.0
    %1792 = vmatpush1.msra.mxu0 0.0
    %1793 = vmatprep.subr.mxu0 0.0
    %1794 = vmatpush1.msra.mxu0 0.0
    %1795 = vmatprep.subr.mxu0 0.0
    %1796 = vmatpush1.msra.mxu0 0.0
    %1797 = vmatprep.subr.mxu0 0.0
    %1798 = vmatpush1.msra.mxu0 0.0
    %1799 = vmatprep.subr.mxu0 0.0
    %1800 = vmatpush1.msra.mxu0 0.0
    %1801 = vmatprep.subr.mxu0 0.0
    %1802 = vmatpush1.msra.mxu0 0.0
    %1803 = vmatprep.subr.mxu0 0.0
    %1804 = vmatpush1.msra.mxu0 0.0
    %1805 = vmatprep.subr.mxu0 0.0
    %1806 = vmatpush1.msra.mxu0 0.0
    %1807 = vmatprep.subr.mxu0 0.0
    %1808 = vmatpush1.msra.mxu0 0.0
    %1809 = vmatprep.subr.mxu0 0.0
    %1810 = vmatpush1.msra.mxu0 0.0
    %1811 = vmatprep.subr.mxu0 0.0
    %1812 = vmatpush1.msra.mxu0 0.0
    %1813 = vmatprep.subr.mxu0 0.0
    %1814 = vmatpush1.msra.mxu0 0.0
    %1815 = vmatprep.subr.mxu0 0.0
    %1816 = vmatpush1.msra.mxu0 0.0
    %1817 = vmatprep.subr.mxu0 0.0
    %1818 = vmatpush1.msra.mxu0 0.0
    %1819 = vmatprep.subr.mxu0 0.0
    %1820 = vmatpush1.msra.mxu0 0.0
    %1821 = vmatprep.subr.mxu0 0.0
    %1822 = vmatpush1.msra.mxu0 0.0
    %1823 = vmatprep.subr.mxu0 0.0
    %1824 = vmatpush1.msra.mxu0 0.0
    %1825 = vmatprep.subr.mxu0 0.0
    %1826 = vmatpush1.msra.mxu0 0.0
    %1827 = vmatprep.subr.mxu0 0.0
    %1828 = vmatpush1.msra.mxu0 0.0
    %1829 = vmatprep.subr.mxu0 0.0
    %1830 = vmatpush1.msra.mxu0 0.0
    %1831 = vmatprep.subr.mxu0 0.0
    %1832 = vmatpush1.msra.mxu0 0.0
    %1833 = vmatprep.subr.mxu0 0.0
    %1834 = vmatpush1.msra.mxu0 0.0
    %1835 = vmatprep.subr.mxu0 0.0
    %1836 = vmatpush1.msra.mxu0 0.0
    %1837 = vmatprep.subr.mxu0 0.0
    %1838 = vmatpush1.msra.mxu0 0.0
    %1839 = vmatprep.subr.mxu0 0.0
    %1840 = vmatpush1.msra.mxu0 0.0
    %1841 = vmatprep.subr.mxu0 0.0
    %1842 = vmatpush1.msra.mxu0 0.0
    %1843 = vmatprep.subr.mxu0 0.0
    %1844 = vmatpush1.msra.mxu0 0.0
    %1845 = vmatprep.subr.mxu0 0.0
    %1846 = vmatpush1.msra.mxu0 0.0
    %1847 = vmatprep.subr.mxu0 0.0
    %1848 = vmatpush1.msra.mxu0 0.0
    %1849 = vmatprep.subr.mxu0 0.0
    %1850 = vmatpush1.msra.mxu0 0.0
    %1851 = vmatprep.subr.mxu0 0.0
    %1852 = vmatpush1.msra.mxu0 0.0
    %1853 = vmatprep.mubr.f32.mxu0 0.0
    %1854 = vmatmul.mubr.f32.gmra.mrb[0].mxu0 %v1784
    %v1855 = vpop.f32.mrb[0].mxu0
    %v1856 = vadd.f32 0.0, %v1855
    %v1857 = vpop.f32.mrb[0].mxu0
    %1858 = vmatprep.mubr.f32.mxu0 0.0
    %1859 = vmatmul.mubr.f32.gmra.mrb[0].mxu0 %v1787
    %v1860 = vpop.f32.mrb[0].mxu0
    %v1861 = vadd.f32 0.0, %v1860
    %v1862 = vpop.f32.mrb[0].mxu0
    %1863 = vdwg.mxu0
    %v1864 = vadd.f32 %v1447, %v1856
    %v1865 = vadd.f32 %v1448, %v1861
    %v1866 = vadd.f32 %v54, %v1864
    %v1867 = vadd.f32 %v55, %v1865
    %v1868 = vld [vmem:[%s6] sm:$0x1]
    %v1870 = vlaneseq
    %v1871 = vshrl.u32 %v1870, 7
    %v1872 = vsub.s32 0, %v1871
    %v1873 = vrot.slane %v1868, %v1872
    %v1875 = vadd.f32 %v1866, %v1873
    %v1876 = vadd.f32 %v1867, %v1873
    %v1877 = vld [vmem:[%s7] sm:$0x1]
    %v1878 = vld [vmem:[%s8] sm:$0x1]
    %v1879 = vsel %vm63, %v1875, 0.0
    %1880 = vadd.xlane.f32.xlu0 %v1879
    %v1881 = vpop.xlane.xlu0 %1880
    %v1882 = vsel %vm63, %v1876, 0.0
    %1883 = vadd.xlane.f32.xlu0 %v1882
    %v1884 = vpop.xlane.xlu0 %1883
    %v1885 = vmul.f32 %v1881, %v70
    %v1886 = vmul.f32 %v1884, %v70
    %v1887 = vsub.f32 %v1875, %v1885
    %v1888 = vsub.f32 %v1876, %v1886
    %v1889 = vmul.f32 %v1887, %v1887
    %v1890 = vmul.f32 %v1888, %v1888
    %v1891 = vsel %vm63, %v1889, 0.0
    %1892 = vadd.xlane.f32.xlu0 %v1891
    %v1893 = vpop.xlane.xlu0 %1892
    %v1894 = vsel %vm63, %v1890, 0.0
    %1895 = vadd.xlane.f32.xlu0 %v1894
    %v1896 = vpop.xlane.xlu0 %1895
    %v1897 = vmul.f32 %v1893, %v70
    %v1898 = vmul.f32 %v1896, %v70
    %v1899 = vadd.f32 %v1897, 1e-05
    %v1900 = vadd.f32 %v1898, 1e-05
    %v1901 = vrsqrt.pop %v1899
    %v1902 = vrsqrt.pop %v1900
    %v1903 = vmul.f32 %v1887, %v1901
    %v1904 = vmul.f32 %v1888, %v1902
    %v1906 = vlaneseq
    %v1907 = vshrl.u32 %v1906, 7
    %v1908 = vsub.s32 0, %v1907
    %v1909 = vrot.slane %v1877, %v1908
    %v1911 = vmul.f32 %v1903, %v1909
    %v1912 = vmul.f32 %v1904, %v1909
    %v1914 = vlaneseq
    %v1915 = vshrl.u32 %v1914, 7
    %v1916 = vsub.s32 0, %v1915
    %v1917 = vrot.slane %v1878, %v1916
    %v1919 = vadd.f32 %v1911, %v1917
    %v1920 = vadd.f32 %v1912, %v1917
    %v1921 = vld [vmem:[%s9] sm:$0xff]
    %v1922 = vld [vmem:[%s9 + $0x8] sm:$0xff]
    %v1923 = vld [vmem:[%s9 + $0x10] sm:$0xff]
    %v1924 = vld [vmem:[%s9 + $0x18] sm:$0xff]
    %v1925 = vld [vmem:[%s10] sm:$0x1]
    %v1927 = vlaneseq
    %v1928 = vshrl.u32 %v1927, 7
    %v1929 = vsub.s32 0, %v1928
    %v1930 = vrot.slane %v1925, %v1929
    %v1933 = vsel %vm63, %v1919, 0
    %v1936 = vsel %vm63, %v1920, 0
    %1938 = vmatprep.subr.mxu0 0.0
    %1939 = vmatpush1.msra.mxu0 %v1921
    %1940 = vmatprep.subr.mxu0 0.0
    %1941 = vmatpush1.msra.mxu0 %v1922
    %1942 = vmatprep.subr.mxu0 0.0
    %1943 = vmatpush1.msra.mxu0 %v1923
    %1944 = vmatprep.subr.mxu0 0.0
    %1945 = vmatpush1.msra.mxu0 %v1924
    %1946 = vmatprep.subr.mxu0 0.0
    %1947 = vmatpush1.msra.mxu0 0.0
    %1948 = vmatprep.subr.mxu0 0.0
    %1949 = vmatpush1.msra.mxu0 0.0
    %1950 = vmatprep.subr.mxu0 0.0
    %1951 = vmatpush1.msra.mxu0 0.0
    %1952 = vmatprep.subr.mxu0 0.0
    %1953 = vmatpush1.msra.mxu0 0.0
    %1954 = vmatprep.subr.mxu0 0.0
    %1955 = vmatpush1.msra.mxu0 0.0
    %1956 = vmatprep.subr.mxu0 0.0
    %1957 = vmatpush1.msra.mxu0 0.0
    %1958 = vmatprep.subr.mxu0 0.0
    %1959 = vmatpush1.msra.mxu0 0.0
    %1960 = vmatprep.subr.mxu0 0.0
    %1961 = vmatpush1.msra.mxu0 0.0
    %1962 = vmatprep.subr.mxu0 0.0
    %1963 = vmatpush1.msra.mxu0 0.0
    %1964 = vmatprep.subr.mxu0 0.0
    %1965 = vmatpush1.msra.mxu0 0.0
    %1966 = vmatprep.subr.mxu0 0.0
    %1967 = vmatpush1.msra.mxu0 0.0
    %1968 = vmatprep.subr.mxu0 0.0
    %1969 = vmatpush1.msra.mxu0 0.0
    %1970 = vmatprep.subr.mxu0 0.0
    %1971 = vmatpush1.msra.mxu0 0.0
    %1972 = vmatprep.subr.mxu0 0.0
    %1973 = vmatpush1.msra.mxu0 0.0
    %1974 = vmatprep.subr.mxu0 0.0
    %1975 = vmatpush1.msra.mxu0 0.0
    %1976 = vmatprep.subr.mxu0 0.0
    %1977 = vmatpush1.msra.mxu0 0.0
    %1978 = vmatprep.subr.mxu0 0.0
    %1979 = vmatpush1.msra.mxu0 0.0
    %1980 = vmatprep.subr.mxu0 0.0
    %1981 = vmatpush1.msra.mxu0 0.0
    %1982 = vmatprep.subr.mxu0 0.0
    %1983 = vmatpush1.msra.mxu0 0.0
    %1984 = vmatprep.subr.mxu0 0.0
    %1985 = vmatpush1.msra.mxu0 0.0
    %1986 = vmatprep.subr.mxu0 0.0
    %1987 = vmatpush1.msra.mxu0 0.0
    %1988 = vmatprep.subr.mxu0 0.0
    %1989 = vmatpush1.msra.mxu0 0.0
    %1990 = vmatprep.subr.mxu0 0.0
    %1991 = vmatpush1.msra.mxu0 0.0
    %1992 = vmatprep.subr.mxu0 0.0
    %1993 = vmatpush1.msra.mxu0 0.0
    %1994 = vmatprep.subr.mxu0 0.0
    %1995 = vmatpush1.msra.mxu0 0.0
    %1996 = vmatprep.subr.mxu0 0.0
    %1997 = vmatpush1.msra.mxu0 0.0
    %1998 = vmatprep.subr.mxu0 0.0
    %1999 = vmatpush1.msra.mxu0 0.0
    %2000 = vmatprep.subr.mxu0 0.0
    %2001 = vmatpush1.msra.mxu0 0.0
    %2002 = vmatprep.mubr.f32.mxu0 0.0
    %2003 = vmatmul.mubr.f32.gmra.mrb[0].mxu0 %v1933
    %v2004 = vpop.f32.mrb[0].mxu0
    %v2005 = vadd.f32 %v1930, %v2004
    %v2006 = vpop.f32.mrb[0].mxu0
    %2007 = vmatprep.mubr.f32.mxu0 0.0
    %2008 = vmatmul.mubr.f32.gmra.mrb[0].mxu0 %v1936
    %v2009 = vpop.f32.mrb[0].mxu0
    %v2010 = vadd.f32 %v1930, %v2009
    %v2011 = vpop.f32.mrb[0].mxu0
    %2012 = vdwg.mxu0
    %v2013 = vmul.f32 %v2005, 0.5
    %v2014 = vmul.f32 %v2010, 0.5
    %v2015 = vmul.f32 %v2005, %v2005
    %v2016 = vmul.f32 %v2010, %v2010
    %v2017 = vmul.f32 %v2005, %v2015
    %v2018 = vmul.f32 %v2010, %v2016
    %v2019 = vmul.f32 %v2017, 0.044715
    %v2020 = vmul.f32 %v2018, 0.044715
    %v2021 = vadd.f32 %v2005, %v2019
    %v2022 = vadd.f32 %v2010, %v2020
    %v2023 = vmul.f32 %v2021, 0.7978846
    %v2024 = vmul.f32 %v2022, 0.7978846
    %v2025 = vtanh.pop %v2023
    %v2026 = vtanh.pop %v2024
    %v2027 = vadd.f32 %v2025, 1.0
    %v2028 = vadd.f32 %v2026, 1.0
    %v2029 = vmul.f32 %v2013, %v2027
    %v2030 = vmul.f32 %v2014, %v2028
    %v2031 = vld [vmem:[%s11] sm:$0xff]
    %v2032 = vld [vmem:[%s11 + $0x8] sm:$0xff]
    %v2033 = vld [vmem:[%s11 + $0x10] sm:$0xff]
    %v2034 = vld [vmem:[%s11 + $0x18] sm:$0xff]
    %v2035 = vld [vmem:[%s11 + $0x20] sm:$0xff]
    %v2036 = vld [vmem:[%s11 + $0x28] sm:$0xff]
    %v2037 = vld [vmem:[%s11 + $0x30] sm:$0xff]
    %v2038 = vld [vmem:[%s11 + $0x38] sm:$0xff]
    %v2039 = vld [vmem:[%s11 + $0x40] sm:$0xff]
    %v2040 = vld [vmem:[%s11 + $0x48] sm:$0xff]
    %v2041 = vld [vmem:[%s11 + $0x50] sm:$0xff]
    %v2042 = vld [vmem:[%s11 + $0x58] sm:$0xff]
    %v2043 = vld [vmem:[%s11 + $0x60] sm:$0xff]
    %v2044 = vld [vmem:[%s11 + $0x68] sm:$0xff]
    %v2045 = vld [vmem:[%s11 + $0x70] sm:$0xff]
    %v2046 = vld [vmem:[%s11 + $0x78] sm:$0xff]
    %2047 = vmatprep.subr.mxu0 0.0
    %2048 = vmatpush1.msra.mxu0 %v2031
    %2049 = vmatprep.subr.mxu0 0.0
    %2050 = vmatpush1.msra.mxu0 %v2032
    %2051 = vmatprep.subr.mxu0 0.0
    %2052 = vmatpush1.msra.mxu0 %v2033
    %2053 = vmatprep.subr.mxu0 0.0
    %2054 = vmatpush1.msra.mxu0 %v2034
    %2055 = vmatprep.subr.mxu0 0.0
    %2056 = vmatpush1.msra.mxu0 %v2035
    %2057 = vmatprep.subr.mxu0 0.0
    %2058 = vmatpush1.msra.mxu0 %v2036
    %2059 = vmatprep.subr.mxu0 0.0
    %2060 = vmatpush1.msra.mxu0 %v2037
    %2061 = vmatprep.subr.mxu0 0.0
    %2062 = vmatpush1.msra.mxu0 %v2038
    %2063 = vmatprep.subr.mxu0 0.0
    %2064 = vmatpush1.msra.mxu0 %v2039
    %2065 = vmatprep.subr.mxu0 0.0
    %2066 = vmatpush1.msra.mxu0 %v2040
    %2067 = vmatprep.subr.mxu0 0.0
    %2068 = vmatpush1.msra.mxu0 %v2041
    %2069 = vmatprep.subr.mxu0 0.0
    %2070 = vmatpush1.msra.mxu0 %v2042
    %2071 = vmatprep.subr.mxu0 0.0
    %2072 = vmatpush1.msra.mxu0 %v2043
    %2073 = vmatprep.subr.mxu0 0.0
    %2074 = vmatpush1.msra.mxu0 %v2044
    %2075 = vmatprep.subr.mxu0 0.0
    %2076 = vmatpush1.msra.mxu0 %v2045
    %2077 = vmatprep.subr.mxu0 0.0
    %2078 = vmatpush1.msra.mxu0 %v2046
    %2079 = vmatprep.subr.mxu0 0.0
    %2080 = vmatpush1.msra.mxu0 0.0
    %2081 = vmatprep.subr.mxu0 0.0
    %2082 = vmatpush1.msra.mxu0 0.0
    %2083 = vmatprep.subr.mxu0 0.0
    %2084 = vmatpush1.msra.mxu0 0.0
    %2085 = vmatprep.subr.mxu0 0.0
    %2086 = vmatpush1.msra.mxu0 0.0
    %2087 = vmatprep.subr.mxu0 0.0
    %2088 = vmatpush1.msra.mxu0 0.0
    %2089 = vmatprep.subr.mxu0 0.0
    %2090 = vmatpush1.msra.mxu0 0.0
    %2091 = vmatprep.subr.mxu0 0.0
    %2092 = vmatpush1.msra.mxu0 0.0
    %2093 = vmatprep.subr.mxu0 0.0
    %2094 = vmatpush1.msra.mxu0 0.0
    %2095 = vmatprep.subr.mxu0 0.0
    %2096 = vmatpush1.msra.mxu0 0.0
    %2097 = vmatprep.subr.mxu0 0.0
    %2098 = vmatpush1.msra.mxu0 0.0
    %2099 = vmatprep.subr.mxu0 0.0
    %2100 = vmatpush1.msra.mxu0 0.0
    %2101 = vmatprep.subr.mxu0 0.0
    %2102 = vmatpush1.msra.mxu0 0.0
    %2103 = vmatprep.subr.mxu0 0.0
    %2104 = vmatpush1.msra.mxu0 0.0
    %2105 = vmatprep.subr.mxu0 0.0
    %2106 = vmatpush1.msra.mxu0 0.0
    %2107 = vmatprep.subr.mxu0 0.0
    %2108 = vmatpush1.msra.mxu0 0.0
    %2109 = vmatprep.subr.mxu0 0.0
    %2110 = vmatpush1.msra.mxu0 0.0
    %2111 = vmatprep.mubr.f32.mxu0 0.0
    %2112 = vmatmul.mubr.f32.gmra.mrb[0].mxu0 %v2029
    %v2113 = vpop.f32.mrb[0].mxu0
    %v2114 = vadd.f32 0.0, %v2113
    %v2115 = vpop.f32.mrb[0].mxu0
    %2116 = vmatprep.mubr.f32.mxu0 0.0
    %2117 = vmatmul.mubr.f32.gmra.mrb[0].mxu0 %v2030
    %v2118 = vpop.f32.mrb[0].mxu0
    %v2119 = vadd.f32 0.0, %v2118
    %v2120 = vpop.f32.mrb[0].mxu0
    %2121 = vdwg.mxu0
    %v2122 = vadd.f32 %v1875, %v2114
    %v2123 = vadd.f32 %v1876, %v2119
    %v2124 = vld [vmem:[%s12] sm:$0x1]
    %v2126 = vlaneseq
    %v2127 = vshrl.u32 %v2126, 7
    %v2128 = vsub.s32 0, %v2127
    %v2129 = vrot.slane %v2124, %v2128
    %v2131 = vadd.f32 %v2122, %v2129
    %v2132 = vadd.f32 %v2123, %v2129
    %s2133 = scalar_lea.vmem %s1, 1
    %v2134 = vld [vmem:[%s2133] sm:$0x1]
    %s2135 = scalar_lea.vmem %s2, 1
    %v2136 = vld [vmem:[%s2135] sm:$0x1]
    %v2137 = vsel %vm63, %v2131, 0.0
    %2138 = vadd.xlane.f32.xlu0 %v2137
    %v2139 = vpop.xlane.xlu0 %2138
    %v2140 = vsel %vm63, %v2132, 0.0
    %2141 = vadd.xlane.f32.xlu0 %v2140
    %v2142 = vpop.xlane.xlu0 %2141
    %v2143 = vmul.f32 %v2139, %v70
    %v2144 = vmul.f32 %v2142, %v70
    %v2145 = vsub.f32 %v2131, %v2143
    %v2146 = vsub.f32 %v2132, %v2144
    %v2147 = vmul.f32 %v2145, %v2145
    %v2148 = vmul.f32 %v2146, %v2146
    %v2149 = vsel %vm63, %v2147, 0.0
    %2150 = vadd.xlane.f32.xlu0 %v2149
    %v2151 = vpop.xlane.xlu0 %2150
    %v2152 = vsel %vm63, %v2148, 0.0
    %2153 = vadd.xlane.f32.xlu0 %v2152
    %v2154 = vpop.xlane.xlu0 %2153
    %v2155 = vmul.f32 %v2151, %v70
    %v2156 = vmul.f32 %v2154, %v70
    %v2157 = vadd.f32 %v2155, 1e-05
    %v2158 = vadd.f32 %v2156, 1e-05
    %v2159 = vrsqrt.pop %v2157
    %v2160 = vrsqrt.pop %v2158
    %v2161 = vmul.f32 %v2145, %v2159
    %v2162 = vmul.f32 %v2146, %v2160
    %v2164 = vlaneseq
    %v2165 = vshrl.u32 %v2164, 7
    %v2166 = vsub.s32 0, %v2165
    %v2167 = vrot.slane %v2134, %v2166
    %v2169 = vmul.f32 %v2161, %v2167
    %v2170 = vmul.f32 %v2162, %v2167
    %v2172 = vlaneseq
    %v2173 = vshrl.u32 %v2172, 7
    %v2174 = vsub.s32 0, %v2173
    %v2175 = vrot.slane %v2136, %v2174
    %v2177 = vadd.f32 %v2169, %v2175
    %v2178 = vadd.f32 %v2170, %v2175
    %s2179 = scalar_lea.vmem %s3, 32
    %v2180 = vld [vmem:[%s2179] sm:$0xff]
    %v2181 = vld [vmem:[%s2179 + $0x8] sm:$0xff]
    %v2182 = vld [vmem:[%s2179 + $0x10] sm:$0xff]
    %v2183 = vld [vmem:[%s2179 + $0x18] sm:$0xff]
    %s2184 = scalar_lea.vmem %s4, 1
    %v2185 = vld [vmem:[%s2184] sm:$0x1]
    %v2187 = vlaneseq
    %v2188 = vshrl.u32 %v2187, 7
    %v2189 = vsub.s32 0, %v2188
    %v2190 = vrot.slane %v2185, %v2189
    %v2193 = vsel %vm63, %v2177, 0
    %v2196 = vsel %vm63, %v2178, 0
    %2198 = vmatprep.subr.mxu0 0.0
    %2199 = vmatpush1.msra.mxu0 %v2180
    %2200 = vmatprep.subr.mxu0 0.0
    %2201 = vmatpush1.msra.mxu0 %v2181
    %2202 = vmatprep.subr.mxu0 0.0
    %2203 = vmatpush1.msra.mxu0 %v2182
    %2204 = vmatprep.subr.mxu0 0.0
    %2205 = vmatpush1.msra.mxu0 %v2183
    %2206 = vmatprep.subr.mxu0 0.0
    %2207 = vmatpush1.msra.mxu0 0.0
    %2208 = vmatprep.subr.mxu0 0.0
    %2209 = vmatpush1.msra.mxu0 0.0
    %2210 = vmatprep.subr.mxu0 0.0
    %2211 = vmatpush1.msra.mxu0 0.0
    %2212 = vmatprep.subr.mxu0 0.0
    %2213 = vmatpush1.msra.mxu0 0.0
    %2214 = vmatprep.subr.mxu0 0.0
    %2215 = vmatpush1.msra.mxu0 0.0
    %2216 = vmatprep.subr.mxu0 0.0
    %2217 = vmatpush1.msra.mxu0 0.0
    %2218 = vmatprep.subr.mxu0 0.0
    %2219 = vmatpush1.msra.mxu0 0.0
    %2220 = vmatprep.subr.mxu0 0.0
    %2221 = vmatpush1.msra.mxu0 0.0
    %2222 = vmatprep.subr.mxu0 0.0
    %2223 = vmatpush1.msra.mxu0 0.0
    %2224 = vmatprep.subr.mxu0 0.0
    %2225 = vmatpush1.msra.mxu0 0.0
    %2226 = vmatprep.subr.mxu0 0.0
    %2227 = vmatpush1.msra.mxu0 0.0
    %2228 = vmatprep.subr.mxu0 0.0
    %2229 = vmatpush1.msra.mxu0 0.0
    %2230 = vmatprep.subr.mxu0 0.0
    %2231 = vmatpush1.msra.mxu0 0.0
    %2232 = vmatprep.subr.mxu0 0.0
    %2233 = vmatpush1.msra.mxu0 0.0
    %2234 = vmatprep.subr.mxu0 0.0
    %2235 = vmatpush1.msra.mxu0 0.0
    %2236 = vmatprep.subr.mxu0 0.0
    %2237 = vmatpush1.msra.mxu0 0.0
    %2238 = vmatprep.subr.mxu0 0.0
    %2239 = vmatpush1.msra.mxu0 0.0
    %2240 = vmatprep.subr.mxu0 0.0
    %2241 = vmatpush1.msra.mxu0 0.0
    %2242 = vmatprep.subr.mxu0 0.0
    %2243 = vmatpush1.msra.mxu0 0.0
    %2244 = vmatprep.subr.mxu0 0.0
    %2245 = vmatpush1.msra.mxu0 0.0
    %2246 = vmatprep.subr.mxu0 0.0
    %2247 = vmatpush1.msra.mxu0 0.0
    %2248 = vmatprep.subr.mxu0 0.0
    %2249 = vmatpush1.msra.mxu0 0.0
    %2250 = vmatprep.subr.mxu0 0.0
    %2251 = vmatpush1.msra.mxu0 0.0
    %2252 = vmatprep.subr.mxu0 0.0
    %2253 = vmatpush1.msra.mxu0 0.0
    %2254 = vmatprep.subr.mxu0 0.0
    %2255 = vmatpush1.msra.mxu0 0.0
    %2256 = vmatprep.subr.mxu0 0.0
    %2257 = vmatpush1.msra.mxu0 0.0
    %2258 = vmatprep.subr.mxu0 0.0
    %2259 = vmatpush1.msra.mxu0 0.0
    %2260 = vmatprep.subr.mxu0 0.0
    %2261 = vmatpush1.msra.mxu0 0.0
    %2262 = vmatprep.mubr.f32.mxu0 0.0
    %2263 = vmatmul.mubr.f32.gmra.mrb[0].mxu0 %v2193
    %v2264 = vpop.f32.mrb[0].mxu0
    %v2265 = vadd.f32 %v2190, %v2264
    %v2266 = vpop.f32.mrb[0].mxu0
    %2267 = vmatprep.mubr.f32.mxu0 0.0
    %2268 = vmatmul.mubr.f32.gmra.mrb[0].mxu0 %v2196
    %v2269 = vpop.f32.mrb[0].mxu0
    %v2270 = vadd.f32 %v2190, %v2269
    %v2271 = vpop.f32.mrb[0].mxu0
    %2272 = vdwg.mxu0
    %s2273 = scalar_lea.vmem %s5, 32
    %v2274 = vld [vmem:[%s2273] sm:$0xff]
    %v2275 = vld [vmem:[%s2273 + $0x8] sm:$0xff]
    %v2276 = vld [vmem:[%s2273 + $0x10] sm:$0xff]
    %v2277 = vld [vmem:[%s2273 + $0x18] sm:$0xff]
    %2279 = vrot.lane.b32.xlu0 %v2265, 96
    %v2280 = vpop.permute.xlu0 %2279
    %v2281 = vsel %vm206, %v2265, 0
    %v2283 = vsel %vm206, %v2280, 0
    %2285 = vmatprep.subr.mxu0 0.0
    %2286 = vmatpush1.xpose.msra.mxu0 %v2283
    %2287 = vmatprep.subr.mxu0 0.0
    %2288 = vmatpush1.xpose.msra.mxu0 0.0
    %2289 = vmatprep.subr.mxu0 0.0
    %2290 = vmatpush1.xpose.msra.mxu0 0.0
    %2291 = vmatprep.subr.mxu0 0.0
    %2292 = vmatpush1.xpose.msra.mxu0 0.0
    %2293 = vmatprep.subr.mxu0 0.0
    %2294 = vmatpush1.xpose.msra.mxu0 0.0
    %2295 = vmatprep.subr.mxu0 0.0
    %2296 = vmatpush1.xpose.msra.mxu0 0.0
    %2297 = vmatprep.subr.mxu0 0.0
    %2298 = vmatpush1.xpose.msra.mxu0 0.0
    %2299 = vmatprep.subr.mxu0 0.0
    %2300 = vmatpush1.xpose.msra.mxu0 0.0
    %2301 = vmatprep.subr.mxu0 0.0
    %2302 = vmatpush1.xpose.msra.mxu0 0.0
    %2303 = vmatprep.subr.mxu0 0.0
    %2304 = vmatpush1.xpose.msra.mxu0 0.0
    %2305 = vmatprep.subr.mxu0 0.0
    %2306 = vmatpush1.xpose.msra.mxu0 0.0
    %2307 = vmatprep.subr.mxu0 0.0
    %2308 = vmatpush1.xpose.msra.mxu0 0.0
    %2309 = vmatprep.subr.mxu0 0.0
    %2310 = vmatpush1.xpose.msra.mxu0 0.0
    %2311 = vmatprep.subr.mxu0 0.0
    %2312 = vmatpush1.xpose.msra.mxu0 0.0
    %2313 = vmatprep.subr.mxu0 0.0
    %2314 = vmatpush1.xpose.msra.mxu0 0.0
    %2315 = vmatprep.subr.mxu0 0.0
    %2316 = vmatpush1.xpose.msra.mxu0 0.0
    %2317 = vmatprep.subr.mxu0 0.0
    %2318 = vmatpush1.xpose.msra.mxu0 0.0
    %2319 = vmatprep.subr.mxu0 0.0
    %2320 = vmatpush1.xpose.msra.mxu0 0.0
    %2321 = vmatprep.subr.mxu0 0.0
    %2322 = vmatpush1.xpose.msra.mxu0 0.0
    %2323 = vmatprep.subr.mxu0 0.0
    %2324 = vmatpush1.xpose.msra.mxu0 0.0
    %2325 = vmatprep.subr.mxu0 0.0
    %2326 = vmatpush1.xpose.msra.mxu0 0.0
    %2327 = vmatprep.subr.mxu0 0.0
    %2328 = vmatpush1.xpose.msra.mxu0 0.0
    %2329 = vmatprep.subr.mxu0 0.0
    %2330 = vmatpush1.xpose.msra.mxu0 0.0
    %2331 = vmatprep.subr.mxu0 0.0
    %2332 = vmatpush1.xpose.msra.mxu0 0.0
    %2333 = vmatprep.subr.mxu0 0.0
    %2334 = vmatpush1.xpose.msra.mxu0 0.0
    %2335 = vmatprep.subr.mxu0 0.0
    %2336 = vmatpush1.xpose.msra.mxu0 0.0
    %2337 = vmatprep.subr.mxu0 0.0
    %2338 = vmatpush1.xpose.msra.mxu0 0.0
    %2339 = vmatprep.subr.mxu0 0.0
    %2340 = vmatpush1.xpose.msra.mxu0 0.0
    %2341 = vmatprep.subr.mxu0 0.0
    %2342 = vmatpush1.xpose.msra.mxu0 0.0
    %2343 = vmatprep.subr.mxu0 0.0
    %2344 = vmatpush1.xpose.msra.mxu0 0.0
    %2345 = vmatprep.subr.mxu0 0.0
    %2346 = vmatpush1.xpose.msra.mxu0 0.0
    %2347 = vmatprep.subr.mxu0 0.0
    %2348 = vmatpush1.xpose.msra.mxu0 0.0
    %2349 = vmatprep.mubr.f32.mxu0 0.0
    %2350 = vmatmul.mubr.f32.gmra.mrb[0].mxu0 %v2281
    %v2351 = vpop.f32.mrb[0].mxu0
    %v2352 = vadd.f32 0.0, %v2351
    %v2353 = vpop.f32.mrb[0].mxu0
    %2354 = vdwg.mxu0
    %2356 = vrot.lane.b32.xlu0 %v2270, 96
    %v2357 = vpop.permute.xlu0 %2356
    %v2358 = vsel %vm206, %v2270, 0
    %v2360 = vsel %vm206, %v2357, 0
    %2362 = vmatprep.subr.mxu0 0.0
    %2363 = vmatpush1.xpose.msra.mxu0 %v2360
    %2364 = vmatprep.subr.mxu0 0.0
    %2365 = vmatpush1.xpose.msra.mxu0 0.0
    %2366 = vmatprep.subr.mxu0 0.0
    %2367 = vmatpush1.xpose.msra.mxu0 0.0
    %2368 = vmatprep.subr.mxu0 0.0
    %2369 = vmatpush1.xpose.msra.mxu0 0.0
    %2370 = vmatprep.subr.mxu0 0.0
    %2371 = vmatpush1.xpose.msra.mxu0 0.0
    %2372 = vmatprep.subr.mxu0 0.0
    %2373 = vmatpush1.xpose.msra.mxu0 0.0
    %2374 = vmatprep.subr.mxu0 0.0
    %2375 = vmatpush1.xpose.msra.mxu0 0.0
    %2376 = vmatprep.subr.mxu0 0.0
    %2377 = vmatpush1.xpose.msra.mxu0 0.0
    %2378 = vmatprep.subr.mxu0 0.0
    %2379 = vmatpush1.xpose.msra.mxu0 0.0
    %2380 = vmatprep.subr.mxu0 0.0
    %2381 = vmatpush1.xpose.msra.mxu0 0.0
    %2382 = vmatprep.subr.mxu0 0.0
    %2383 = vmatpush1.xpose.msra.mxu0 0.0
    %2384 = vmatprep.subr.mxu0 0.0
    %2385 = vmatpush1.xpose.msra.mxu0 0.0
    %2386 = vmatprep.subr.mxu0 0.0
    %2387 = vmatpush1.xpose.msra.mxu0 0.0
    %2388 = vmatprep.subr.mxu0 0.0
    %2389 = vmatpush1.xpose.msra.mxu0 0.0
    %2390 = vmatprep.subr.mxu0 0.0
    %2391 = vmatpush1.xpose.msra.mxu0 0.0
    %2392 = vmatprep.subr.mxu0 0.0
    %2393 = vmatpush1.xpose.msra.mxu0 0.0
    %2394 = vmatprep.subr.mxu0 0.0
    %2395 = vmatpush1.xpose.msra.mxu0 0.0
    %2396 = vmatprep.subr.mxu0 0.0
    %2397 = vmatpush1.xpose.msra.mxu0 0.0
    %2398 = vmatprep.subr.mxu0 0.0
    %2399 = vmatpush1.xpose.msra.mxu0 0.0
    %2400 = vmatprep.subr.mxu0 0.0
    %2401 = vmatpush1.xpose.msra.mxu0 0.0
    %2402 = vmatprep.subr.mxu0 0.0
    %2403 = vmatpush1.xpose.msra.mxu0 0.0
    %2404 = vmatprep.subr.mxu0 0.0
    %2405 = vmatpush1.xpose.msra.mxu0 0.0
    %2406 = vmatprep.subr.mxu0 0.0
    %2407 = vmatpush1.xpose.msra.mxu0 0.0
    %2408 = vmatprep.subr.mxu0 0.0
    %2409 = vmatpush1.xpose.msra.mxu0 0.0
    %2410 = vmatprep.subr.mxu0 0.0
    %2411 = vmatpush1.xpose.msra.mxu0 0.0
    %2412 = vmatprep.subr.mxu0 0.0
    %2413 = vmatpush1.xpose.msra.mxu0 0.0
    %2414 = vmatprep.subr.mxu0 0.0
    %2415 = vmatpush1.xpose.msra.mxu0 0.0
    %2416 = vmatprep.subr.mxu0 0.0
    %2417 = vmatpush1.xpose.msra.mxu0 0.0
    %2418 = vmatprep.subr.mxu0 0.0
    %2419 = vmatpush1.xpose.msra.mxu0 0.0
    %2420 = vmatprep.subr.mxu0 0.0
    %2421 = vmatpush1.xpose.msra.mxu0 0.0
    %2422 = vmatprep.subr.mxu0 0.0
    %2423 = vmatpush1.xpose.msra.mxu0 0.0
    %2424 = vmatprep.subr.mxu0 0.0
    %2425 = vmatpush1.xpose.msra.mxu0 0.0
    %2426 = vmatprep.mubr.f32.mxu0 0.0
    %2427 = vmatmul.mubr.f32.gmra.mrb[0].mxu0 %v2358
    %v2428 = vpop.f32.mrb[0].mxu0
    %v2429 = vadd.f32 0.0, %v2428
    %v2430 = vpop.f32.mrb[0].mxu0
    %2431 = vdwg.mxu0
    %v2432 = vmul.f32 %v2352, 0.35355338
    %v2433 = vmul.f32 %v2429, 0.35355338
    %v2434 = vsel %vm60, %v2432, -1e+30
    %v2435 = vsel %vm60, %v2433, -1e+30
    %v2436 = vsel %vm206, %v2434, -inf
    %2437 = vmax.xlane.f32.xlu0 %v2436
    %v2438 = vpop.xlane.xlu0 %2437
    %v2439 = vsel %vm206, %v2435, -inf
    %2440 = vmax.xlane.f32.xlu0 %v2439
    %v2441 = vpop.xlane.xlu0 %2440
    %v2442 = vsub.f32 %v2434, %v2438
    %v2443 = vsub.f32 %v2435, %v2441
    %v2444 = vmul.f32 %v2442, 1.442695
    %v2445 = vpow.pop %v2444
    %v2446 = vmul.f32 %v2443, 1.442695
    %v2447 = vpow.pop %v2446
    %v2448 = vsel %vm206, %v2445, 0.0
    %2449 = vadd.xlane.f32.xlu0 %v2448
    %v2450 = vpop.xlane.xlu0 %2449
    %v2451 = vsel %vm206, %v2447, 0.0
    %2452 = vadd.xlane.f32.xlu0 %v2451
    %v2453 = vpop.xlane.xlu0 %2452
    %v2454 = vrcp.pop %v2450
    %v2455 = vrcp.pop %v2453
    %v2456 = vmul.f32 %v2445, %v2454
    %v2457 = vmul.f32 %v2447, %v2455
    %2458 = vrot.lane.b32.xlu0 %v2265, 64
    %v2459 = vpop.permute.xlu0 %2458
    %v2462 = vsel %vm206, %v2456, 0
    %2464 = vmatprep.subr.mxu0 0.0
    %2465 = vmatpush1.msra.mxu0 %v2459
    %2466 = vmatprep.subr.mxu0 0.0
    %2467 = vmatpush1.msra.mxu0 0.0
    %2468 = vmatprep.subr.mxu0 0.0
    %2469 = vmatpush1.msra.mxu0 0.0
    %2470 = vmatprep.subr.mxu0 0.0
    %2471 = vmatpush1.msra.mxu0 0.0
    %2472 = vmatprep.subr.mxu0 0.0
    %2473 = vmatpush1.msra.mxu0 0.0
    %2474 = vmatprep.subr.mxu0 0.0
    %2475 = vmatpush1.msra.mxu0 0.0
    %2476 = vmatprep.subr.mxu0 0.0
    %2477 = vmatpush1.msra.mxu0 0.0
    %2478 = vmatprep.subr.mxu0 0.0
    %2479 = vmatpush1.msra.mxu0 0.0
    %2480 = vmatprep.subr.mxu0 0.0
    %2481 = vmatpush1.msra.mxu0 0.0
    %2482 = vmatprep.subr.mxu0 0.0
    %2483 = vmatpush1.msra.mxu0 0.0
    %2484 = vmatprep.subr.mxu0 0.0
    %2485 = vmatpush1.msra.mxu0 0.0
    %2486 = vmatprep.subr.mxu0 0.0
    %2487 = vmatpush1.msra.mxu0 0.0
    %2488 = vmatprep.subr.mxu0 0.0
    %2489 = vmatpush1.msra.mxu0 0.0
    %2490 = vmatprep.subr.mxu0 0.0
    %2491 = vmatpush1.msra.mxu0 0.0
    %2492 = vmatprep.subr.mxu0 0.0
    %2493 = vmatpush1.msra.mxu0 0.0
    %2494 = vmatprep.subr.mxu0 0.0
    %2495 = vmatpush1.msra.mxu0 0.0
    %2496 = vmatprep.subr.mxu0 0.0
    %2497 = vmatpush1.msra.mxu0 0.0
    %2498 = vmatprep.subr.mxu0 0.0
    %2499 = vmatpush1.msra.mxu0 0.0
    %2500 = vmatprep.subr.mxu0 0.0
    %2501 = vmatpush1.msra.mxu0 0.0
    %2502 = vmatprep.subr.mxu0 0.0
    %2503 = vmatpush1.msra.mxu0 0.0
    %2504 = vmatprep.subr.mxu0 0.0
    %2505 = vmatpush1.msra.mxu0 0.0
    %2506 = vmatprep.subr.mxu0 0.0
    %2507 = vmatpush1.msra.mxu0 0.0
    %2508 = vmatprep.subr.mxu0 0.0
    %2509 = vmatpush1.msra.mxu0 0.0
    %2510 = vmatprep.subr.mxu0 0.0
    %2511 = vmatpush1.msra.mxu0 0.0
    %2512 = vmatprep.subr.mxu0 0.0
    %2513 = vmatpush1.msra.mxu0 0.0
    %2514 = vmatprep.subr.mxu0 0.0
    %2515 = vmatpush1.msra.mxu0 0.0
    %2516 = vmatprep.subr.mxu0 0.0
    %2517 = vmatpush1.msra.mxu0 0.0
    %2518 = vmatprep.subr.mxu0 0.0
    %2519 = vmatpush1.msra.mxu0 0.0
    %2520 = vmatprep.subr.mxu0 0.0
    %2521 = vmatpush1.msra.mxu0 0.0
    %2522 = vmatprep.subr.mxu0 0.0
    %2523 = vmatpush1.msra.mxu0 0.0
    %2524 = vmatprep.subr.mxu0 0.0
    %2525 = vmatpush1.msra.mxu0 0.0
    %2526 = vmatprep.subr.mxu0 0.0
    %2527 = vmatpush1.msra.mxu0 0.0
    %2528 = vmatprep.mubr.f32.mxu0 0.0
    %2529 = vmatmul.mubr.f32.gmra.mrb[0].mxu0 %v2462
    %v2530 = vpop.f32.mrb[0].mxu0
    %v2531 = vadd.f32 0.0, %v2530
    %v2532 = vpop.f32.mrb[0].mxu0
    %2533 = vdwg.mxu0
    %2534 = vrot.lane.b32.xlu0 %v2270, 64
    %v2535 = vpop.permute.xlu0 %2534
    %v2538 = vsel %vm206, %v2457, 0
    %2540 = vmatprep.subr.mxu0 0.0
    %2541 = vmatpush1.msra.mxu0 %v2535
    %2542 = vmatprep.subr.mxu0 0.0
    %2543 = vmatpush1.msra.mxu0 0.0
    %2544 = vmatprep.subr.mxu0 0.0
    %2545 = vmatpush1.msra.mxu0 0.0
    %2546 = vmatprep.subr.mxu0 0.0
    %2547 = vmatpush1.msra.mxu0 0.0
    %2548 = vmatprep.subr.mxu0 0.0
    %2549 = vmatpush1.msra.mxu0 0.0
    %2550 = vmatprep.subr.mxu0 0.0
    %2551 = vmatpush1.msra.mxu0 0.0
    %2552 = vmatprep.subr.mxu0 0.0
    %2553 = vmatpush1.msra.mxu0 0.0
    %2554 = vmatprep.subr.mxu0 0.0
    %2555 = vmatpush1.msra.mxu0 0.0
    %2556 = vmatprep.subr.mxu0 0.0
    %2557 = vmatpush1.msra.mxu0 0.0
    %2558 = vmatprep.subr.mxu0 0.0
    %2559 = vmatpush1.msra.mxu0 0.0
    %2560 = vmatprep.subr.mxu0 0.0
    %2561 = vmatpush1.msra.mxu0 0.0
    %2562 = vmatprep.subr.mxu0 0.0
    %2563 = vmatpush1.msra.mxu0 0.0
    %2564 = vmatprep.subr.mxu0 0.0
    %2565 = vmatpush1.msra.mxu0 0.0
    %2566 = vmatprep.subr.mxu0 0.0
    %2567 = vmatpush1.msra.mxu0 0.0
    %2568 = vmatprep.subr.mxu0 0.0
    %2569 = vmatpush1.msra.mxu0 0.0
    %2570 = vmatprep.subr.mxu0 0.0
    %2571 = vmatpush1.msra.mxu0 0.0
    %2572 = vmatprep.subr.mxu0 0.0
    %2573 = vmatpush1.msra.mxu0 0.0
    %2574 = vmatprep.subr.mxu0 0.0
    %2575 = vmatpush1.msra.mxu0 0.0
    %2576 = vmatprep.subr.mxu0 0.0
    %2577 = vmatpush1.msra.mxu0 0.0
    %2578 = vmatprep.subr.mxu0 0.0
    %2579 = vmatpush1.msra.mxu0 0.0
    %2580 = vmatprep.subr.mxu0 0.0
    %2581 = vmatpush1.msra.mxu0 0.0
    %2582 = vmatprep.subr.mxu0 0.0
    %2583 = vmatpush1.msra.mxu0 0.0
    %2584 = vmatprep.subr.mxu0 0.0
    %2585 = vmatpush1.msra.mxu0 0.0
    %2586 = vmatprep.subr.mxu0 0.0
    %2587 = vmatpush1.msra.mxu0 0.0
    %2588 = vmatprep.subr.mxu0 0.0
    %2589 = vmatpush1.msra.mxu0 0.0
    %2590 = vmatprep.subr.mxu0 0.0
    %2591 = vmatpush1.msra.mxu0 0.0
    %2592 = vmatprep.subr.mxu0 0.0
    %2593 = vmatpush1.msra.mxu0 0.0
    %2594 = vmatprep.subr.mxu0 0.0
    %2595 = vmatpush1.msra.mxu0 0.0
    %2596 = vmatprep.subr.mxu0 0.0
    %2597 = vmatpush1.msra.mxu0 0.0
    %2598 = vmatprep.subr.mxu0 0.0
    %2599 = vmatpush1.msra.mxu0 0.0
    %2600 = vmatprep.subr.mxu0 0.0
    %2601 = vmatpush1.msra.mxu0 0.0
    %2602 = vmatprep.subr.mxu0 0.0
    %2603 = vmatpush1.msra.mxu0 0.0
    %2604 = vmatprep.mubr.f32.mxu0 0.0
    %2605 = vmatmul.mubr.f32.gmra.mrb[0].mxu0 %v2538
    %v2606 = vpop.f32.mrb[0].mxu0
    %v2607 = vadd.f32 0.0, %v2606
    %v2608 = vpop.f32.mrb[0].mxu0
    %2609 = vdwg.mxu0
    %2610 = vrot.lane.b32.xlu0 %v2265, 120
    %v2611 = vpop.permute.xlu0 %2610
    %2612 = vrot.lane.b32.xlu0 %v2265, 88
    %v2613 = vpop.permute.xlu0 %2612
    %v2614 = vsel %vm206, %v2611, 0
    %v2616 = vsel %vm206, %v2613, 0
    %2618 = vmatprep.subr.mxu0 0.0
    %2619 = vmatpush1.xpose.msra.mxu0 %v2616
    %2620 = vmatprep.subr.mxu0 0.0
    %2621 = vmatpush1.xpose.msra.mxu0 0.0
    %2622 = vmatprep.subr.mxu0 0.0
    %2623 = vmatpush1.xpose.msra.mxu0 0.0
    %2624 = vmatprep.subr.mxu0 0.0
    %2625 = vmatpush1.xpose.msra.mxu0 0.0
    %2626 = vmatprep.subr.mxu0 0.0
    %2627 = vmatpush1.xpose.msra.mxu0 0.0
    %2628 = vmatprep.subr.mxu0 0.0
    %2629 = vmatpush1.xpose.msra.mxu0 0.0
    %2630 = vmatprep.subr.mxu0 0.0
    %2631 = vmatpush1.xpose.msra.mxu0 0.0
    %2632 = vmatprep.subr.mxu0 0.0
    %2633 = vmatpush1.xpose.msra.mxu0 0.0
    %2634 = vmatprep.subr.mxu0 0.0
    %2635 = vmatpush1.xpose.msra.mxu0 0.0
    %2636 = vmatprep.subr.mxu0 0.0
    %2637 = vmatpush1.xpose.msra.mxu0 0.0
    %2638 = vmatprep.subr.mxu0 0.0
    %2639 = vmatpush1.xpose.msra.mxu0 0.0
    %2640 = vmatprep.subr.mxu0 0.0
    %2641 = vmatpush1.xpose.msra.mxu0 0.0
    %2642 = vmatprep.subr.mxu0 0.0
    %2643 = vmatpush1.xpose.msra.mxu0 0.0
    %2644 = vmatprep.subr.mxu0 0.0
    %2645 = vmatpush1.xpose.msra.mxu0 0.0
    %2646 = vmatprep.subr.mxu0 0.0
    %2647 = vmatpush1.xpose.msra.mxu0 0.0
    %2648 = vmatprep.subr.mxu0 0.0
    %2649 = vmatpush1.xpose.msra.mxu0 0.0
    %2650 = vmatprep.subr.mxu0 0.0
    %2651 = vmatpush1.xpose.msra.mxu0 0.0
    %2652 = vmatprep.subr.mxu0 0.0
    %2653 = vmatpush1.xpose.msra.mxu0 0.0
    %2654 = vmatprep.subr.mxu0 0.0
    %2655 = vmatpush1.xpose.msra.mxu0 0.0
    %2656 = vmatprep.subr.mxu0 0.0
    %2657 = vmatpush1.xpose.msra.mxu0 0.0
    %2658 = vmatprep.subr.mxu0 0.0
    %2659 = vmatpush1.xpose.msra.mxu0 0.0
    %2660 = vmatprep.subr.mxu0 0.0
    %2661 = vmatpush1.xpose.msra.mxu0 0.0
    %2662 = vmatprep.subr.mxu0 0.0
    %2663 = vmatpush1.xpose.msra.mxu0 0.0
    %2664 = vmatprep.subr.mxu0 0.0
    %2665 = vmatpush1.xpose.msra.mxu0 0.0
    %2666 = vmatprep.subr.mxu0 0.0
    %2667 = vmatpush1.xpose.msra.mxu0 0.0
    %2668 = vmatprep.subr.mxu0 0.0
    %2669 = vmatpush1.xpose.msra.mxu0 0.0
    %2670 = vmatprep.subr.mxu0 0.0
    %2671 = vmatpush1.xpose.msra.mxu0 0.0
    %2672 = vmatprep.subr.mxu0 0.0
    %2673 = vmatpush1.xpose.msra.mxu0 0.0
    %2674 = vmatprep.subr.mxu0 0.0
    %2675 = vmatpush1.xpose.msra.mxu0 0.0
    %2676 = vmatprep.subr.mxu0 0.0
    %2677 = vmatpush1.xpose.msra.mxu0 0.0
    %2678 = vmatprep.subr.mxu0 0.0
    %2679 = vmatpush1.xpose.msra.mxu0 0.0
    %2680 = vmatprep.subr.mxu0 0.0
    %2681 = vmatpush1.xpose.msra.mxu0 0.0
    %2682 = vmatprep.mubr.f32.mxu0 0.0
    %2683 = vmatmul.mubr.f32.gmra.mrb[0].mxu0 %v2614
    %v2684 = vpop.f32.mrb[0].mxu0
    %v2685 = vadd.f32 0.0, %v2684
    %v2686 = vpop.f32.mrb[0].mxu0
    %2687 = vdwg.mxu0
    %2688 = vrot.lane.b32.xlu0 %v2270, 120
    %v2689 = vpop.permute.xlu0 %2688
    %2690 = vrot.lane.b32.xlu0 %v2270, 88
    %v2691 = vpop.permute.xlu0 %2690
    %v2692 = vsel %vm206, %v2689, 0
    %v2694 = vsel %vm206, %v2691, 0
    %2696 = vmatprep.subr.mxu0 0.0
    %2697 = vmatpush1.xpose.msra.mxu0 %v2694
    %2698 = vmatprep.subr.mxu0 0.0
    %2699 = vmatpush1.xpose.msra.mxu0 0.0
    %2700 = vmatprep.subr.mxu0 0.0
    %2701 = vmatpush1.xpose.msra.mxu0 0.0
    %2702 = vmatprep.subr.mxu0 0.0
    %2703 = vmatpush1.xpose.msra.mxu0 0.0
    %2704 = vmatprep.subr.mxu0 0.0
    %2705 = vmatpush1.xpose.msra.mxu0 0.0
    %2706 = vmatprep.subr.mxu0 0.0
    %2707 = vmatpush1.xpose.msra.mxu0 0.0
    %2708 = vmatprep.subr.mxu0 0.0
    %2709 = vmatpush1.xpose.msra.mxu0 0.0
    %2710 = vmatprep.subr.mxu0 0.0
    %2711 = vmatpush1.xpose.msra.mxu0 0.0
    %2712 = vmatprep.subr.mxu0 0.0
    %2713 = vmatpush1.xpose.msra.mxu0 0.0
    %2714 = vmatprep.subr.mxu0 0.0
    %2715 = vmatpush1.xpose.msra.mxu0 0.0
    %2716 = vmatprep.subr.mxu0 0.0
    %2717 = vmatpush1.xpose.msra.mxu0 0.0
    %2718 = vmatprep.subr.mxu0 0.0
    %2719 = vmatpush1.xpose.msra.mxu0 0.0
    %2720 = vmatprep.subr.mxu0 0.0
    %2721 = vmatpush1.xpose.msra.mxu0 0.0
    %2722 = vmatprep.subr.mxu0 0.0
    %2723 = vmatpush1.xpose.msra.mxu0 0.0
    %2724 = vmatprep.subr.mxu0 0.0
    %2725 = vmatpush1.xpose.msra.mxu0 0.0
    %2726 = vmatprep.subr.mxu0 0.0
    %2727 = vmatpush1.xpose.msra.mxu0 0.0
    %2728 = vmatprep.subr.mxu0 0.0
    %2729 = vmatpush1.xpose.msra.mxu0 0.0
    %2730 = vmatprep.subr.mxu0 0.0
    %2731 = vmatpush1.xpose.msra.mxu0 0.0
    %2732 = vmatprep.subr.mxu0 0.0
    %2733 = vmatpush1.xpose.msra.mxu0 0.0
    %2734 = vmatprep.subr.mxu0 0.0
    %2735 = vmatpush1.xpose.msra.mxu0 0.0
    %2736 = vmatprep.subr.mxu0 0.0
    %2737 = vmatpush1.xpose.msra.mxu0 0.0
    %2738 = vmatprep.subr.mxu0 0.0
    %2739 = vmatpush1.xpose.msra.mxu0 0.0
    %2740 = vmatprep.subr.mxu0 0.0
    %2741 = vmatpush1.xpose.msra.mxu0 0.0
    %2742 = vmatprep.subr.mxu0 0.0
    %2743 = vmatpush1.xpose.msra.mxu0 0.0
    %2744 = vmatprep.subr.mxu0 0.0
    %2745 = vmatpush1.xpose.msra.mxu0 0.0
    %2746 = vmatprep.subr.mxu0 0.0
    %2747 = vmatpush1.xpose.msra.mxu0 0.0
    %2748 = vmatprep.subr.mxu0 0.0
    %2749 = vmatpush1.xpose.msra.mxu0 0.0
    %2750 = vmatprep.subr.mxu0 0.0
    %2751 = vmatpush1.xpose.msra.mxu0 0.0
    %2752 = vmatprep.subr.mxu0 0.0
    %2753 = vmatpush1.xpose.msra.mxu0 0.0
    %2754 = vmatprep.subr.mxu0 0.0
    %2755 = vmatpush1.xpose.msra.mxu0 0.0
    %2756 = vmatprep.subr.mxu0 0.0
    %2757 = vmatpush1.xpose.msra.mxu0 0.0
    %2758 = vmatprep.subr.mxu0 0.0
    %2759 = vmatpush1.xpose.msra.mxu0 0.0
    %2760 = vmatprep.mubr.f32.mxu0 0.0
    %2761 = vmatmul.mubr.f32.gmra.mrb[0].mxu0 %v2692
    %v2762 = vpop.f32.mrb[0].mxu0
    %v2763 = vadd.f32 0.0, %v2762
    %v2764 = vpop.f32.mrb[0].mxu0
    %2765 = vdwg.mxu0
    %v2766 = vmul.f32 %v2685, 0.35355338
    %v2767 = vmul.f32 %v2763, 0.35355338
    %v2768 = vsel %vm60, %v2766, -1e+30
    %v2769 = vsel %vm60, %v2767, -1e+30
    %v2770 = vsel %vm206, %v2768, -inf
    %2771 = vmax.xlane.f32.xlu0 %v2770
    %v2772 = vpop.xlane.xlu0 %2771
    %v2773 = vsel %vm206, %v2769, -inf
    %2774 = vmax.xlane.f32.xlu0 %v2773
    %v2775 = vpop.xlane.xlu0 %2774
    %v2776 = vsub.f32 %v2768, %v2772
    %v2777 = vsub.f32 %v2769, %v2775
    %v2778 = vmul.f32 %v2776, 1.442695
    %v2779 = vpow.pop %v2778
    %v2780 = vmul.f32 %v2777, 1.442695
    %v2781 = vpow.pop %v2780
    %v2782 = vsel %vm206, %v2779, 0.0
    %2783 = vadd.xlane.f32.xlu0 %v2782
    %v2784 = vpop.xlane.xlu0 %2783
    %v2785 = vsel %vm206, %v2781, 0.0
    %2786 = vadd.xlane.f32.xlu0 %v2785
    %v2787 = vpop.xlane.xlu0 %2786
    %v2788 = vrcp.pop %v2784
    %v2789 = vrcp.pop %v2787
    %v2790 = vmul.f32 %v2779, %v2788
    %v2791 = vmul.f32 %v2781, %v2789
    %2792 = vrot.lane.b32.xlu0 %v2265, 56
    %v2793 = vpop.permute.xlu0 %2792
    %v2796 = vsel %vm206, %v2790, 0
    %2798 = vmatprep.subr.mxu0 0.0
    %2799 = vmatpush1.msra.mxu0 %v2793
    %2800 = vmatprep.subr.mxu0 0.0
    %2801 = vmatpush1.msra.mxu0 0.0
    %2802 = vmatprep.subr.mxu0 0.0
    %2803 = vmatpush1.msra.mxu0 0.0
    %2804 = vmatprep.subr.mxu0 0.0
    %2805 = vmatpush1.msra.mxu0 0.0
    %2806 = vmatprep.subr.mxu0 0.0
    %2807 = vmatpush1.msra.mxu0 0.0
    %2808 = vmatprep.subr.mxu0 0.0
    %2809 = vmatpush1.msra.mxu0 0.0
    %2810 = vmatprep.subr.mxu0 0.0
    %2811 = vmatpush1.msra.mxu0 0.0
    %2812 = vmatprep.subr.mxu0 0.0
    %2813 = vmatpush1.msra.mxu0 0.0
    %2814 = vmatprep.subr.mxu0 0.0
    %2815 = vmatpush1.msra.mxu0 0.0
    %2816 = vmatprep.subr.mxu0 0.0
    %2817 = vmatpush1.msra.mxu0 0.0
    %2818 = vmatprep.subr.mxu0 0.0
    %2819 = vmatpush1.msra.mxu0 0.0
    %2820 = vmatprep.subr.mxu0 0.0
    %2821 = vmatpush1.msra.mxu0 0.0
    %2822 = vmatprep.subr.mxu0 0.0
    %2823 = vmatpush1.msra.mxu0 0.0
    %2824 = vmatprep.subr.mxu0 0.0
    %2825 = vmatpush1.msra.mxu0 0.0
    %2826 = vmatprep.subr.mxu0 0.0
    %2827 = vmatpush1.msra.mxu0 0.0
    %2828 = vmatprep.subr.mxu0 0.0
    %2829 = vmatpush1.msra.mxu0 0.0
    %2830 = vmatprep.subr.mxu0 0.0
    %2831 = vmatpush1.msra.mxu0 0.0
    %2832 = vmatprep.subr.mxu0 0.0
    %2833 = vmatpush1.msra.mxu0 0.0
    %2834 = vmatprep.subr.mxu0 0.0
    %2835 = vmatpush1.msra.mxu0 0.0
    %2836 = vmatprep.subr.mxu0 0.0
    %2837 = vmatpush1.msra.mxu0 0.0
    %2838 = vmatprep.subr.mxu0 0.0
    %2839 = vmatpush1.msra.mxu0 0.0
    %2840 = vmatprep.subr.mxu0 0.0
    %2841 = vmatpush1.msra.mxu0 0.0
    %2842 = vmatprep.subr.mxu0 0.0
    %2843 = vmatpush1.msra.mxu0 0.0
    %2844 = vmatprep.subr.mxu0 0.0
    %2845 = vmatpush1.msra.mxu0 0.0
    %2846 = vmatprep.subr.mxu0 0.0
    %2847 = vmatpush1.msra.mxu0 0.0
    %2848 = vmatprep.subr.mxu0 0.0
    %2849 = vmatpush1.msra.mxu0 0.0
    %2850 = vmatprep.subr.mxu0 0.0
    %2851 = vmatpush1.msra.mxu0 0.0
    %2852 = vmatprep.subr.mxu0 0.0
    %2853 = vmatpush1.msra.mxu0 0.0
    %2854 = vmatprep.subr.mxu0 0.0
    %2855 = vmatpush1.msra.mxu0 0.0
    %2856 = vmatprep.subr.mxu0 0.0
    %2857 = vmatpush1.msra.mxu0 0.0
    %2858 = vmatprep.subr.mxu0 0.0
    %2859 = vmatpush1.msra.mxu0 0.0
    %2860 = vmatprep.subr.mxu0 0.0
    %2861 = vmatpush1.msra.mxu0 0.0
    %2862 = vmatprep.mubr.f32.mxu0 0.0
    %2863 = vmatmul.mubr.f32.gmra.mrb[0].mxu0 %v2796
    %v2864 = vpop.f32.mrb[0].mxu0
    %v2865 = vadd.f32 0.0, %v2864
    %v2866 = vpop.f32.mrb[0].mxu0
    %2867 = vdwg.mxu0
    %2868 = vrot.lane.b32.xlu0 %v2270, 56
    %v2869 = vpop.permute.xlu0 %2868
    %v2872 = vsel %vm206, %v2791, 0
    %2874 = vmatprep.subr.mxu0 0.0
    %2875 = vmatpush1.msra.mxu0 %v2869
    %2876 = vmatprep.subr.mxu0 0.0
    %2877 = vmatpush1.msra.mxu0 0.0
    %2878 = vmatprep.subr.mxu0 0.0
    %2879 = vmatpush1.msra.mxu0 0.0
    %2880 = vmatprep.subr.mxu0 0.0
    %2881 = vmatpush1.msra.mxu0 0.0
    %2882 = vmatprep.subr.mxu0 0.0
    %2883 = vmatpush1.msra.mxu0 0.0
    %2884 = vmatprep.subr.mxu0 0.0
    %2885 = vmatpush1.msra.mxu0 0.0
    %2886 = vmatprep.subr.mxu0 0.0
    %2887 = vmatpush1.msra.mxu0 0.0
    %2888 = vmatprep.subr.mxu0 0.0
    %2889 = vmatpush1.msra.mxu0 0.0
    %2890 = vmatprep.subr.mxu0 0.0
    %2891 = vmatpush1.msra.mxu0 0.0
    %2892 = vmatprep.subr.mxu0 0.0
    %2893 = vmatpush1.msra.mxu0 0.0
    %2894 = vmatprep.subr.mxu0 0.0
    %2895 = vmatpush1.msra.mxu0 0.0
    %2896 = vmatprep.subr.mxu0 0.0
    %2897 = vmatpush1.msra.mxu0 0.0
    %2898 = vmatprep.subr.mxu0 0.0
    %2899 = vmatpush1.msra.mxu0 0.0
    %2900 = vmatprep.subr.mxu0 0.0
    %2901 = vmatpush1.msra.mxu0 0.0
    %2902 = vmatprep.subr.mxu0 0.0
    %2903 = vmatpush1.msra.mxu0 0.0
    %2904 = vmatprep.subr.mxu0 0.0
    %2905 = vmatpush1.msra.mxu0 0.0
    %2906 = vmatprep.subr.mxu0 0.0
    %2907 = vmatpush1.msra.mxu0 0.0
    %2908 = vmatprep.subr.mxu0 0.0
    %2909 = vmatpush1.msra.mxu0 0.0
    %2910 = vmatprep.subr.mxu0 0.0
    %2911 = vmatpush1.msra.mxu0 0.0
    %2912 = vmatprep.subr.mxu0 0.0
    %2913 = vmatpush1.msra.mxu0 0.0
    %2914 = vmatprep.subr.mxu0 0.0
    %2915 = vmatpush1.msra.mxu0 0.0
    %2916 = vmatprep.subr.mxu0 0.0
    %2917 = vmatpush1.msra.mxu0 0.0
    %2918 = vmatprep.subr.mxu0 0.0
    %2919 = vmatpush1.msra.mxu0 0.0
    %2920 = vmatprep.subr.mxu0 0.0
    %2921 = vmatpush1.msra.mxu0 0.0
    %2922 = vmatprep.subr.mxu0 0.0
    %2923 = vmatpush1.msra.mxu0 0.0
    %2924 = vmatprep.subr.mxu0 0.0
    %2925 = vmatpush1.msra.mxu0 0.0
    %2926 = vmatprep.subr.mxu0 0.0
    %2927 = vmatpush1.msra.mxu0 0.0
    %2928 = vmatprep.subr.mxu0 0.0
    %2929 = vmatpush1.msra.mxu0 0.0
    %2930 = vmatprep.subr.mxu0 0.0
    %2931 = vmatpush1.msra.mxu0 0.0
    %2932 = vmatprep.subr.mxu0 0.0
    %2933 = vmatpush1.msra.mxu0 0.0
    %2934 = vmatprep.subr.mxu0 0.0
    %2935 = vmatpush1.msra.mxu0 0.0
    %2936 = vmatprep.subr.mxu0 0.0
    %2937 = vmatpush1.msra.mxu0 0.0
    %2938 = vmatprep.mubr.f32.mxu0 0.0
    %2939 = vmatmul.mubr.f32.gmra.mrb[0].mxu0 %v2872
    %v2940 = vpop.f32.mrb[0].mxu0
    %v2941 = vadd.f32 0.0, %v2940
    %v2942 = vpop.f32.mrb[0].mxu0
    %2943 = vdwg.mxu0
    %v2945 = vsel %vm206, %v2865, 0
    %v2948 = vsel %vm206, %v2941, 0
    %2950 = vmatprep.subr.mxu0 0.0
    %2951 = vmatpush1.msra.mxu0 %v2275
    %2952 = vmatprep.subr.mxu0 0.0
    %2953 = vmatpush1.msra.mxu0 0.0
    %2954 = vmatprep.subr.mxu0 0.0
    %2955 = vmatpush1.msra.mxu0 0.0
    %2956 = vmatprep.subr.mxu0 0.0
    %2957 = vmatpush1.msra.mxu0 0.0
    %2958 = vmatprep.subr.mxu0 0.0
    %2959 = vmatpush1.msra.mxu0 0.0
    %2960 = vmatprep.subr.mxu0 0.0
    %2961 = vmatpush1.msra.mxu0 0.0
    %2962 = vmatprep.subr.mxu0 0.0
    %2963 = vmatpush1.msra.mxu0 0.0
    %2964 = vmatprep.subr.mxu0 0.0
    %2965 = vmatpush1.msra.mxu0 0.0
    %2966 = vmatprep.subr.mxu0 0.0
    %2967 = vmatpush1.msra.mxu0 0.0
    %2968 = vmatprep.subr.mxu0 0.0
    %2969 = vmatpush1.msra.mxu0 0.0
    %2970 = vmatprep.subr.mxu0 0.0
    %2971 = vmatpush1.msra.mxu0 0.0
    %2972 = vmatprep.subr.mxu0 0.0
    %2973 = vmatpush1.msra.mxu0 0.0
    %2974 = vmatprep.subr.mxu0 0.0
    %2975 = vmatpush1.msra.mxu0 0.0
    %2976 = vmatprep.subr.mxu0 0.0
    %2977 = vmatpush1.msra.mxu0 0.0
    %2978 = vmatprep.subr.mxu0 0.0
    %2979 = vmatpush1.msra.mxu0 0.0
    %2980 = vmatprep.subr.mxu0 0.0
    %2981 = vmatpush1.msra.mxu0 0.0
    %2982 = vmatprep.subr.mxu0 0.0
    %2983 = vmatpush1.msra.mxu0 0.0
    %2984 = vmatprep.subr.mxu0 0.0
    %2985 = vmatpush1.msra.mxu0 0.0
    %2986 = vmatprep.subr.mxu0 0.0
    %2987 = vmatpush1.msra.mxu0 0.0
    %2988 = vmatprep.subr.mxu0 0.0
    %2989 = vmatpush1.msra.mxu0 0.0
    %2990 = vmatprep.subr.mxu0 0.0
    %2991 = vmatpush1.msra.mxu0 0.0
    %2992 = vmatprep.subr.mxu0 0.0
    %2993 = vmatpush1.msra.mxu0 0.0
    %2994 = vmatprep.subr.mxu0 0.0
    %2995 = vmatpush1.msra.mxu0 0.0
    %2996 = vmatprep.subr.mxu0 0.0
    %2997 = vmatpush1.msra.mxu0 0.0
    %2998 = vmatprep.subr.mxu0 0.0
    %2999 = vmatpush1.msra.mxu0 0.0
    %3000 = vmatprep.subr.mxu0 0.0
    %3001 = vmatpush1.msra.mxu0 0.0
    %3002 = vmatprep.subr.mxu0 0.0
    %3003 = vmatpush1.msra.mxu0 0.0
    %3004 = vmatprep.subr.mxu0 0.0
    %3005 = vmatpush1.msra.mxu0 0.0
    %3006 = vmatprep.subr.mxu0 0.0
    %3007 = vmatpush1.msra.mxu0 0.0
    %3008 = vmatprep.subr.mxu0 0.0
    %3009 = vmatpush1.msra.mxu0 0.0
    %3010 = vmatprep.subr.mxu0 0.0
    %3011 = vmatpush1.msra.mxu0 0.0
    %3012 = vmatprep.subr.mxu0 0.0
    %3013 = vmatpush1.msra.mxu0 0.0
    %3014 = vmatprep.mubr.f32.mxu0 0.0
    %3015 = vmatmul.mubr.f32.gmra.mrb[0].mxu0 %v2945
    %v3016 = vpop.f32.mrb[0].mxu0
    %v3017 = vadd.f32 0.0, %v3016
    %v3018 = vpop.f32.mrb[0].mxu0
    %3019 = vmatprep.mubr.f32.mxu0 0.0
    %3020 = vmatmul.mubr.f32.gmra.mrb[0].mxu0 %v2948
    %v3021 = vpop.f32.mrb[0].mxu0
    %v3022 = vadd.f32 0.0, %v3021
    %v3023 = vpop.f32.mrb[0].mxu0
    %3024 = vdwg.mxu0
    %v3026 = vsel %vm206, %v2531, 0
    %v3029 = vsel %vm206, %v2607, 0
    %3031 = vmatprep.subr.mxu0 0.0
    %3032 = vmatpush1.msra.mxu0 %v2274
    %3033 = vmatprep.subr.mxu0 0.0
    %3034 = vmatpush1.msra.mxu0 0.0
    %3035 = vmatprep.subr.mxu0 0.0
    %3036 = vmatpush1.msra.mxu0 0.0
    %3037 = vmatprep.subr.mxu0 0.0
    %3038 = vmatpush1.msra.mxu0 0.0
    %3039 = vmatprep.subr.mxu0 0.0
    %3040 = vmatpush1.msra.mxu0 0.0
    %3041 = vmatprep.subr.mxu0 0.0
    %3042 = vmatpush1.msra.mxu0 0.0
    %3043 = vmatprep.subr.mxu0 0.0
    %3044 = vmatpush1.msra.mxu0 0.0
    %3045 = vmatprep.subr.mxu0 0.0
    %3046 = vmatpush1.msra.mxu0 0.0
    %3047 = vmatprep.subr.mxu0 0.0
    %3048 = vmatpush1.msra.mxu0 0.0
    %3049 = vmatprep.subr.mxu0 0.0
    %3050 = vmatpush1.msra.mxu0 0.0
    %3051 = vmatprep.subr.mxu0 0.0
    %3052 = vmatpush1.msra.mxu0 0.0
    %3053 = vmatprep.subr.mxu0 0.0
    %3054 = vmatpush1.msra.mxu0 0.0
    %3055 = vmatprep.subr.mxu0 0.0
    %3056 = vmatpush1.msra.mxu0 0.0
    %3057 = vmatprep.subr.mxu0 0.0
    %3058 = vmatpush1.msra.mxu0 0.0
    %3059 = vmatprep.subr.mxu0 0.0
    %3060 = vmatpush1.msra.mxu0 0.0
    %3061 = vmatprep.subr.mxu0 0.0
    %3062 = vmatpush1.msra.mxu0 0.0
    %3063 = vmatprep.subr.mxu0 0.0
    %3064 = vmatpush1.msra.mxu0 0.0
    %3065 = vmatprep.subr.mxu0 0.0
    %3066 = vmatpush1.msra.mxu0 0.0
    %3067 = vmatprep.subr.mxu0 0.0
    %3068 = vmatpush1.msra.mxu0 0.0
    %3069 = vmatprep.subr.mxu0 0.0
    %3070 = vmatpush1.msra.mxu0 0.0
    %3071 = vmatprep.subr.mxu0 0.0
    %3072 = vmatpush1.msra.mxu0 0.0
    %3073 = vmatprep.subr.mxu0 0.0
    %3074 = vmatpush1.msra.mxu0 0.0
    %3075 = vmatprep.subr.mxu0 0.0
    %3076 = vmatpush1.msra.mxu0 0.0
    %3077 = vmatprep.subr.mxu0 0.0
    %3078 = vmatpush1.msra.mxu0 0.0
    %3079 = vmatprep.subr.mxu0 0.0
    %3080 = vmatpush1.msra.mxu0 0.0
    %3081 = vmatprep.subr.mxu0 0.0
    %3082 = vmatpush1.msra.mxu0 0.0
    %3083 = vmatprep.subr.mxu0 0.0
    %3084 = vmatpush1.msra.mxu0 0.0
    %3085 = vmatprep.subr.mxu0 0.0
    %3086 = vmatpush1.msra.mxu0 0.0
    %3087 = vmatprep.subr.mxu0 0.0
    %3088 = vmatpush1.msra.mxu0 0.0
    %3089 = vmatprep.subr.mxu0 0.0
    %3090 = vmatpush1.msra.mxu0 0.0
    %3091 = vmatprep.subr.mxu0 0.0
    %3092 = vmatpush1.msra.mxu0 0.0
    %3093 = vmatprep.subr.mxu0 0.0
    %3094 = vmatpush1.msra.mxu0 0.0
    %3095 = vmatprep.mubr.f32.mxu0 0.0
    %3096 = vmatmul.mubr.f32.gmra.mrb[0].mxu0 %v3026
    %v3097 = vpop.f32.mrb[0].mxu0
    %v3098 = vadd.f32 %v3017, %v3097
    %v3099 = vpop.f32.mrb[0].mxu0
    %3100 = vmatprep.mubr.f32.mxu0 0.0
    %3101 = vmatmul.mubr.f32.gmra.mrb[0].mxu0 %v3029
    %v3102 = vpop.f32.mrb[0].mxu0
    %v3103 = vadd.f32 %v3022, %v3102
    %v3104 = vpop.f32.mrb[0].mxu0
    %3105 = vdwg.mxu0
    %3106 = vrot.lane.b32.xlu0 %v2265, 112
    %v3107 = vpop.permute.xlu0 %3106
    %3108 = vrot.lane.b32.xlu0 %v2265, 80
    %v3109 = vpop.permute.xlu0 %3108
    %v3110 = vsel %vm206, %v3107, 0
    %v3112 = vsel %vm206, %v3109, 0
    %3114 = vmatprep.subr.mxu0 0.0
    %3115 = vmatpush1.xpose.msra.mxu0 %v3112
    %3116 = vmatprep.subr.mxu0 0.0
    %3117 = vmatpush1.xpose.msra.mxu0 0.0
    %3118 = vmatprep.subr.mxu0 0.0
    %3119 = vmatpush1.xpose.msra.mxu0 0.0
    %3120 = vmatprep.subr.mxu0 0.0
    %3121 = vmatpush1.xpose.msra.mxu0 0.0
    %3122 = vmatprep.subr.mxu0 0.0
    %3123 = vmatpush1.xpose.msra.mxu0 0.0
    %3124 = vmatprep.subr.mxu0 0.0
    %3125 = vmatpush1.xpose.msra.mxu0 0.0
    %3126 = vmatprep.subr.mxu0 0.0
    %3127 = vmatpush1.xpose.msra.mxu0 0.0
    %3128 = vmatprep.subr.mxu0 0.0
    %3129 = vmatpush1.xpose.msra.mxu0 0.0
    %3130 = vmatprep.subr.mxu0 0.0
    %3131 = vmatpush1.xpose.msra.mxu0 0.0
    %3132 = vmatprep.subr.mxu0 0.0
    %3133 = vmatpush1.xpose.msra.mxu0 0.0
    %3134 = vmatprep.subr.mxu0 0.0
    %3135 = vmatpush1.xpose.msra.mxu0 0.0
    %3136 = vmatprep.subr.mxu0 0.0
    %3137 = vmatpush1.xpose.msra.mxu0 0.0
    %3138 = vmatprep.subr.mxu0 0.0
    %3139 = vmatpush1.xpose.msra.mxu0 0.0
    %3140 = vmatprep.subr.mxu0 0.0
    %3141 = vmatpush1.xpose.msra.mxu0 0.0
    %3142 = vmatprep.subr.mxu0 0.0
    %3143 = vmatpush1.xpose.msra.mxu0 0.0
    %3144 = vmatprep.subr.mxu0 0.0
    %3145 = vmatpush1.xpose.msra.mxu0 0.0
    %3146 = vmatprep.subr.mxu0 0.0
    %3147 = vmatpush1.xpose.msra.mxu0 0.0
    %3148 = vmatprep.subr.mxu0 0.0
    %3149 = vmatpush1.xpose.msra.mxu0 0.0
    %3150 = vmatprep.subr.mxu0 0.0
    %3151 = vmatpush1.xpose.msra.mxu0 0.0
    %3152 = vmatprep.subr.mxu0 0.0
    %3153 = vmatpush1.xpose.msra.mxu0 0.0
    %3154 = vmatprep.subr.mxu0 0.0
    %3155 = vmatpush1.xpose.msra.mxu0 0.0
    %3156 = vmatprep.subr.mxu0 0.0
    %3157 = vmatpush1.xpose.msra.mxu0 0.0
    %3158 = vmatprep.subr.mxu0 0.0
    %3159 = vmatpush1.xpose.msra.mxu0 0.0
    %3160 = vmatprep.subr.mxu0 0.0
    %3161 = vmatpush1.xpose.msra.mxu0 0.0
    %3162 = vmatprep.subr.mxu0 0.0
    %3163 = vmatpush1.xpose.msra.mxu0 0.0
    %3164 = vmatprep.subr.mxu0 0.0
    %3165 = vmatpush1.xpose.msra.mxu0 0.0
    %3166 = vmatprep.subr.mxu0 0.0
    %3167 = vmatpush1.xpose.msra.mxu0 0.0
    %3168 = vmatprep.subr.mxu0 0.0
    %3169 = vmatpush1.xpose.msra.mxu0 0.0
    %3170 = vmatprep.subr.mxu0 0.0
    %3171 = vmatpush1.xpose.msra.mxu0 0.0
    %3172 = vmatprep.subr.mxu0 0.0
    %3173 = vmatpush1.xpose.msra.mxu0 0.0
    %3174 = vmatprep.subr.mxu0 0.0
    %3175 = vmatpush1.xpose.msra.mxu0 0.0
    %3176 = vmatprep.subr.mxu0 0.0
    %3177 = vmatpush1.xpose.msra.mxu0 0.0
    %3178 = vmatprep.mubr.f32.mxu0 0.0
    %3179 = vmatmul.mubr.f32.gmra.mrb[0].mxu0 %v3110
    %v3180 = vpop.f32.mrb[0].mxu0
    %v3181 = vadd.f32 0.0, %v3180
    %v3182 = vpop.f32.mrb[0].mxu0
    %3183 = vdwg.mxu0
    %3184 = vrot.lane.b32.xlu0 %v2270, 112
    %v3185 = vpop.permute.xlu0 %3184
    %3186 = vrot.lane.b32.xlu0 %v2270, 80
    %v3187 = vpop.permute.xlu0 %3186
    %v3188 = vsel %vm206, %v3185, 0
    %v3190 = vsel %vm206, %v3187, 0
    %3192 = vmatprep.subr.mxu0 0.0
    %3193 = vmatpush1.xpose.msra.mxu0 %v3190
    %3194 = vmatprep.subr.mxu0 0.0
    %3195 = vmatpush1.xpose.msra.mxu0 0.0
    %3196 = vmatprep.subr.mxu0 0.0
    %3197 = vmatpush1.xpose.msra.mxu0 0.0
    %3198 = vmatprep.subr.mxu0 0.0
    %3199 = vmatpush1.xpose.msra.mxu0 0.0
    %3200 = vmatprep.subr.mxu0 0.0
    %3201 = vmatpush1.xpose.msra.mxu0 0.0
    %3202 = vmatprep.subr.mxu0 0.0
    %3203 = vmatpush1.xpose.msra.mxu0 0.0
    %3204 = vmatprep.subr.mxu0 0.0
    %3205 = vmatpush1.xpose.msra.mxu0 0.0
    %3206 = vmatprep.subr.mxu0 0.0
    %3207 = vmatpush1.xpose.msra.mxu0 0.0
    %3208 = vmatprep.subr.mxu0 0.0
    %3209 = vmatpush1.xpose.msra.mxu0 0.0
    %3210 = vmatprep.subr.mxu0 0.0
    %3211 = vmatpush1.xpose.msra.mxu0 0.0
    %3212 = vmatprep.subr.mxu0 0.0
    %3213 = vmatpush1.xpose.msra.mxu0 0.0
    %3214 = vmatprep.subr.mxu0 0.0
    %3215 = vmatpush1.xpose.msra.mxu0 0.0
    %3216 = vmatprep.subr.mxu0 0.0
    %3217 = vmatpush1.xpose.msra.mxu0 0.0
    %3218 = vmatprep.subr.mxu0 0.0
    %3219 = vmatpush1.xpose.msra.mxu0 0.0
    %3220 = vmatprep.subr.mxu0 0.0
    %3221 = vmatpush1.xpose.msra.mxu0 0.0
    %3222 = vmatprep.subr.mxu0 0.0
    %3223 = vmatpush1.xpose.msra.mxu0 0.0
    %3224 = vmatprep.subr.mxu0 0.0
    %3225 = vmatpush1.xpose.msra.mxu0 0.0
    %3226 = vmatprep.subr.mxu0 0.0
    %3227 = vmatpush1.xpose.msra.mxu0 0.0
    %3228 = vmatprep.subr.mxu0 0.0
    %3229 = vmatpush1.xpose.msra.mxu0 0.0
    %3230 = vmatprep.subr.mxu0 0.0
    %3231 = vmatpush1.xpose.msra.mxu0 0.0
    %3232 = vmatprep.subr.mxu0 0.0
    %3233 = vmatpush1.xpose.msra.mxu0 0.0
    %3234 = vmatprep.subr.mxu0 0.0
    %3235 = vmatpush1.xpose.msra.mxu0 0.0
    %3236 = vmatprep.subr.mxu0 0.0
    %3237 = vmatpush1.xpose.msra.mxu0 0.0
    %3238 = vmatprep.subr.mxu0 0.0
    %3239 = vmatpush1.xpose.msra.mxu0 0.0
    %3240 = vmatprep.subr.mxu0 0.0
    %3241 = vmatpush1.xpose.msra.mxu0 0.0
    %3242 = vmatprep.subr.mxu0 0.0
    %3243 = vmatpush1.xpose.msra.mxu0 0.0
    %3244 = vmatprep.subr.mxu0 0.0
    %3245 = vmatpush1.xpose.msra.mxu0 0.0
    %3246 = vmatprep.subr.mxu0 0.0
    %3247 = vmatpush1.xpose.msra.mxu0 0.0
    %3248 = vmatprep.subr.mxu0 0.0
    %3249 = vmatpush1.xpose.msra.mxu0 0.0
    %3250 = vmatprep.subr.mxu0 0.0
    %3251 = vmatpush1.xpose.msra.mxu0 0.0
    %3252 = vmatprep.subr.mxu0 0.0
    %3253 = vmatpush1.xpose.msra.mxu0 0.0
    %3254 = vmatprep.subr.mxu0 0.0
    %3255 = vmatpush1.xpose.msra.mxu0 0.0
    %3256 = vmatprep.mubr.f32.mxu0 0.0
    %3257 = vmatmul.mubr.f32.gmra.mrb[0].mxu0 %v3188
    %v3258 = vpop.f32.mrb[0].mxu0
    %v3259 = vadd.f32 0.0, %v3258
    %v3260 = vpop.f32.mrb[0].mxu0
    %3261 = vdwg.mxu0
    %v3262 = vmul.f32 %v3181, 0.35355338
    %v3263 = vmul.f32 %v3259, 0.35355338
    %v3264 = vsel %vm60, %v3262, -1e+30
    %v3265 = vsel %vm60, %v3263, -1e+30
    %v3266 = vsel %vm206, %v3264, -inf
    %3267 = vmax.xlane.f32.xlu0 %v3266
    %v3268 = vpop.xlane.xlu0 %3267
    %v3269 = vsel %vm206, %v3265, -inf
    %3270 = vmax.xlane.f32.xlu0 %v3269
    %v3271 = vpop.xlane.xlu0 %3270
    %v3272 = vsub.f32 %v3264, %v3268
    %v3273 = vsub.f32 %v3265, %v3271
    %v3274 = vmul.f32 %v3272, 1.442695
    %v3275 = vpow.pop %v3274
    %v3276 = vmul.f32 %v3273, 1.442695
    %v3277 = vpow.pop %v3276
    %v3278 = vsel %vm206, %v3275, 0.0
    %3279 = vadd.xlane.f32.xlu0 %v3278
    %v3280 = vpop.xlane.xlu0 %3279
    %v3281 = vsel %vm206, %v3277, 0.0
    %3282 = vadd.xlane.f32.xlu0 %v3281
    %v3283 = vpop.xlane.xlu0 %3282
    %v3284 = vrcp.pop %v3280
    %v3285 = vrcp.pop %v3283
    %v3286 = vmul.f32 %v3275, %v3284
    %v3287 = vmul.f32 %v3277, %v3285
    %3288 = vrot.lane.b32.xlu0 %v2265, 48
    %v3289 = vpop.permute.xlu0 %3288
    %v3292 = vsel %vm206, %v3286, 0
    %3294 = vmatprep.subr.mxu0 0.0
    %3295 = vmatpush1.msra.mxu0 %v3289
    %3296 = vmatprep.subr.mxu0 0.0
    %3297 = vmatpush1.msra.mxu0 0.0
    %3298 = vmatprep.subr.mxu0 0.0
    %3299 = vmatpush1.msra.mxu0 0.0
    %3300 = vmatprep.subr.mxu0 0.0
    %3301 = vmatpush1.msra.mxu0 0.0
    %3302 = vmatprep.subr.mxu0 0.0
    %3303 = vmatpush1.msra.mxu0 0.0
    %3304 = vmatprep.subr.mxu0 0.0
    %3305 = vmatpush1.msra.mxu0 0.0
    %3306 = vmatprep.subr.mxu0 0.0
    %3307 = vmatpush1.msra.mxu0 0.0
    %3308 = vmatprep.subr.mxu0 0.0
    %3309 = vmatpush1.msra.mxu0 0.0
    %3310 = vmatprep.subr.mxu0 0.0
    %3311 = vmatpush1.msra.mxu0 0.0
    %3312 = vmatprep.subr.mxu0 0.0
    %3313 = vmatpush1.msra.mxu0 0.0
    %3314 = vmatprep.subr.mxu0 0.0
    %3315 = vmatpush1.msra.mxu0 0.0
    %3316 = vmatprep.subr.mxu0 0.0
    %3317 = vmatpush1.msra.mxu0 0.0
    %3318 = vmatprep.subr.mxu0 0.0
    %3319 = vmatpush1.msra.mxu0 0.0
    %3320 = vmatprep.subr.mxu0 0.0
    %3321 = vmatpush1.msra.mxu0 0.0
    %3322 = vmatprep.subr.mxu0 0.0
    %3323 = vmatpush1.msra.mxu0 0.0
    %3324 = vmatprep.subr.mxu0 0.0
    %3325 = vmatpush1.msra.mxu0 0.0
    %3326 = vmatprep.subr.mxu0 0.0
    %3327 = vmatpush1.msra.mxu0 0.0
    %3328 = vmatprep.subr.mxu0 0.0
    %3329 = vmatpush1.msra.mxu0 0.0
    %3330 = vmatprep.subr.mxu0 0.0
    %3331 = vmatpush1.msra.mxu0 0.0
    %3332 = vmatprep.subr.mxu0 0.0
    %3333 = vmatpush1.msra.mxu0 0.0
    %3334 = vmatprep.subr.mxu0 0.0
    %3335 = vmatpush1.msra.mxu0 0.0
    %3336 = vmatprep.subr.mxu0 0.0
    %3337 = vmatpush1.msra.mxu0 0.0
    %3338 = vmatprep.subr.mxu0 0.0
    %3339 = vmatpush1.msra.mxu0 0.0
    %3340 = vmatprep.subr.mxu0 0.0
    %3341 = vmatpush1.msra.mxu0 0.0
    %3342 = vmatprep.subr.mxu0 0.0
    %3343 = vmatpush1.msra.mxu0 0.0
    %3344 = vmatprep.subr.mxu0 0.0
    %3345 = vmatpush1.msra.mxu0 0.0
    %3346 = vmatprep.subr.mxu0 0.0
    %3347 = vmatpush1.msra.mxu0 0.0
    %3348 = vmatprep.subr.mxu0 0.0
    %3349 = vmatpush1.msra.mxu0 0.0
    %3350 = vmatprep.subr.mxu0 0.0
    %3351 = vmatpush1.msra.mxu0 0.0
    %3352 = vmatprep.subr.mxu0 0.0
    %3353 = vmatpush1.msra.mxu0 0.0
    %3354 = vmatprep.subr.mxu0 0.0
    %3355 = vmatpush1.msra.mxu0 0.0
    %3356 = vmatprep.subr.mxu0 0.0
    %3357 = vmatpush1.msra.mxu0 0.0
    %3358 = vmatprep.mubr.f32.mxu0 0.0
    %3359 = vmatmul.mubr.f32.gmra.mrb[0].mxu0 %v3292
    %v3360 = vpop.f32.mrb[0].mxu0
    %v3361 = vadd.f32 0.0, %v3360
    %v3362 = vpop.f32.mrb[0].mxu0
    %3363 = vdwg.mxu0
    %3364 = vrot.lane.b32.xlu0 %v2270, 48
    %v3365 = vpop.permute.xlu0 %3364
    %v3368 = vsel %vm206, %v3287, 0
    %3370 = vmatprep.subr.mxu0 0.0
    %3371 = vmatpush1.msra.mxu0 %v3365
    %3372 = vmatprep.subr.mxu0 0.0
    %3373 = vmatpush1.msra.mxu0 0.0
    %3374 = vmatprep.subr.mxu0 0.0
    %3375 = vmatpush1.msra.mxu0 0.0
    %3376 = vmatprep.subr.mxu0 0.0
    %3377 = vmatpush1.msra.mxu0 0.0
    %3378 = vmatprep.subr.mxu0 0.0
    %3379 = vmatpush1.msra.mxu0 0.0
    %3380 = vmatprep.subr.mxu0 0.0
    %3381 = vmatpush1.msra.mxu0 0.0
    %3382 = vmatprep.subr.mxu0 0.0
    %3383 = vmatpush1.msra.mxu0 0.0
    %3384 = vmatprep.subr.mxu0 0.0
    %3385 = vmatpush1.msra.mxu0 0.0
    %3386 = vmatprep.subr.mxu0 0.0
    %3387 = vmatpush1.msra.mxu0 0.0
    %3388 = vmatprep.subr.mxu0 0.0
    %3389 = vmatpush1.msra.mxu0 0.0
    %3390 = vmatprep.subr.mxu0 0.0
    %3391 = vmatpush1.msra.mxu0 0.0
    %3392 = vmatprep.subr.mxu0 0.0
    %3393 = vmatpush1.msra.mxu0 0.0
    %3394 = vmatprep.subr.mxu0 0.0
    %3395 = vmatpush1.msra.mxu0 0.0
    %3396 = vmatprep.subr.mxu0 0.0
    %3397 = vmatpush1.msra.mxu0 0.0
    %3398 = vmatprep.subr.mxu0 0.0
    %3399 = vmatpush1.msra.mxu0 0.0
    %3400 = vmatprep.subr.mxu0 0.0
    %3401 = vmatpush1.msra.mxu0 0.0
    %3402 = vmatprep.subr.mxu0 0.0
    %3403 = vmatpush1.msra.mxu0 0.0
    %3404 = vmatprep.subr.mxu0 0.0
    %3405 = vmatpush1.msra.mxu0 0.0
    %3406 = vmatprep.subr.mxu0 0.0
    %3407 = vmatpush1.msra.mxu0 0.0
    %3408 = vmatprep.subr.mxu0 0.0
    %3409 = vmatpush1.msra.mxu0 0.0
    %3410 = vmatprep.subr.mxu0 0.0
    %3411 = vmatpush1.msra.mxu0 0.0
    %3412 = vmatprep.subr.mxu0 0.0
    %3413 = vmatpush1.msra.mxu0 0.0
    %3414 = vmatprep.subr.mxu0 0.0
    %3415 = vmatpush1.msra.mxu0 0.0
    %3416 = vmatprep.subr.mxu0 0.0
    %3417 = vmatpush1.msra.mxu0 0.0
    %3418 = vmatprep.subr.mxu0 0.0
    %3419 = vmatpush1.msra.mxu0 0.0
    %3420 = vmatprep.subr.mxu0 0.0
    %3421 = vmatpush1.msra.mxu0 0.0
    %3422 = vmatprep.subr.mxu0 0.0
    %3423 = vmatpush1.msra.mxu0 0.0
    %3424 = vmatprep.subr.mxu0 0.0
    %3425 = vmatpush1.msra.mxu0 0.0
    %3426 = vmatprep.subr.mxu0 0.0
    %3427 = vmatpush1.msra.mxu0 0.0
    %3428 = vmatprep.subr.mxu0 0.0
    %3429 = vmatpush1.msra.mxu0 0.0
    %3430 = vmatprep.subr.mxu0 0.0
    %3431 = vmatpush1.msra.mxu0 0.0
    %3432 = vmatprep.subr.mxu0 0.0
    %3433 = vmatpush1.msra.mxu0 0.0
    %3434 = vmatprep.mubr.f32.mxu0 0.0
    %3435 = vmatmul.mubr.f32.gmra.mrb[0].mxu0 %v3368
    %v3436 = vpop.f32.mrb[0].mxu0
    %v3437 = vadd.f32 0.0, %v3436
    %v3438 = vpop.f32.mrb[0].mxu0
    %3439 = vdwg.mxu0
    %v3441 = vsel %vm206, %v3361, 0
    %v3444 = vsel %vm206, %v3437, 0
    %3446 = vmatprep.subr.mxu0 0.0
    %3447 = vmatpush1.msra.mxu0 %v2276
    %3448 = vmatprep.subr.mxu0 0.0
    %3449 = vmatpush1.msra.mxu0 0.0
    %3450 = vmatprep.subr.mxu0 0.0
    %3451 = vmatpush1.msra.mxu0 0.0
    %3452 = vmatprep.subr.mxu0 0.0
    %3453 = vmatpush1.msra.mxu0 0.0
    %3454 = vmatprep.subr.mxu0 0.0
    %3455 = vmatpush1.msra.mxu0 0.0
    %3456 = vmatprep.subr.mxu0 0.0
    %3457 = vmatpush1.msra.mxu0 0.0
    %3458 = vmatprep.subr.mxu0 0.0
    %3459 = vmatpush1.msra.mxu0 0.0
    %3460 = vmatprep.subr.mxu0 0.0
    %3461 = vmatpush1.msra.mxu0 0.0
    %3462 = vmatprep.subr.mxu0 0.0
    %3463 = vmatpush1.msra.mxu0 0.0
    %3464 = vmatprep.subr.mxu0 0.0
    %3465 = vmatpush1.msra.mxu0 0.0
    %3466 = vmatprep.subr.mxu0 0.0
    %3467 = vmatpush1.msra.mxu0 0.0
    %3468 = vmatprep.subr.mxu0 0.0
    %3469 = vmatpush1.msra.mxu0 0.0
    %3470 = vmatprep.subr.mxu0 0.0
    %3471 = vmatpush1.msra.mxu0 0.0
    %3472 = vmatprep.subr.mxu0 0.0
    %3473 = vmatpush1.msra.mxu0 0.0
    %3474 = vmatprep.subr.mxu0 0.0
    %3475 = vmatpush1.msra.mxu0 0.0
    %3476 = vmatprep.subr.mxu0 0.0
    %3477 = vmatpush1.msra.mxu0 0.0
    %3478 = vmatprep.subr.mxu0 0.0
    %3479 = vmatpush1.msra.mxu0 0.0
    %3480 = vmatprep.subr.mxu0 0.0
    %3481 = vmatpush1.msra.mxu0 0.0
    %3482 = vmatprep.subr.mxu0 0.0
    %3483 = vmatpush1.msra.mxu0 0.0
    %3484 = vmatprep.subr.mxu0 0.0
    %3485 = vmatpush1.msra.mxu0 0.0
    %3486 = vmatprep.subr.mxu0 0.0
    %3487 = vmatpush1.msra.mxu0 0.0
    %3488 = vmatprep.subr.mxu0 0.0
    %3489 = vmatpush1.msra.mxu0 0.0
    %3490 = vmatprep.subr.mxu0 0.0
    %3491 = vmatpush1.msra.mxu0 0.0
    %3492 = vmatprep.subr.mxu0 0.0
    %3493 = vmatpush1.msra.mxu0 0.0
    %3494 = vmatprep.subr.mxu0 0.0
    %3495 = vmatpush1.msra.mxu0 0.0
    %3496 = vmatprep.subr.mxu0 0.0
    %3497 = vmatpush1.msra.mxu0 0.0
    %3498 = vmatprep.subr.mxu0 0.0
    %3499 = vmatpush1.msra.mxu0 0.0
    %3500 = vmatprep.subr.mxu0 0.0
    %3501 = vmatpush1.msra.mxu0 0.0
    %3502 = vmatprep.subr.mxu0 0.0
    %3503 = vmatpush1.msra.mxu0 0.0
    %3504 = vmatprep.subr.mxu0 0.0
    %3505 = vmatpush1.msra.mxu0 0.0
    %3506 = vmatprep.subr.mxu0 0.0
    %3507 = vmatpush1.msra.mxu0 0.0
    %3508 = vmatprep.subr.mxu0 0.0
    %3509 = vmatpush1.msra.mxu0 0.0
    %3510 = vmatprep.mubr.f32.mxu0 0.0
    %3511 = vmatmul.mubr.f32.gmra.mrb[0].mxu0 %v3441
    %v3512 = vpop.f32.mrb[0].mxu0
    %v3513 = vadd.f32 0.0, %v3512
    %v3514 = vpop.f32.mrb[0].mxu0
    %3515 = vmatprep.mubr.f32.mxu0 0.0
    %3516 = vmatmul.mubr.f32.gmra.mrb[0].mxu0 %v3444
    %v3517 = vpop.f32.mrb[0].mxu0
    %v3518 = vadd.f32 0.0, %v3517
    %v3519 = vpop.f32.mrb[0].mxu0
    %3520 = vdwg.mxu0
    %v3521 = vadd.f32 %v3098, %v3513
    %v3522 = vadd.f32 %v3103, %v3518
    %3523 = vrot.lane.b32.xlu0 %v2265, 104
    %v3524 = vpop.permute.xlu0 %3523
    %3525 = vrot.lane.b32.xlu0 %v2265, 72
    %v3526 = vpop.permute.xlu0 %3525
    %v3527 = vsel %vm206, %v3524, 0
    %v3529 = vsel %vm206, %v3526, 0
    %3531 = vmatprep.subr.mxu0 0.0
    %3532 = vmatpush1.xpose.msra.mxu0 %v3529
    %3533 = vmatprep.subr.mxu0 0.0
    %3534 = vmatpush1.xpose.msra.mxu0 0.0
    %3535 = vmatprep.subr.mxu0 0.0
    %3536 = vmatpush1.xpose.msra.mxu0 0.0
    %3537 = vmatprep.subr.mxu0 0.0
    %3538 = vmatpush1.xpose.msra.mxu0 0.0
    %3539 = vmatprep.subr.mxu0 0.0
    %3540 = vmatpush1.xpose.msra.mxu0 0.0
    %3541 = vmatprep.subr.mxu0 0.0
    %3542 = vmatpush1.xpose.msra.mxu0 0.0
    %3543 = vmatprep.subr.mxu0 0.0
    %3544 = vmatpush1.xpose.msra.mxu0 0.0
    %3545 = vmatprep.subr.mxu0 0.0
    %3546 = vmatpush1.xpose.msra.mxu0 0.0
    %3547 = vmatprep.subr.mxu0 0.0
    %3548 = vmatpush1.xpose.msra.mxu0 0.0
    %3549 = vmatprep.subr.mxu0 0.0
    %3550 = vmatpush1.xpose.msra.mxu0 0.0
    %3551 = vmatprep.subr.mxu0 0.0
    %3552 = vmatpush1.xpose.msra.mxu0 0.0
    %3553 = vmatprep.subr.mxu0 0.0
    %3554 = vmatpush1.xpose.msra.mxu0 0.0
    %3555 = vmatprep.subr.mxu0 0.0
    %3556 = vmatpush1.xpose.msra.mxu0 0.0
    %3557 = vmatprep.subr.mxu0 0.0
    %3558 = vmatpush1.xpose.msra.mxu0 0.0
    %3559 = vmatprep.subr.mxu0 0.0
    %3560 = vmatpush1.xpose.msra.mxu0 0.0
    %3561 = vmatprep.subr.mxu0 0.0
    %3562 = vmatpush1.xpose.msra.mxu0 0.0
    %3563 = vmatprep.subr.mxu0 0.0
    %3564 = vmatpush1.xpose.msra.mxu0 0.0
    %3565 = vmatprep.subr.mxu0 0.0
    %3566 = vmatpush1.xpose.msra.mxu0 0.0
    %3567 = vmatprep.subr.mxu0 0.0
    %3568 = vmatpush1.xpose.msra.mxu0 0.0
    %3569 = vmatprep.subr.mxu0 0.0
    %3570 = vmatpush1.xpose.msra.mxu0 0.0
    %3571 = vmatprep.subr.mxu0 0.0
    %3572 = vmatpush1.xpose.msra.mxu0 0.0
    %3573 = vmatprep.subr.mxu0 0.0
    %3574 = vmatpush1.xpose.msra.mxu0 0.0
    %3575 = vmatprep.subr.mxu0 0.0
    %3576 = vmatpush1.xpose.msra.mxu0 0.0
    %3577 = vmatprep.subr.mxu0 0.0
    %3578 = vmatpush1.xpose.msra.mxu0 0.0
    %3579 = vmatprep.subr.mxu0 0.0
    %3580 = vmatpush1.xpose.msra.mxu0 0.0
    %3581 = vmatprep.subr.mxu0 0.0
    %3582 = vmatpush1.xpose.msra.mxu0 0.0
    %3583 = vmatprep.subr.mxu0 0.0
    %3584 = vmatpush1.xpose.msra.mxu0 0.0
    %3585 = vmatprep.subr.mxu0 0.0
    %3586 = vmatpush1.xpose.msra.mxu0 0.0
    %3587 = vmatprep.subr.mxu0 0.0
    %3588 = vmatpush1.xpose.msra.mxu0 0.0
    %3589 = vmatprep.subr.mxu0 0.0
    %3590 = vmatpush1.xpose.msra.mxu0 0.0
    %3591 = vmatprep.subr.mxu0 0.0
    %3592 = vmatpush1.xpose.msra.mxu0 0.0
    %3593 = vmatprep.subr.mxu0 0.0
    %3594 = vmatpush1.xpose.msra.mxu0 0.0
    %3595 = vmatprep.mubr.f32.mxu0 0.0
    %3596 = vmatmul.mubr.f32.gmra.mrb[0].mxu0 %v3527
    %v3597 = vpop.f32.mrb[0].mxu0
    %v3598 = vadd.f32 0.0, %v3597
    %v3599 = vpop.f32.mrb[0].mxu0
    %3600 = vdwg.mxu0
    %3601 = vrot.lane.b32.xlu0 %v2270, 104
    %v3602 = vpop.permute.xlu0 %3601
    %3603 = vrot.lane.b32.xlu0 %v2270, 72
    %v3604 = vpop.permute.xlu0 %3603
    %v3605 = vsel %vm206, %v3602, 0
    %v3607 = vsel %vm206, %v3604, 0
    %3609 = vmatprep.subr.mxu0 0.0
    %3610 = vmatpush1.xpose.msra.mxu0 %v3607
    %3611 = vmatprep.subr.mxu0 0.0
    %3612 = vmatpush1.xpose.msra.mxu0 0.0
    %3613 = vmatprep.subr.mxu0 0.0
    %3614 = vmatpush1.xpose.msra.mxu0 0.0
    %3615 = vmatprep.subr.mxu0 0.0
    %3616 = vmatpush1.xpose.msra.mxu0 0.0
    %3617 = vmatprep.subr.mxu0 0.0
    %3618 = vmatpush1.xpose.msra.mxu0 0.0
    %3619 = vmatprep.subr.mxu0 0.0
    %3620 = vmatpush1.xpose.msra.mxu0 0.0
    %3621 = vmatprep.subr.mxu0 0.0
    %3622 = vmatpush1.xpose.msra.mxu0 0.0
    %3623 = vmatprep.subr.mxu0 0.0
    %3624 = vmatpush1.xpose.msra.mxu0 0.0
    %3625 = vmatprep.subr.mxu0 0.0
    %3626 = vmatpush1.xpose.msra.mxu0 0.0
    %3627 = vmatprep.subr.mxu0 0.0
    %3628 = vmatpush1.xpose.msra.mxu0 0.0
    %3629 = vmatprep.subr.mxu0 0.0
    %3630 = vmatpush1.xpose.msra.mxu0 0.0
    %3631 = vmatprep.subr.mxu0 0.0
    %3632 = vmatpush1.xpose.msra.mxu0 0.0
    %3633 = vmatprep.subr.mxu0 0.0
    %3634 = vmatpush1.xpose.msra.mxu0 0.0
    %3635 = vmatprep.subr.mxu0 0.0
    %3636 = vmatpush1.xpose.msra.mxu0 0.0
    %3637 = vmatprep.subr.mxu0 0.0
    %3638 = vmatpush1.xpose.msra.mxu0 0.0
    %3639 = vmatprep.subr.mxu0 0.0
    %3640 = vmatpush1.xpose.msra.mxu0 0.0
    %3641 = vmatprep.subr.mxu0 0.0
    %3642 = vmatpush1.xpose.msra.mxu0 0.0
    %3643 = vmatprep.subr.mxu0 0.0
    %3644 = vmatpush1.xpose.msra.mxu0 0.0
    %3645 = vmatprep.subr.mxu0 0.0
    %3646 = vmatpush1.xpose.msra.mxu0 0.0
    %3647 = vmatprep.subr.mxu0 0.0
    %3648 = vmatpush1.xpose.msra.mxu0 0.0
    %3649 = vmatprep.subr.mxu0 0.0
    %3650 = vmatpush1.xpose.msra.mxu0 0.0
    %3651 = vmatprep.subr.mxu0 0.0
    %3652 = vmatpush1.xpose.msra.mxu0 0.0
    %3653 = vmatprep.subr.mxu0 0.0
    %3654 = vmatpush1.xpose.msra.mxu0 0.0
    %3655 = vmatprep.subr.mxu0 0.0
    %3656 = vmatpush1.xpose.msra.mxu0 0.0
    %3657 = vmatprep.subr.mxu0 0.0
    %3658 = vmatpush1.xpose.msra.mxu0 0.0
    %3659 = vmatprep.subr.mxu0 0.0
    %3660 = vmatpush1.xpose.msra.mxu0 0.0
    %3661 = vmatprep.subr.mxu0 0.0
    %3662 = vmatpush1.xpose.msra.mxu0 0.0
    %3663 = vmatprep.subr.mxu0 0.0
    %3664 = vmatpush1.xpose.msra.mxu0 0.0
    %3665 = vmatprep.subr.mxu0 0.0
    %3666 = vmatpush1.xpose.msra.mxu0 0.0
    %3667 = vmatprep.subr.mxu0 0.0
    %3668 = vmatpush1.xpose.msra.mxu0 0.0
    %3669 = vmatprep.subr.mxu0 0.0
    %3670 = vmatpush1.xpose.msra.mxu0 0.0
    %3671 = vmatprep.subr.mxu0 0.0
    %3672 = vmatpush1.xpose.msra.mxu0 0.0
    %3673 = vmatprep.mubr.f32.mxu0 0.0
    %3674 = vmatmul.mubr.f32.gmra.mrb[0].mxu0 %v3605
    %v3675 = vpop.f32.mrb[0].mxu0
    %v3676 = vadd.f32 0.0, %v3675
    %v3677 = vpop.f32.mrb[0].mxu0
    %3678 = vdwg.mxu0
    %v3679 = vmul.f32 %v3598, 0.35355338
    %v3680 = vmul.f32 %v3676, 0.35355338
    %v3681 = vsel %vm60, %v3679, -1e+30
    %v3682 = vsel %vm60, %v3680, -1e+30
    %v3683 = vsel %vm206, %v3681, -inf
    %3684 = vmax.xlane.f32.xlu0 %v3683
    %v3685 = vpop.xlane.xlu0 %3684
    %v3686 = vsel %vm206, %v3682, -inf
    %3687 = vmax.xlane.f32.xlu0 %v3686
    %v3688 = vpop.xlane.xlu0 %3687
    %v3689 = vsub.f32 %v3681, %v3685
    %v3690 = vsub.f32 %v3682, %v3688
    %v3691 = vmul.f32 %v3689, 1.442695
    %v3692 = vpow.pop %v3691
    %v3693 = vmul.f32 %v3690, 1.442695
    %v3694 = vpow.pop %v3693
    %v3695 = vsel %vm206, %v3692, 0.0
    %3696 = vadd.xlane.f32.xlu0 %v3695
    %v3697 = vpop.xlane.xlu0 %3696
    %v3698 = vsel %vm206, %v3694, 0.0
    %3699 = vadd.xlane.f32.xlu0 %v3698
    %v3700 = vpop.xlane.xlu0 %3699
    %v3701 = vrcp.pop %v3697
    %v3702 = vrcp.pop %v3700
    %v3703 = vmul.f32 %v3692, %v3701
    %v3704 = vmul.f32 %v3694, %v3702
    %3705 = vrot.lane.b32.xlu0 %v2265, 40
    %v3706 = vpop.permute.xlu0 %3705
    %v3709 = vsel %vm206, %v3703, 0
    %3711 = vmatprep.subr.mxu0 0.0
    %3712 = vmatpush1.msra.mxu0 %v3706
    %3713 = vmatprep.subr.mxu0 0.0
    %3714 = vmatpush1.msra.mxu0 0.0
    %3715 = vmatprep.subr.mxu0 0.0
    %3716 = vmatpush1.msra.mxu0 0.0
    %3717 = vmatprep.subr.mxu0 0.0
    %3718 = vmatpush1.msra.mxu0 0.0
    %3719 = vmatprep.subr.mxu0 0.0
    %3720 = vmatpush1.msra.mxu0 0.0
    %3721 = vmatprep.subr.mxu0 0.0
    %3722 = vmatpush1.msra.mxu0 0.0
    %3723 = vmatprep.subr.mxu0 0.0
    %3724 = vmatpush1.msra.mxu0 0.0
    %3725 = vmatprep.subr.mxu0 0.0
    %3726 = vmatpush1.msra.mxu0 0.0
    %3727 = vmatprep.subr.mxu0 0.0
    %3728 = vmatpush1.msra.mxu0 0.0
    %3729 = vmatprep.subr.mxu0 0.0
    %3730 = vmatpush1.msra.mxu0 0.0
    %3731 = vmatprep.subr.mxu0 0.0
    %3732 = vmatpush1.msra.mxu0 0.0
    %3733 = vmatprep.subr.mxu0 0.0
    %3734 = vmatpush1.msra.mxu0 0.0
    %3735 = vmatprep.subr.mxu0 0.0
    %3736 = vmatpush1.msra.mxu0 0.0
    %3737 = vmatprep.subr.mxu0 0.0
    %3738 = vmatpush1.msra.mxu0 0.0
    %3739 = vmatprep.subr.mxu0 0.0
    %3740 = vmatpush1.msra.mxu0 0.0
    %3741 = vmatprep.subr.mxu0 0.0
    %3742 = vmatpush1.msra.mxu0 0.0
    %3743 = vmatprep.subr.mxu0 0.0
    %3744 = vmatpush1.msra.mxu0 0.0
    %3745 = vmatprep.subr.mxu0 0.0
    %3746 = vmatpush1.msra.mxu0 0.0
    %3747 = vmatprep.subr.mxu0 0.0
    %3748 = vmatpush1.msra.mxu0 0.0
    %3749 = vmatprep.subr.mxu0 0.0
    %3750 = vmatpush1.msra.mxu0 0.0
    %3751 = vmatprep.subr.mxu0 0.0
    %3752 = vmatpush1.msra.mxu0 0.0
    %3753 = vmatprep.subr.mxu0 0.0
    %3754 = vmatpush1.msra.mxu0 0.0
    %3755 = vmatprep.subr.mxu0 0.0
    %3756 = vmatpush1.msra.mxu0 0.0
    %3757 = vmatprep.subr.mxu0 0.0
    %3758 = vmatpush1.msra.mxu0 0.0
    %3759 = vmatprep.subr.mxu0 0.0
    %3760 = vmatpush1.msra.mxu0 0.0
    %3761 = vmatprep.subr.mxu0 0.0
    %3762 = vmatpush1.msra.mxu0 0.0
    %3763 = vmatprep.subr.mxu0 0.0
    %3764 = vmatpush1.msra.mxu0 0.0
    %3765 = vmatprep.subr.mxu0 0.0
    %3766 = vmatpush1.msra.mxu0 0.0
    %3767 = vmatprep.subr.mxu0 0.0
    %3768 = vmatpush1.msra.mxu0 0.0
    %3769 = vmatprep.subr.mxu0 0.0
    %3770 = vmatpush1.msra.mxu0 0.0
    %3771 = vmatprep.subr.mxu0 0.0
    %3772 = vmatpush1.msra.mxu0 0.0
    %3773 = vmatprep.subr.mxu0 0.0
    %3774 = vmatpush1.msra.mxu0 0.0
    %3775 = vmatprep.mubr.f32.mxu0 0.0
    %3776 = vmatmul.mubr.f32.gmra.mrb[0].mxu0 %v3709
    %v3777 = vpop.f32.mrb[0].mxu0
    %v3778 = vadd.f32 0.0, %v3777
    %v3779 = vpop.f32.mrb[0].mxu0
    %3780 = vdwg.mxu0
    %3781 = vrot.lane.b32.xlu0 %v2270, 40
    %v3782 = vpop.permute.xlu0 %3781
    %v3785 = vsel %vm206, %v3704, 0
    %3787 = vmatprep.subr.mxu0 0.0
    %3788 = vmatpush1.msra.mxu0 %v3782
    %3789 = vmatprep.subr.mxu0 0.0
    %3790 = vmatpush1.msra.mxu0 0.0
    %3791 = vmatprep.subr.mxu0 0.0
    %3792 = vmatpush1.msra.mxu0 0.0
    %3793 = vmatprep.subr.mxu0 0.0
    %3794 = vmatpush1.msra.mxu0 0.0
    %3795 = vmatprep.subr.mxu0 0.0
    %3796 = vmatpush1.msra.mxu0 0.0
    %3797 = vmatprep.subr.mxu0 0.0
    %3798 = vmatpush1.msra.mxu0 0.0
    %3799 = vmatprep.subr.mxu0 0.0
    %3800 = vmatpush1.msra.mxu0 0.0
    %3801 = vmatprep.subr.mxu0 0.0
    %3802 = vmatpush1.msra.mxu0 0.0
    %3803 = vmatprep.subr.mxu0 0.0
    %3804 = vmatpush1.msra.mxu0 0.0
    %3805 = vmatprep.subr.mxu0 0.0
    %3806 = vmatpush1.msra.mxu0 0.0
    %3807 = vmatprep.subr.mxu0 0.0
    %3808 = vmatpush1.msra.mxu0 0.0
    %3809 = vmatprep.subr.mxu0 0.0
    %3810 = vmatpush1.msra.mxu0 0.0
    %3811 = vmatprep.subr.mxu0 0.0
    %3812 = vmatpush1.msra.mxu0 0.0
    %3813 = vmatprep.subr.mxu0 0.0
    %3814 = vmatpush1.msra.mxu0 0.0
    %3815 = vmatprep.subr.mxu0 0.0
    %3816 = vmatpush1.msra.mxu0 0.0
    %3817 = vmatprep.subr.mxu0 0.0
    %3818 = vmatpush1.msra.mxu0 0.0
    %3819 = vmatprep.subr.mxu0 0.0
    %3820 = vmatpush1.msra.mxu0 0.0
    %3821 = vmatprep.subr.mxu0 0.0
    %3822 = vmatpush1.msra.mxu0 0.0
    %3823 = vmatprep.subr.mxu0 0.0
    %3824 = vmatpush1.msra.mxu0 0.0
    %3825 = vmatprep.subr.mxu0 0.0
    %3826 = vmatpush1.msra.mxu0 0.0
    %3827 = vmatprep.subr.mxu0 0.0
    %3828 = vmatpush1.msra.mxu0 0.0
    %3829 = vmatprep.subr.mxu0 0.0
    %3830 = vmatpush1.msra.mxu0 0.0
    %3831 = vmatprep.subr.mxu0 0.0
    %3832 = vmatpush1.msra.mxu0 0.0
    %3833 = vmatprep.subr.mxu0 0.0
    %3834 = vmatpush1.msra.mxu0 0.0
    %3835 = vmatprep.subr.mxu0 0.0
    %3836 = vmatpush1.msra.mxu0 0.0
    %3837 = vmatprep.subr.mxu0 0.0
    %3838 = vmatpush1.msra.mxu0 0.0
    %3839 = vmatprep.subr.mxu0 0.0
    %3840 = vmatpush1.msra.mxu0 0.0
    %3841 = vmatprep.subr.mxu0 0.0
    %3842 = vmatpush1.msra.mxu0 0.0
    %3843 = vmatprep.subr.mxu0 0.0
    %3844 = vmatpush1.msra.mxu0 0.0
    %3845 = vmatprep.subr.mxu0 0.0
    %3846 = vmatpush1.msra.mxu0 0.0
    %3847 = vmatprep.subr.mxu0 0.0
    %3848 = vmatpush1.msra.mxu0 0.0
    %3849 = vmatprep.subr.mxu0 0.0
    %3850 = vmatpush1.msra.mxu0 0.0
    %3851 = vmatprep.mubr.f32.mxu0 0.0
    %3852 = vmatmul.mubr.f32.gmra.mrb[0].mxu0 %v3785
    %v3853 = vpop.f32.mrb[0].mxu0
    %v3854 = vadd.f32 0.0, %v3853
    %v3855 = vpop.f32.mrb[0].mxu0
    %3856 = vdwg.mxu0
    %v3858 = vsel %vm206, %v3778, 0
    %v3861 = vsel %vm206, %v3854, 0
    %3863 = vmatprep.subr.mxu0 0.0
    %3864 = vmatpush1.msra.mxu0 %v2277
    %3865 = vmatprep.subr.mxu0 0.0
    %3866 = vmatpush1.msra.mxu0 0.0
    %3867 = vmatprep.subr.mxu0 0.0
    %3868 = vmatpush1.msra.mxu0 0.0
    %3869 = vmatprep.subr.mxu0 0.0
    %3870 = vmatpush1.msra.mxu0 0.0
    %3871 = vmatprep.subr.mxu0 0.0
    %3872 = vmatpush1.msra.mxu0 0.0
    %3873 = vmatprep.subr.mxu0 0.0
    %3874 = vmatpush1.msra.mxu0 0.0
    %3875 = vmatprep.subr.mxu0 0.0
    %3876 = vmatpush1.msra.mxu0 0.0
    %3877 = vmatprep.subr.mxu0 0.0
    %3878 = vmatpush1.msra.mxu0 0.0
    %3879 = vmatprep.subr.mxu0 0.0
    %3880 = vmatpush1.msra.mxu0 0.0
    %3881 = vmatprep.subr.mxu0 0.0
    %3882 = vmatpush1.msra.mxu0 0.0
    %3883 = vmatprep.subr.mxu0 0.0
    %3884 = vmatpush1.msra.mxu0 0.0
    %3885 = vmatprep.subr.mxu0 0.0
    %3886 = vmatpush1.msra.mxu0 0.0
    %3887 = vmatprep.subr.mxu0 0.0
    %3888 = vmatpush1.msra.mxu0 0.0
    %3889 = vmatprep.subr.mxu0 0.0
    %3890 = vmatpush1.msra.mxu0 0.0
    %3891 = vmatprep.subr.mxu0 0.0
    %3892 = vmatpush1.msra.mxu0 0.0
    %3893 = vmatprep.subr.mxu0 0.0
    %3894 = vmatpush1.msra.mxu0 0.0
    %3895 = vmatprep.subr.mxu0 0.0
    %3896 = vmatpush1.msra.mxu0 0.0
    %3897 = vmatprep.subr.mxu0 0.0
    %3898 = vmatpush1.msra.mxu0 0.0
    %3899 = vmatprep.subr.mxu0 0.0
    %3900 = vmatpush1.msra.mxu0 0.0
    %3901 = vmatprep.subr.mxu0 0.0
    %3902 = vmatpush1.msra.mxu0 0.0
    %3903 = vmatprep.subr.mxu0 0.0
    %3904 = vmatpush1.msra.mxu0 0.0
    %3905 = vmatprep.subr.mxu0 0.0
    %3906 = vmatpush1.msra.mxu0 0.0
    %3907 = vmatprep.subr.mxu0 0.0
    %3908 = vmatpush1.msra.mxu0 0.0
    %3909 = vmatprep.subr.mxu0 0.0
    %3910 = vmatpush1.msra.mxu0 0.0
    %3911 = vmatprep.subr.mxu0 0.0
    %3912 = vmatpush1.msra.mxu0 0.0
    %3913 = vmatprep.subr.mxu0 0.0
    %3914 = vmatpush1.msra.mxu0 0.0
    %3915 = vmatprep.subr.mxu0 0.0
    %3916 = vmatpush1.msra.mxu0 0.0
    %3917 = vmatprep.subr.mxu0 0.0
    %3918 = vmatpush1.msra.mxu0 0.0
    %3919 = vmatprep.subr.mxu0 0.0
    %3920 = vmatpush1.msra.mxu0 0.0
    %3921 = vmatprep.subr.mxu0 0.0
    %3922 = vmatpush1.msra.mxu0 0.0
    %3923 = vmatprep.subr.mxu0 0.0
    %3924 = vmatpush1.msra.mxu0 0.0
    %3925 = vmatprep.subr.mxu0 0.0
    %3926 = vmatpush1.msra.mxu0 0.0
    %3927 = vmatprep.mubr.f32.mxu0 0.0
    %3928 = vmatmul.mubr.f32.gmra.mrb[0].mxu0 %v3858
    %v3929 = vpop.f32.mrb[0].mxu0
    %v3930 = vadd.f32 0.0, %v3929
    %v3931 = vpop.f32.mrb[0].mxu0
    %3932 = vmatprep.mubr.f32.mxu0 0.0
    %3933 = vmatmul.mubr.f32.gmra.mrb[0].mxu0 %v3861
    %v3934 = vpop.f32.mrb[0].mxu0
    %v3935 = vadd.f32 0.0, %v3934
    %v3936 = vpop.f32.mrb[0].mxu0
    %3937 = vdwg.mxu0
    %v3938 = vadd.f32 %v3521, %v3930
    %v3939 = vadd.f32 %v3522, %v3935
    %v3940 = vadd.f32 %v2131, %v3938
    %v3941 = vadd.f32 %v2132, %v3939
    %s3942 = scalar_lea.vmem %s6, 1
    %v3943 = vld [vmem:[%s3942] sm:$0x1]
    %v3945 = vlaneseq
    %v3946 = vshrl.u32 %v3945, 7
    %v3947 = vsub.s32 0, %v3946
    %v3948 = vrot.slane %v3943, %v3947
    %v3950 = vadd.f32 %v3940, %v3948
    %v3951 = vadd.f32 %v3941, %v3948
    %s3952 = scalar_lea.vmem %s7, 1
    %v3953 = vld [vmem:[%s3952] sm:$0x1]
    %s3954 = scalar_lea.vmem %s8, 1
    %v3955 = vld [vmem:[%s3954] sm:$0x1]
    %v3956 = vsel %vm63, %v3950, 0.0
    %3957 = vadd.xlane.f32.xlu0 %v3956
    %v3958 = vpop.xlane.xlu0 %3957
    %v3959 = vsel %vm63, %v3951, 0.0
    %3960 = vadd.xlane.f32.xlu0 %v3959
    %v3961 = vpop.xlane.xlu0 %3960
    %v3962 = vmul.f32 %v3958, %v70
    %v3963 = vmul.f32 %v3961, %v70
    %v3964 = vsub.f32 %v3950, %v3962
    %v3965 = vsub.f32 %v3951, %v3963
    %v3966 = vmul.f32 %v3964, %v3964
    %v3967 = vmul.f32 %v3965, %v3965
    %v3968 = vsel %vm63, %v3966, 0.0
    %3969 = vadd.xlane.f32.xlu0 %v3968
    %v3970 = vpop.xlane.xlu0 %3969
    %v3971 = vsel %vm63, %v3967, 0.0
    %3972 = vadd.xlane.f32.xlu0 %v3971
    %v3973 = vpop.xlane.xlu0 %3972
    %v3974 = vmul.f32 %v3970, %v70
    %v3975 = vmul.f32 %v3973, %v70
    %v3976 = vadd.f32 %v3974, 1e-05
    %v3977 = vadd.f32 %v3975, 1e-05
    %v3978 = vrsqrt.pop %v3976
    %v3979 = vrsqrt.pop %v3977
    %v3980 = vmul.f32 %v3964, %v3978
    %v3981 = vmul.f32 %v3965, %v3979
    %v3983 = vlaneseq
    %v3984 = vshrl.u32 %v3983, 7
    %v3985 = vsub.s32 0, %v3984
    %v3986 = vrot.slane %v3953, %v3985
    %v3988 = vmul.f32 %v3980, %v3986
    %v3989 = vmul.f32 %v3981, %v3986
    %v3991 = vlaneseq
    %v3992 = vshrl.u32 %v3991, 7
    %v3993 = vsub.s32 0, %v3992
    %v3994 = vrot.slane %v3955, %v3993
    %v3996 = vadd.f32 %v3988, %v3994
    %v3997 = vadd.f32 %v3989, %v3994
    %s3998 = scalar_lea.vmem %s9, 32
    %v3999 = vld [vmem:[%s3998] sm:$0xff]
    %v4000 = vld [vmem:[%s3998 + $0x8] sm:$0xff]
    %v4001 = vld [vmem:[%s3998 + $0x10] sm:$0xff]
    %v4002 = vld [vmem:[%s3998 + $0x18] sm:$0xff]
    %s4003 = scalar_lea.vmem %s10, 1
    %v4004 = vld [vmem:[%s4003] sm:$0x1]
    %v4006 = vlaneseq
    %v4007 = vshrl.u32 %v4006, 7
    %v4008 = vsub.s32 0, %v4007
    %v4009 = vrot.slane %v4004, %v4008
    %v4012 = vsel %vm63, %v3996, 0
    %v4015 = vsel %vm63, %v3997, 0
    %4017 = vmatprep.subr.mxu0 0.0
    %4018 = vmatpush1.msra.mxu0 %v3999
    %4019 = vmatprep.subr.mxu0 0.0
    %4020 = vmatpush1.msra.mxu0 %v4000
    %4021 = vmatprep.subr.mxu0 0.0
    %4022 = vmatpush1.msra.mxu0 %v4001
    %4023 = vmatprep.subr.mxu0 0.0
    %4024 = vmatpush1.msra.mxu0 %v4002
    %4025 = vmatprep.subr.mxu0 0.0
    %4026 = vmatpush1.msra.mxu0 0.0
    %4027 = vmatprep.subr.mxu0 0.0
    %4028 = vmatpush1.msra.mxu0 0.0
    %4029 = vmatprep.subr.mxu0 0.0
    %4030 = vmatpush1.msra.mxu0 0.0
    %4031 = vmatprep.subr.mxu0 0.0
    %4032 = vmatpush1.msra.mxu0 0.0
    %4033 = vmatprep.subr.mxu0 0.0
    %4034 = vmatpush1.msra.mxu0 0.0
    %4035 = vmatprep.subr.mxu0 0.0
    %4036 = vmatpush1.msra.mxu0 0.0
    %4037 = vmatprep.subr.mxu0 0.0
    %4038 = vmatpush1.msra.mxu0 0.0
    %4039 = vmatprep.subr.mxu0 0.0
    %4040 = vmatpush1.msra.mxu0 0.0
    %4041 = vmatprep.subr.mxu0 0.0
    %4042 = vmatpush1.msra.mxu0 0.0
    %4043 = vmatprep.subr.mxu0 0.0
    %4044 = vmatpush1.msra.mxu0 0.0
    %4045 = vmatprep.subr.mxu0 0.0
    %4046 = vmatpush1.msra.mxu0 0.0
    %4047 = vmatprep.subr.mxu0 0.0
    %4048 = vmatpush1.msra.mxu0 0.0
    %4049 = vmatprep.subr.mxu0 0.0
    %4050 = vmatpush1.msra.mxu0 0.0
    %4051 = vmatprep.subr.mxu0 0.0
    %4052 = vmatpush1.msra.mxu0 0.0
    %4053 = vmatprep.subr.mxu0 0.0
    %4054 = vmatpush1.msra.mxu0 0.0
    %4055 = vmatprep.subr.mxu0 0.0
    %4056 = vmatpush1.msra.mxu0 0.0
    %4057 = vmatprep.subr.mxu0 0.0
    %4058 = vmatpush1.msra.mxu0 0.0
    %4059 = vmatprep.subr.mxu0 0.0
    %4060 = vmatpush1.msra.mxu0 0.0
    %4061 = vmatprep.subr.mxu0 0.0
    %4062 = vmatpush1.msra.mxu0 0.0
    %4063 = vmatprep.subr.mxu0 0.0
    %4064 = vmatpush1.msra.mxu0 0.0
    %4065 = vmatprep.subr.mxu0 0.0
    %4066 = vmatpush1.msra.mxu0 0.0
    %4067 = vmatprep.subr.mxu0 0.0
    %4068 = vmatpush1.msra.mxu0 0.0
    %4069 = vmatprep.subr.mxu0 0.0
    %4070 = vmatpush1.msra.mxu0 0.0
    %4071 = vmatprep.subr.mxu0 0.0
    %4072 = vmatpush1.msra.mxu0 0.0
    %4073 = vmatprep.subr.mxu0 0.0
    %4074 = vmatpush1.msra.mxu0 0.0
    %4075 = vmatprep.subr.mxu0 0.0
    %4076 = vmatpush1.msra.mxu0 0.0
    %4077 = vmatprep.subr.mxu0 0.0
    %4078 = vmatpush1.msra.mxu0 0.0
    %4079 = vmatprep.subr.mxu0 0.0
    %4080 = vmatpush1.msra.mxu0 0.0
    %4081 = vmatprep.mubr.f32.mxu0 0.0
    %4082 = vmatmul.mubr.f32.gmra.mrb[0].mxu0 %v4012
    %v4083 = vpop.f32.mrb[0].mxu0
    %v4084 = vadd.f32 %v4009, %v4083
    %v4085 = vpop.f32.mrb[0].mxu0
    %4086 = vmatprep.mubr.f32.mxu0 0.0
    %4087 = vmatmul.mubr.f32.gmra.mrb[0].mxu0 %v4015
    %v4088 = vpop.f32.mrb[0].mxu0
    %v4089 = vadd.f32 %v4009, %v4088
    %v4090 = vpop.f32.mrb[0].mxu0
    %4091 = vdwg.mxu0
    %v4092 = vmul.f32 %v4084, 0.5
    %v4093 = vmul.f32 %v4089, 0.5
    %v4094 = vmul.f32 %v4084, %v4084
    %v4095 = vmul.f32 %v4089, %v4089
    %v4096 = vmul.f32 %v4084, %v4094
    %v4097 = vmul.f32 %v4089, %v4095
    %v4098 = vmul.f32 %v4096, 0.044715
    %v4099 = vmul.f32 %v4097, 0.044715
    %v4100 = vadd.f32 %v4084, %v4098
    %v4101 = vadd.f32 %v4089, %v4099
    %v4102 = vmul.f32 %v4100, 0.7978846
    %v4103 = vmul.f32 %v4101, 0.7978846
    %v4104 = vtanh.pop %v4102
    %v4105 = vtanh.pop %v4103
    %v4106 = vadd.f32 %v4104, 1.0
    %v4107 = vadd.f32 %v4105, 1.0
    %v4108 = vmul.f32 %v4092, %v4106
    %v4109 = vmul.f32 %v4093, %v4107
    %s4110 = scalar_lea.vmem %s11, 128
    %v4111 = vld [vmem:[%s4110] sm:$0xff]
    %v4112 = vld [vmem:[%s4110 + $0x8] sm:$0xff]
    %v4113 = vld [vmem:[%s4110 + $0x10] sm:$0xff]
    %v4114 = vld [vmem:[%s4110 + $0x18] sm:$0xff]
    %v4115 = vld [vmem:[%s4110 + $0x20] sm:$0xff]
    %v4116 = vld [vmem:[%s4110 + $0x28] sm:$0xff]
    %v4117 = vld [vmem:[%s4110 + $0x30] sm:$0xff]
    %v4118 = vld [vmem:[%s4110 + $0x38] sm:$0xff]
    %v4119 = vld [vmem:[%s4110 + $0x40] sm:$0xff]
    %v4120 = vld [vmem:[%s4110 + $0x48] sm:$0xff]
    %v4121 = vld [vmem:[%s4110 + $0x50] sm:$0xff]
    %v4122 = vld [vmem:[%s4110 + $0x58] sm:$0xff]
    %v4123 = vld [vmem:[%s4110 + $0x60] sm:$0xff]
    %v4124 = vld [vmem:[%s4110 + $0x68] sm:$0xff]
    %v4125 = vld [vmem:[%s4110 + $0x70] sm:$0xff]
    %v4126 = vld [vmem:[%s4110 + $0x78] sm:$0xff]
    %4127 = vmatprep.subr.mxu0 0.0
    %4128 = vmatpush1.msra.mxu0 %v4111
    %4129 = vmatprep.subr.mxu0 0.0
    %4130 = vmatpush1.msra.mxu0 %v4112
    %4131 = vmatprep.subr.mxu0 0.0
    %4132 = vmatpush1.msra.mxu0 %v4113
    %4133 = vmatprep.subr.mxu0 0.0
    %4134 = vmatpush1.msra.mxu0 %v4114
    %4135 = vmatprep.subr.mxu0 0.0
    %4136 = vmatpush1.msra.mxu0 %v4115
    %4137 = vmatprep.subr.mxu0 0.0
    %4138 = vmatpush1.msra.mxu0 %v4116
    %4139 = vmatprep.subr.mxu0 0.0
    %4140 = vmatpush1.msra.mxu0 %v4117
    %4141 = vmatprep.subr.mxu0 0.0
    %4142 = vmatpush1.msra.mxu0 %v4118
    %4143 = vmatprep.subr.mxu0 0.0
    %4144 = vmatpush1.msra.mxu0 %v4119
    %4145 = vmatprep.subr.mxu0 0.0
    %4146 = vmatpush1.msra.mxu0 %v4120
    %4147 = vmatprep.subr.mxu0 0.0
    %4148 = vmatpush1.msra.mxu0 %v4121
    %4149 = vmatprep.subr.mxu0 0.0
    %4150 = vmatpush1.msra.mxu0 %v4122
    %4151 = vmatprep.subr.mxu0 0.0
    %4152 = vmatpush1.msra.mxu0 %v4123
    %4153 = vmatprep.subr.mxu0 0.0
    %4154 = vmatpush1.msra.mxu0 %v4124
    %4155 = vmatprep.subr.mxu0 0.0
    %4156 = vmatpush1.msra.mxu0 %v4125
    %4157 = vmatprep.subr.mxu0 0.0
    %4158 = vmatpush1.msra.mxu0 %v4126
    %4159 = vmatprep.subr.mxu0 0.0
    %4160 = vmatpush1.msra.mxu0 0.0
    %4161 = vmatprep.subr.mxu0 0.0
    %4162 = vmatpush1.msra.mxu0 0.0
    %4163 = vmatprep.subr.mxu0 0.0
    %4164 = vmatpush1.msra.mxu0 0.0
    %4165 = vmatprep.subr.mxu0 0.0
    %4166 = vmatpush1.msra.mxu0 0.0
    %4167 = vmatprep.subr.mxu0 0.0
    %4168 = vmatpush1.msra.mxu0 0.0
    %4169 = vmatprep.subr.mxu0 0.0
    %4170 = vmatpush1.msra.mxu0 0.0
    %4171 = vmatprep.subr.mxu0 0.0
    %4172 = vmatpush1.msra.mxu0 0.0
    %4173 = vmatprep.subr.mxu0 0.0
    %4174 = vmatpush1.msra.mxu0 0.0
    %4175 = vmatprep.subr.mxu0 0.0
    %4176 = vmatpush1.msra.mxu0 0.0
    %4177 = vmatprep.subr.mxu0 0.0
    %4178 = vmatpush1.msra.mxu0 0.0
    %4179 = vmatprep.subr.mxu0 0.0
    %4180 = vmatpush1.msra.mxu0 0.0
    %4181 = vmatprep.subr.mxu0 0.0
    %4182 = vmatpush1.msra.mxu0 0.0
    %4183 = vmatprep.subr.mxu0 0.0
    %4184 = vmatpush1.msra.mxu0 0.0
    %4185 = vmatprep.subr.mxu0 0.0
    %4186 = vmatpush1.msra.mxu0 0.0
    %4187 = vmatprep.subr.mxu0 0.0
    %4188 = vmatpush1.msra.mxu0 0.0
    %4189 = vmatprep.subr.mxu0 0.0
    %4190 = vmatpush1.msra.mxu0 0.0
    %4191 = vmatprep.mubr.f32.mxu0 0.0
    %4192 = vmatmul.mubr.f32.gmra.mrb[0].mxu0 %v4108
    %v4193 = vpop.f32.mrb[0].mxu0
    %v4194 = vadd.f32 0.0, %v4193
    %v4195 = vpop.f32.mrb[0].mxu0
    %4196 = vmatprep.mubr.f32.mxu0 0.0
    %4197 = vmatmul.mubr.f32.gmra.mrb[0].mxu0 %v4109
    %v4198 = vpop.f32.mrb[0].mxu0
    %v4199 = vadd.f32 0.0, %v4198
    %v4200 = vpop.f32.mrb[0].mxu0
    %4201 = vdwg.mxu0
    %v4202 = vadd.f32 %v3950, %v4194
    %v4203 = vadd.f32 %v3951, %v4199
    %s4204 = scalar_lea.vmem %s12, 1
    %v4205 = vld [vmem:[%s4204] sm:$0x1]
    %v4207 = vlaneseq
    %v4208 = vshrl.u32 %v4207, 7
    %v4209 = vsub.s32 0, %v4208
    %v4210 = vrot.slane %v4205, %v4209
    %v4212 = vadd.f32 %v4202, %v4210
    %v4213 = vadd.f32 %v4203, %v4210
    %v4214 = vld [vmem:[%s13] sm:$0x1]
    %v4215 = vld [vmem:[%s14] sm:$0x1]
    %v4216 = vsel %vm63, %v4212, 0.0
    %4217 = vadd.xlane.f32.xlu0 %v4216
    %v4218 = vpop.xlane.xlu0 %4217
    %v4219 = vsel %vm63, %v4213, 0.0
    %4220 = vadd.xlane.f32.xlu0 %v4219
    %v4221 = vpop.xlane.xlu0 %4220
    %v4222 = vmul.f32 %v4218, %v70
    %v4223 = vmul.f32 %v4221, %v70
    %v4224 = vsub.f32 %v4212, %v4222
    %v4225 = vsub.f32 %v4213, %v4223
    %v4226 = vmul.f32 %v4224, %v4224
    %v4227 = vmul.f32 %v4225, %v4225
    %v4228 = vsel %vm63, %v4226, 0.0
    %4229 = vadd.xlane.f32.xlu0 %v4228
    %v4230 = vpop.xlane.xlu0 %4229
    %v4231 = vsel %vm63, %v4227, 0.0
    %4232 = vadd.xlane.f32.xlu0 %v4231
    %v4233 = vpop.xlane.xlu0 %4232
    %v4234 = vmul.f32 %v4230, %v70
    %v4235 = vmul.f32 %v4233, %v70
    %v4236 = vadd.f32 %v4234, 1e-05
    %v4237 = vadd.f32 %v4235, 1e-05
    %v4238 = vrsqrt.pop %v4236
    %v4239 = vrsqrt.pop %v4237
    %v4240 = vmul.f32 %v4224, %v4238
    %v4241 = vmul.f32 %v4225, %v4239
    %v4243 = vlaneseq
    %v4244 = vshrl.u32 %v4243, 7
    %v4245 = vsub.s32 0, %v4244
    %v4246 = vrot.slane %v4214, %v4245
    %v4248 = vmul.f32 %v4240, %v4246
    %v4249 = vmul.f32 %v4241, %v4246
    %v4251 = vlaneseq
    %v4252 = vshrl.u32 %v4251, 7
    %v4253 = vsub.s32 0, %v4252
    %v4254 = vrot.slane %v4215, %v4253
    %v4256 = vadd.f32 %v4248, %v4254
    %v4257 = vadd.f32 %v4249, %v4254
    %v4258 = vld [vmem:[%s15] sm:$0xff]
    %v4259 = vld [vmem:[%s15 + $0x8] sm:$0xff]
    %v4260 = vld [vmem:[%s15 + $0x10] sm:$0xff]
    %v4261 = vld [vmem:[%s15 + $0x18] sm:$0xff]
    %v4263 = vsel %vm63, %v4256, 0
    %v4266 = vsel %vm63, %v4257, 0
    %4268 = vmatprep.subr.mxu0 0.0
    %4269 = vmatpush1.msra.mxu0 %v4258
    %4270 = vmatprep.subr.mxu0 0.0
    %4271 = vmatpush1.msra.mxu0 %v4259
    %4272 = vmatprep.subr.mxu0 0.0
    %4273 = vmatpush1.msra.mxu0 %v4260
    %4274 = vmatprep.subr.mxu0 0.0
    %4275 = vmatpush1.msra.mxu0 %v4261
    %4276 = vmatprep.subr.mxu0 0.0
    %4277 = vmatpush1.msra.mxu0 0.0
    %4278 = vmatprep.subr.mxu0 0.0
    %4279 = vmatpush1.msra.mxu0 0.0
    %4280 = vmatprep.subr.mxu0 0.0
    %4281 = vmatpush1.msra.mxu0 0.0
    %4282 = vmatprep.subr.mxu0 0.0
    %4283 = vmatpush1.msra.mxu0 0.0
    %4284 = vmatprep.subr.mxu0 0.0
    %4285 = vmatpush1.msra.mxu0 0.0
    %4286 = vmatprep.subr.mxu0 0.0
    %4287 = vmatpush1.msra.mxu0 0.0
    %4288 = vmatprep.subr.mxu0 0.0
    %4289 = vmatpush1.msra.mxu0 0.0
    %4290 = vmatprep.subr.mxu0 0.0
    %4291 = vmatpush1.msra.mxu0 0.0
    %4292 = vmatprep.subr.mxu0 0.0
    %4293 = vmatpush1.msra.mxu0 0.0
    %4294 = vmatprep.subr.mxu0 0.0
    %4295 = vmatpush1.msra.mxu0 0.0
    %4296 = vmatprep.subr.mxu0 0.0
    %4297 = vmatpush1.msra.mxu0 0.0
    %4298 = vmatprep.subr.mxu0 0.0
    %4299 = vmatpush1.msra.mxu0 0.0
    %4300 = vmatprep.subr.mxu0 0.0
    %4301 = vmatpush1.msra.mxu0 0.0
    %4302 = vmatprep.subr.mxu0 0.0
    %4303 = vmatpush1.msra.mxu0 0.0
    %4304 = vmatprep.subr.mxu0 0.0
    %4305 = vmatpush1.msra.mxu0 0.0
    %4306 = vmatprep.subr.mxu0 0.0
    %4307 = vmatpush1.msra.mxu0 0.0
    %4308 = vmatprep.subr.mxu0 0.0
    %4309 = vmatpush1.msra.mxu0 0.0
    %4310 = vmatprep.subr.mxu0 0.0
    %4311 = vmatpush1.msra.mxu0 0.0
    %4312 = vmatprep.subr.mxu0 0.0
    %4313 = vmatpush1.msra.mxu0 0.0
    %4314 = vmatprep.subr.mxu0 0.0
    %4315 = vmatpush1.msra.mxu0 0.0
    %4316 = vmatprep.subr.mxu0 0.0
    %4317 = vmatpush1.msra.mxu0 0.0
    %4318 = vmatprep.subr.mxu0 0.0
    %4319 = vmatpush1.msra.mxu0 0.0
    %4320 = vmatprep.subr.mxu0 0.0
    %4321 = vmatpush1.msra.mxu0 0.0
    %4322 = vmatprep.subr.mxu0 0.0
    %4323 = vmatpush1.msra.mxu0 0.0
    %4324 = vmatprep.subr.mxu0 0.0
    %4325 = vmatpush1.msra.mxu0 0.0
    %4326 = vmatprep.subr.mxu0 0.0
    %4327 = vmatpush1.msra.mxu0 0.0
    %4328 = vmatprep.subr.mxu0 0.0
    %4329 = vmatpush1.msra.mxu0 0.0
    %4330 = vmatprep.subr.mxu0 0.0
    %4331 = vmatpush1.msra.mxu0 0.0
    %4332 = vmatprep.mubr.f32.mxu0 0.0
    %4333 = vmatmul.mubr.f32.gmra.mrb[0].mxu0 %v4263
    %v4334 = vpop.f32.mrb[0].mxu0
    %v4335 = vadd.f32 0.0, %v4334
    %v4336 = vpop.f32.mrb[0].mxu0
    %4337 = vmatprep.mubr.f32.mxu0 0.0
    %4338 = vmatmul.mubr.f32.gmra.mrb[0].mxu0 %v4266
    %v4339 = vpop.f32.mrb[0].mxu0
    %v4340 = vadd.f32 0.0, %v4339
    %v4341 = vpop.f32.mrb[0].mxu0
    %4342 = vdwg.mxu0
    %4343 = vst [vmem:[#allocation2] sm:$0xff] %v4335
    %4344 = vst [vmem:[#allocation2 + $0x8] sm:$0xff] %v4340
    // Predicated region
    $region66: #{tpu_custom_call.1} parent=1 // pred_check
      _
    $region67: #{tpu_custom_call.1} parent=1 // pred_check_branch
      %4346 = sbr.rel (0) target = $region69
    $region68: #{tpu_custom_call.1} parent=1 // pred_region
      %s4348 = ssub.s32 256, 256
      %4349 = vsyncadd [#allocation3], %s4348
      %s4350 = sshll.u32 [#allocation2], 4
      %s4351 = int_to_ptr.vmem [resolvable:$true] %s4350
      %4356 = dma.vmem_to_hbm [thread:$0]  %s4351, 256, %s16, [#allocation3], 128, 128, 8
    $region69: #{tpu_custom_call.1} parent=1 // pred_fallthru
      _
    // Predicated region
    $region70: #{tpu_custom_call.1} parent=1 // pred_check
      _
    $region71: #{tpu_custom_call.1} parent=1 // pred_check_branch
      %4358 = sbr.rel (0) target = $region73
    $region72: #{tpu_custom_call.1} parent=1 // pred_region
      %4359 = dma.done [#allocation3], 256
    $region73: #{tpu_custom_call.1} parent=1 // pred_fallthru
      _
    %4360 = vsyncpa [#allocation3], 1

</llo_original>
